<compile_context>
chip_gen: v6e
topology: v6e:2x2x1
jax: 0.10.0
libtpu: 0.0.40
codegen_flags: <defaults>
</compile_context>

<pallas_src>
import numpy as np
import jax
import jax.numpy as jnp
from jax import lax
from jax.experimental import pallas as pl
from jax.experimental.pallas import tpu as pltpu

# ----- hyperparameters (scaled down from 768/12/64/3072/2 layers) ------------
D_MODEL = 128
N_HEADS = 4
D_K = D_V = 32            # N_HEADS * D_K == D_MODEL (as in the original)
D_FF = 256
N_LAYERS = 2
VOCAB_SIZE = 256
MAXLEN = 16
N_SEGMENTS = 2
MAX_PRED = 4
PAD_ID = 0                # TODO(synk): tokenizer.json lookup of '[PAD]' replaced by constant id 0
LN_EPS = 1e-5             # torch.nn.LayerNorm default


# ----------------------------- in-kernel math ---------------------------------
def _mm(a, b):
    # bf16 at the MXU boundary (weights already arrive bf16 -> their astype is a no-op),
    # f32 accumulation (bf16-native MXU on v5e/v6e/v7x).
    return jnp.dot(a.astype(jnp.bfloat16), b.astype(jnp.bfloat16),
                   preferred_element_type=jnp.float32)


def _gelu(x):
    # TODO(synk): tanh-approx GELU (EUP tanh) replaces exact torch.erf; |rel err| ~1e-3.
    c = np.float32(0.7978845608028654)  # sqrt(2/pi)
    return 0.5 * x * (1.0 + jnp.tanh(c * (x + np.float32(0.044715) * x * x * x)))


def _layernorm(x, g, b):
    mean = jnp.mean(x, axis=-1, keepdims=True)
    var = jnp.mean(jnp.square(x - mean), axis=-1, keepdims=True)
    return (x - mean) * lax.rsqrt(var + LN_EPS) * g + b


def _softmax(x):
    m = jnp.max(x, axis=-1, keepdims=True)
    e = jnp.exp(x - m)
    return e * pl.reciprocal(jnp.sum(e, axis=-1, keepdims=True), approx=True)


# ------------------------------- fused kernel ----------------------------------
def bert_fused_kernel(emb_ref, keypad_ref, clsg_ref, mskg_ref, mskpad_ref,
                      embg_ref, embb_ref,
                      wqkv_ref, bqkv_ref, wo_ref, bo_ref, lng_ref, lnb_ref,
                      w1_ref, b1_ref, w2_ref, b2_ref,
                      fcw_ref, fcb_ref, clsw_ref, clsb_ref,
                      linw_ref, linb_ref, ng_ref, nb_ref,
                      decwt_ref, decb_ref,
                      lm_ref, clsf_ref):
    B = keypad_ref.shape[0]
    S = keypad_ref.shape[2]
    neg = jnp.float32(-1e9)
    scale = jnp.float32(1.0 / np.sqrt(D_K))

    # ---- embedding LayerNorm ----
    x = _layernorm(emb_ref[...], embg_ref[...], embb_ref[...])          # (B*S, D) f32
    pad_mask = keypad_ref[...] != 0                                     # (B, 1, S) bool, hoisted

    # ---- encoder layers (static loop, stacked bf16 weights indexed at [l]) ----
    # TODO(synk): at BERT-base sizes make this an 'arbitrary' layer grid axis with BlockSpecs
    # indexing the stacked weights (double-buffered bf16 weight streaming), and add a
    # 'parallel' row/batch grid axis so v7x uses both TensorCores.
    for l in range(N_LAYERS):
        # fused QKV projection: one MXU push, N = 3*D_MODEL
        qkv = _mm(x, wqkv_ref[l]) + bqkv_ref[l]                         # (B*S, 3D) f32
        q3 = qkv[:, 0 * D_MODEL:1 * D_MODEL].reshape(B, S, D_MODEL) * scale
        k3 = qkv[:, 1 * D_MODEL:2 * D_MODEL].reshape(B, S, D_MODEL)
        v3 = qkv[:, 2 * D_MODEL:3 * D_MODEL].reshape(B, S, D_MODEL)

        # TODO(synk): batched 'bqhd,bkhd->bhqk' head einsums need a two-batch-dim dot_general
        # (or a 4-D non-minormost transpose) that Mosaic does not lower in-kernel; keep the
        # per-head loop on the supported leading-batch 3-D einsum pattern.
        ctx_heads = []
        for h in range(N_HEADS):                                        # small static head loop
            qh = q3[:, :, h * D_K:(h + 1) * D_K].astype(jnp.bfloat16)
            kh = k3[:, :, h * D_K:(h + 1) * D_K].astype(jnp.bfloat16)
            vh = v3[:, :, h * D_V:(h + 1) * D_V].astype(jnp.bfloat16)
            s = jnp.einsum('bqd,bkd->bqk', qh, kh,
                           preferred_element_type=jnp.float32)          # (B,S,S) f32
            s = jnp.where(pad_mask, neg, s)                             # pad-key masking
            a = _softmax(s)
            ctx_heads.append(jnp.einsum('bqk,bkd->bqd', a.astype(jnp.bfloat16), vh,
                                        preferred_element_type=jnp.float32))
        # one lane-axis concat, then a single full-width (K = D_MODEL) W_O matmul
        ctx = jnp.concatenate(ctx_heads, axis=-1).reshape(B * S, D_MODEL)
        attn_out = _mm(ctx, wo_ref[l]) + bo_ref[l]
        h1 = _layernorm(attn_out + x, lng_ref[l], lnb_ref[l])           # LN(out + residual)
        # position-wise FFN: fc2(gelu(fc1(x)))  (no residual/norm, as in the module)
        ff = _gelu(_mm(h1, w1_ref[l]) + b1_ref[l])
        x = _mm(ff, w2_ref[l]) + b2_ref[l]

    # ---- classifier head: gather CLS rows via tiny one-hot matmul (bf16 MXU) ----
    x_cls = _mm(clsg_ref[...], x)                                       # (B, D)
    h_pooled = jnp.tanh(_mm(x_cls, fcw_ref[...]) + fcb_ref[...])
    clsf_ref[...] = (_mm(h_pooled, clsw_ref[...]) + clsb_ref[...]).astype(clsf_ref.dtype)

    # ---- masked-LM head: gather masked positions via one-hot matmul ----
    # Order of ops matches the reference module exactly: masked_fill_(-1e9) on the gathered
    # hidden rows, Softmax over the feature dim, THEN linear -> gelu -> LayerNorm -> decoder.
    hm = _mm(mskg_ref[...], x)                                          # (B*P, D)
    hm = jnp.where(mskpad_ref[...] != 0, neg, hm)
    hm = _softmax(hm)
    hm = _gelu(_mm(hm, linw_ref[...]) + linb_ref[...])
    hm = _layernorm(hm, ng_ref[...], nb_ref[...])
    # tied decoder: weight arrives pre-transposed (D_MODEL, VOCAB) -> lane-dense N=256 output
    lm_ref[...] = (_mm(hm, decwt_ref[...]) + decb_ref[...]).astype(lm_ref.dtype)


# ------------------------------ parameters -------------------------------------
def init_params(key):
    keys = iter(jax.random.split(key, 16))

    def w(shape, dtype=jnp.bfloat16):
        return (jax.random.normal(next(keys), shape, jnp.float32) * 0.02).astype(dtype)

    # TODO(synk): torch's MultiHeadAttention builds its output Linear/LayerNorm freshly
    # (randomly) inside forward(); modeled here as fixed per-layer parameters.
    return {
        "tok_embed": w((VOCAB_SIZE, D_MODEL), jnp.float32),   # f32 master copy (embedding gather)
        "pos_embed": w((MAXLEN, D_MODEL), jnp.float32),
        "seg_embed": w((N_SEGMENTS, D_MODEL), jnp.float32),
        "emb_ln_g": jnp.ones((1, D_MODEL), jnp.float32),
        "emb_ln_b": jnp.zeros((1, D_MODEL), jnp.float32),
        # encoder layers stacked along a leading layer axis; matmul weights are bf16
        "wqkv": w((N_LAYERS, D_MODEL, 3 * D_MODEL)),          # fused W_Q | W_K | W_V
        "bqkv": jnp.zeros((N_LAYERS, 1, 3 * D_MODEL), jnp.float32),
        "wo": w((N_LAYERS, N_HEADS * D_V, D_MODEL)),
        "bo": jnp.zeros((N_LAYERS, 1, D_MODEL), jnp.float32),
        "lng": jnp.ones((N_LAYERS, 1, D_MODEL), jnp.float32),
        "lnb": jnp.zeros((N_LAYERS, 1, D_MODEL), jnp.float32),
        "w1": w((N_LAYERS, D_MODEL, D_FF)),
        "b1": jnp.zeros((N_LAYERS, 1, D_FF), jnp.float32),
        "w2": w((N_LAYERS, D_FF, D_MODEL)),
        "b2": jnp.zeros((N_LAYERS, 1, D_MODEL), jnp.float32),
        "fc_w": w((D_MODEL, D_MODEL)), "fc_b": jnp.zeros((1, D_MODEL), jnp.float32),
        "cls_w": w((D_MODEL, 2)),      "cls_b": jnp.zeros((1, 2), jnp.float32),
        "lin_w": w((D_MODEL, D_MODEL)), "lin_b": jnp.zeros((1, D_MODEL), jnp.float32),
        "norm_g": jnp.ones((1, D_MODEL), jnp.float32),
        "norm_b": jnp.zeros((1, D_MODEL), jnp.float32),
        "dec_b": jnp.zeros((1, VOCAB_SIZE), jnp.float32),
    }


# ------------------------------ forward ----------------------------------------
def bert_forward(params, input_ids, segment_ids, masked_pos, masked_tokens, max_pred):
    B, S = input_ids.shape

    # Embedding: tok + pos + seg gathers in JAX glue (data-dependent), LN in-kernel.
    pos = jnp.arange(S, dtype=jnp.int32)[None, :]
    emb = (params["tok_embed"][input_ids]
           + params["pos_embed"][pos]
           + params["seg_embed"][segment_ids])                    # (B, S, D)
    emb_flat = emb.reshape(B * S, D_MODEL)

    # get_attn_pad_mask: int32 (B,1,S) key-pad mask; broadcast to (B,S,S) inside kernel.
    key_pad = (input_ids == PAD_ID).astype(jnp.int32)[:, None, :]

    # one-hot gather matrices (bf16; 0/1 exact): data-dependent row gathers become MXU dots.
    # TODO(synk): at production B*S switch to scalar-prefetched index arrays in SMEM
    # (PrefetchScalarGridSpec) + dynamic row reads instead of O(B^2*S*P) one-hot matmuls.
    cls_gather = jax.nn.one_hot(jnp.arange(B) * S, B * S, dtype=jnp.bfloat16)   # (B, B*S)
    flat_pos = (jnp.arange(B)[:, None] * S + masked_pos).reshape(-1)
    msk_gather = jax.nn.one_hot(flat_pos, B * S, dtype=jnp.bfloat16)            # (B*P, B*S)
    msk_pad = (masked_tokens == PAD_ID).astype(jnp.int32).reshape(B * max_pred, 1)

    # tied decoder weight, pre-transposed ONCE in the wrapper (free) -> MXU-native in-kernel.
    dec_w_t = params["tok_embed"].T.astype(jnp.bfloat16)          # (D_MODEL, VOCAB)

    # TODO(synk): for real BERT sizes re-derive vmem_limit_bytes per generation (v7x: 64 MiB
    # physical per TC, v5e scoped default 16 MiB), add a layer grid + parallel row grid axis.
    lm_flat, logits_clsf = pl.pallas_call(
        bert_fused_kernel,
        out_shape=(jax.ShapeDtypeStruct((B * max_pred, VOCAB_SIZE), jnp.float32),
                   jax.ShapeDtypeStruct((B, 2), jnp.float32)),
        compiler_params=pltpu.CompilerParams(vmem_limit_bytes=32 * 1024 * 1024),
    )(emb_flat, key_pad, cls_gather, msk_gather, msk_pad,
      params["emb_ln_g"], params["emb_ln_b"],
      params["wqkv"], params["bqkv"], params["wo"], params["bo"],
      params["lng"], params["lnb"],
      params["w1"], params["b1"], params["w2"], params["b2"],
      params["fc_w"], params["fc_b"], params["cls_w"], params["cls_b"],
      params["lin_w"], params["lin_b"], params["norm_g"], params["norm_b"],
      dec_w_t, params["dec_b"])

    return lm_flat.reshape(B, max_pred, VOCAB_SIZE), logits_clsf


# -------------------------------- main ------------------------------------------
if __name__ == "__main__":
    key = jax.random.PRNGKey(0)
    pkey, k1, k2, k3 = jax.random.split(key, 4)
    params = init_params(pkey)

    B, S = 2, 8
    input_ids = jax.random.randint(k1, (B, S), 1, VOCAB_SIZE, dtype=jnp.int32)
    input_ids = input_ids.at[:, -2:].set(PAD_ID)                      # pad tail tokens
    segment_ids = jnp.concatenate([jnp.zeros((B, S // 2), jnp.int32),
                                   jnp.ones((B, S // 2), jnp.int32)], axis=1)
    masked_pos = jax.random.randint(k2, (B, MAX_PRED), 0, S, dtype=jnp.int32)
    masked_tokens = jax.random.randint(k3, (B, MAX_PRED), 1, VOCAB_SIZE, dtype=jnp.int32)
    masked_tokens = masked_tokens.at[:, -1].set(PAD_ID)               # one PAD masked token

    fwd = jax.jit(bert_forward, static_argnums=(5,))
    logits_lm, logits_clsf = fwd(params, input_ids, segment_ids,
                                 masked_pos, masked_tokens, MAX_PRED)
    jax.block_until_ready((logits_lm, logits_clsf))
    assert logits_lm.shape == (B, MAX_PRED, VOCAB_SIZE)
    assert logits_clsf.shape == (B, 2)
    assert bool(jnp.all(jnp.isfinite(logits_lm))) and bool(jnp.all(jnp.isfinite(logits_clsf)))
    print("KERNEL_OK")
</pallas_src>

<mosaic_0001>
module attributes {stable_mosaic.version = 11 : i64} {
  func.func @bert_fused_kernel(%arg0: memref<16x128xf32, #tpu.memory_space<vmem>>, %arg1: memref<2x1x8xi32, #tpu.memory_space<vmem>>, %arg2: memref<2x16xbf16, #tpu.memory_space<vmem>>, %arg3: memref<8x16xbf16, #tpu.memory_space<vmem>>, %arg4: memref<8x1xi32, #tpu.memory_space<vmem>>, %arg5: memref<1x128xf32, #tpu.memory_space<vmem>>, %arg6: memref<1x128xf32, #tpu.memory_space<vmem>>, %arg7: memref<2x128x384xbf16, #tpu.memory_space<vmem>>, %arg8: memref<2x1x384xf32, #tpu.memory_space<vmem>>, %arg9: memref<2x128x128xbf16, #tpu.memory_space<vmem>>, %arg10: memref<2x1x128xf32, #tpu.memory_space<vmem>>, %arg11: memref<2x1x128xf32, #tpu.memory_space<vmem>>, %arg12: memref<2x1x128xf32, #tpu.memory_space<vmem>>, %arg13: memref<2x128x256xbf16, #tpu.memory_space<vmem>>, %arg14: memref<2x1x256xf32, #tpu.memory_space<vmem>>, %arg15: memref<2x256x128xbf16, #tpu.memory_space<vmem>>, %arg16: memref<2x1x128xf32, #tpu.memory_space<vmem>>, %arg17: memref<128x128xbf16, #tpu.memory_space<vmem>>, %arg18: memref<1x128xf32, #tpu.memory_space<vmem>>, %arg19: memref<128x2xbf16, #tpu.memory_space<vmem>>, %arg20: memref<1x2xf32, #tpu.memory_space<vmem>>, %arg21: memref<128x128xbf16, #tpu.memory_space<vmem>>, %arg22: memref<1x128xf32, #tpu.memory_space<vmem>>, %arg23: memref<1x128xf32, #tpu.memory_space<vmem>>, %arg24: memref<1x128xf32, #tpu.memory_space<vmem>>, %arg25: memref<128x256xbf16, #tpu.memory_space<vmem>>, %arg26: memref<1x256xf32, #tpu.memory_space<vmem>>, %arg27: memref<8x256xf32, #tpu.memory_space<vmem>>, %arg28: memref<2x2xf32, #tpu.memory_space<vmem>>) attributes {dimension_semantics = [], scalar_prefetch = 0 : i64, scratch_operands = 0 : i64, tpu.core_type = #tpu.core_type<tc>} {
    %c0 = arith.constant 0 : index
    %c0_0 = arith.constant 0 : index
    %0 = vector.load %arg0[%c0, %c0_0] : memref<16x128xf32, #tpu.memory_space<vmem>>, vector<16x128xf32>
    %c0_1 = arith.constant 0 : index
    %c0_2 = arith.constant 0 : index
    %1 = vector.load %arg5[%c0_1, %c0_2] : memref<1x128xf32, #tpu.memory_space<vmem>>, vector<1x128xf32>
    %c0_3 = arith.constant 0 : index
    %c0_4 = arith.constant 0 : index
    %2 = vector.load %arg6[%c0_3, %c0_4] : memref<1x128xf32, #tpu.memory_space<vmem>>, vector<1x128xf32>
    %cst = arith.constant dense<0.000000e+00> : vector<16xf32>
    %3 = vector.multi_reduction <add>, %0, %cst [1] : vector<16x128xf32> to vector<16xf32>
    %4 = vector.shape_cast %3 : vector<16xf32> to vector<16x1xf32>
    %cst_5 = arith.constant 1.280000e+02 : f32
    %5 = vector.broadcast %cst_5 : f32 to vector<16x1xf32>
    %6 = arith.divf %4, %5 : vector<16x1xf32>
    %7 = vector.broadcast %6 : vector<16x1xf32> to vector<16x128xf32>
    %8 = arith.subf %0, %7 : vector<16x128xf32>
    %9 = arith.mulf %8, %8 : vector<16x128xf32>
    %cst_6 = arith.constant dense<0.000000e+00> : vector<16xf32>
    %10 = vector.multi_reduction <add>, %9, %cst_6 [1] : vector<16x128xf32> to vector<16xf32>
    %11 = vector.shape_cast %10 : vector<16xf32> to vector<16x1xf32>
    %cst_7 = arith.constant 1.280000e+02 : f32
    %12 = vector.broadcast %cst_7 : f32 to vector<16x1xf32>
    %13 = arith.divf %11, %12 : vector<16x1xf32>
    %14 = vector.broadcast %6 : vector<16x1xf32> to vector<16x128xf32>
    %15 = arith.subf %0, %14 : vector<16x128xf32>
    %cst_8 = arith.constant 9.99999974E-6 : f32
    %16 = vector.broadcast %cst_8 : f32 to vector<16x1xf32>
    %17 = arith.addf %13, %16 : vector<16x1xf32>
    %18 = math.rsqrt %17 : vector<16x1xf32>
    %19 = vector.broadcast %18 : vector<16x1xf32> to vector<16x128xf32>
    %20 = arith.mulf %15, %19 : vector<16x128xf32>
    %21 = vector.broadcast %1 : vector<1x128xf32> to vector<16x128xf32>
    %22 = arith.mulf %20, %21 : vector<16x128xf32>
    %23 = vector.broadcast %2 : vector<1x128xf32> to vector<16x128xf32>
    %24 = arith.addf %22, %23 : vector<16x128xf32>
    %c0_9 = arith.constant 0 : index
    %c0_10 = arith.constant 0 : index
    %c0_11 = arith.constant 0 : index
    %25 = vector.load %arg1[%c0_9, %c0_10, %c0_11] : memref<2x1x8xi32, #tpu.memory_space<vmem>>, vector<2x1x8xi32>
    %c0_i32 = arith.constant 0 : i32
    %26 = vector.broadcast %c0_i32 : i32 to vector<2x1x8xi32>
    %27 = arith.cmpi ne, %25, %26 : vector<2x1x8xi32>
    %c0_12 = arith.constant 0 : index
    %c0_13 = arith.constant 0 : index
    %c0_14 = arith.constant 0 : index
    %28 = vector.load %arg7[%c0_12, %c0_13, %c0_14] : memref<2x128x384xbf16, #tpu.memory_space<vmem>>, vector<1x128x384xbf16>
    %29 = vector.shape_cast %28 : vector<1x128x384xbf16> to vector<128x384xbf16>
    %30 = arith.truncf %24 : vector<16x128xf32> to vector<16x128xbf16>
    %cst_15 = arith.constant dense<0.000000e+00> : vector<16x384xf32>
    %31 = tpu.matmul %30, %29, %cst_15 {dimension_numbers = #tpu.dot_dimension_numbers<[1], [0], [0], [1], [0, 0, 1, 1], [], []>} : vector<16x128xbf16>, vector<128x384xbf16>, vector<16x384xf32> -> vector<16x384xf32>
    %c0_16 = arith.constant 0 : index
    %c0_17 = arith.constant 0 : index
    %c0_18 = arith.constant 0 : index
    %32 = vector.load %arg8[%c0_16, %c0_17, %c0_18] : memref<2x1x384xf32, #tpu.memory_space<vmem>>, vector<1x1x384xf32>
    %33 = vector.shape_cast %32 : vector<1x1x384xf32> to vector<1x384xf32>
    %34 = vector.broadcast %33 : vector<1x384xf32> to vector<16x384xf32>
    %35 = arith.addf %31, %34 : vector<16x384xf32>
    %36 = vector.extract_strided_slice %35 {offsets = [0, 0], sizes = [16, 128], strides = [1, 1]} : vector<16x384xf32> to vector<16x128xf32>
    %37 = vector.shape_cast %36 : vector<16x128xf32> to vector<2x8x128xf32>
    %cst_19 = arith.constant 0.176776692 : f32
    %38 = vector.broadcast %cst_19 : f32 to vector<2x8x128xf32>
    %39 = arith.mulf %37, %38 : vector<2x8x128xf32>
    %40 = vector.extract_strided_slice %35 {offsets = [0, 128], sizes = [16, 128], strides = [1, 1]} : vector<16x384xf32> to vector<16x128xf32>
    %41 = vector.shape_cast %40 : vector<16x128xf32> to vector<2x8x128xf32>
    %42 = vector.extract_strided_slice %35 {offsets = [0, 256], sizes = [16, 128], strides = [1, 1]} : vector<16x384xf32> to vector<16x128xf32>
    %43 = vector.shape_cast %42 : vector<16x128xf32> to vector<2x8x128xf32>
    %44 = vector.extract_strided_slice %39 {offsets = [0, 0, 0], sizes = [2, 8, 32], strides = [1, 1, 1]} : vector<2x8x128xf32> to vector<2x8x32xf32>
    %45 = arith.truncf %44 : vector<2x8x32xf32> to vector<2x8x32xbf16>
    %46 = vector.extract_strided_slice %41 {offsets = [0, 0, 0], sizes = [2, 8, 32], strides = [1, 1, 1]} : vector<2x8x128xf32> to vector<2x8x32xf32>
    %47 = arith.truncf %46 : vector<2x8x32xf32> to vector<2x8x32xbf16>
    %48 = vector.extract_strided_slice %43 {offsets = [0, 0, 0], sizes = [2, 8, 32], strides = [1, 1, 1]} : vector<2x8x128xf32> to vector<2x8x32xf32>
    %49 = arith.truncf %48 : vector<2x8x32xf32> to vector<2x8x32xbf16>
    "tpu.trace_start"() <{level = 10 : i32, message = "bqd,bkd->bqk"}> : () -> ()
    %cst_20 = arith.constant dense<0.000000e+00> : vector<2x8x8xf32>
    %50 = tpu.matmul %45, %47, %cst_20 {dimension_numbers = #tpu.dot_dimension_numbers<[2], [2], [1], [1], [0, 0, 0, 1, 1, 1], [0], [0]>} : vector<2x8x32xbf16>, vector<2x8x32xbf16>, vector<2x8x8xf32> -> vector<2x8x8xf32>
    %cst_21 = arith.constant -1.000000e+09 : f32
    "tpu.trace_stop"() : () -> ()
    %51 = vector.shape_cast %27 : vector<2x1x8xi1> to vector<2x1x8xi1>
    %52 = vector.broadcast %51 : vector<2x1x8xi1> to vector<2x8x8xi1>
    %53 = vector.broadcast %cst_21 : f32 to vector<2x8x8xf32>
    %54 = arith.select %52, %53, %50 : vector<2x8x8xi1>, vector<2x8x8xf32>
    %cst_22 = arith.constant dense<0xFF800000> : vector<2x8xf32>
    %55 = vector.multi_reduction <maximumf>, %54, %cst_22 [2] : vector<2x8x8xf32> to vector<2x8xf32>
    %56 = vector.shape_cast %55 : vector<2x8xf32> to vector<2x8x1xf32>
    %57 = vector.broadcast %56 : vector<2x8x1xf32> to vector<2x8x8xf32>
    %58 = arith.subf %54, %57 : vector<2x8x8xf32>
    %59 = math.exp %58 : vector<2x8x8xf32>
    %cst_23 = arith.constant dense<0.000000e+00> : vector<2x8xf32>
    %60 = vector.multi_reduction <add>, %59, %cst_23 [2] : vector<2x8x8xf32> to vector<2x8xf32>
    %61 = vector.shape_cast %60 : vector<2x8xf32> to vector<2x8x1xf32>
    %62 = tpu.reciprocal %61 {approx = true} : vector<2x8x1xf32> -> vector<2x8x1xf32>
    %63 = vector.broadcast %62 : vector<2x8x1xf32> to vector<2x8x8xf32>
    %64 = arith.mulf %59, %63 : vector<2x8x8xf32>
    %65 = arith.truncf %64 : vector<2x8x8xf32> to vector<2x8x8xbf16>
    "tpu.trace_start"() <{level = 10 : i32, message = "bqk,bkd->bqd"}> : () -> ()
    %cst_24 = arith.constant dense<0.000000e+00> : vector<2x8x32xf32>
    %66 = tpu.matmul %65, %49, %cst_24 {dimension_numbers = #tpu.dot_dimension_numbers<[2], [1], [1], [2], [0, 0, 0, 1, 1, 2], [0], [0]>} : vector<2x8x8xbf16>, vector<2x8x32xbf16>, vector<2x8x32xf32> -> vector<2x8x32xf32>
    "tpu.trace_stop"() : () -> ()
    %67 = vector.extract_strided_slice %39 {offsets = [0, 0, 32], sizes = [2, 8, 32], strides = [1, 1, 1]} : vector<2x8x128xf32> to vector<2x8x32xf32>
    %68 = arith.truncf %67 : vector<2x8x32xf32> to vector<2x8x32xbf16>
    %69 = vector.extract_strided_slice %41 {offsets = [0, 0, 32], sizes = [2, 8, 32], strides = [1, 1, 1]} : vector<2x8x128xf32> to vector<2x8x32xf32>
    %70 = arith.truncf %69 : vector<2x8x32xf32> to vector<2x8x32xbf16>
    %71 = vector.extract_strided_slice %43 {offsets = [0, 0, 32], sizes = [2, 8, 32], strides = [1, 1, 1]} : vector<2x8x128xf32> to vector<2x8x32xf32>
    %72 = arith.truncf %71 : vector<2x8x32xf32> to vector<2x8x32xbf16>
    "tpu.trace_start"() <{level = 10 : i32, message = "bqd,bkd->bqk"}> : () -> ()
    %cst_25 = arith.constant dense<0.000000e+00> : vector<2x8x8xf32>
    %73 = tpu.matmul %68, %70, %cst_25 {dimension_numbers = #tpu.dot_dimension_numbers<[2], [2], [1], [1], [0, 0, 0, 1, 1, 1], [0], [0]>} : vector<2x8x32xbf16>, vector<2x8x32xbf16>, vector<2x8x8xf32> -> vector<2x8x8xf32>
    %cst_26 = arith.constant -1.000000e+09 : f32
    "tpu.trace_stop"() : () -> ()
    %74 = vector.shape_cast %27 : vector<2x1x8xi1> to vector<2x1x8xi1>
    %75 = vector.broadcast %74 : vector<2x1x8xi1> to vector<2x8x8xi1>
    %76 = vector.broadcast %cst_26 : f32 to vector<2x8x8xf32>
    %77 = arith.select %75, %76, %73 : vector<2x8x8xi1>, vector<2x8x8xf32>
    %cst_27 = arith.constant dense<0xFF800000> : vector<2x8xf32>
    %78 = vector.multi_reduction <maximumf>, %77, %cst_27 [2] : vector<2x8x8xf32> to vector<2x8xf32>
    %79 = vector.shape_cast %78 : vector<2x8xf32> to vector<2x8x1xf32>
    %80 = vector.broadcast %79 : vector<2x8x1xf32> to vector<2x8x8xf32>
    %81 = arith.subf %77, %80 : vector<2x8x8xf32>
    %82 = math.exp %81 : vector<2x8x8xf32>
    %cst_28 = arith.constant dense<0.000000e+00> : vector<2x8xf32>
    %83 = vector.multi_reduction <add>, %82, %cst_28 [2] : vector<2x8x8xf32> to vector<2x8xf32>
    %84 = vector.shape_cast %83 : vector<2x8xf32> to vector<2x8x1xf32>
    %85 = tpu.reciprocal %84 {approx = true} : vector<2x8x1xf32> -> vector<2x8x1xf32>
    %86 = vector.broadcast %85 : vector<2x8x1xf32> to vector<2x8x8xf32>
    %87 = arith.mulf %82, %86 : vector<2x8x8xf32>
    %88 = arith.truncf %87 : vector<2x8x8xf32> to vector<2x8x8xbf16>
    "tpu.trace_start"() <{level = 10 : i32, message = "bqk,bkd->bqd"}> : () -> ()
    %cst_29 = arith.constant dense<0.000000e+00> : vector<2x8x32xf32>
    %89 = tpu.matmul %88, %72, %cst_29 {dimension_numbers = #tpu.dot_dimension_numbers<[2], [1], [1], [2], [0, 0, 0, 1, 1, 2], [0], [0]>} : vector<2x8x8xbf16>, vector<2x8x32xbf16>, vector<2x8x32xf32> -> vector<2x8x32xf32>
    "tpu.trace_stop"() : () -> ()
    %90 = vector.extract_strided_slice %39 {offsets = [0, 0, 64], sizes = [2, 8, 32], strides = [1, 1, 1]} : vector<2x8x128xf32> to vector<2x8x32xf32>
    %91 = arith.truncf %90 : vector<2x8x32xf32> to vector<2x8x32xbf16>
    %92 = vector.extract_strided_slice %41 {offsets = [0, 0, 64], sizes = [2, 8, 32], strides = [1, 1, 1]} : vector<2x8x128xf32> to vector<2x8x32xf32>
    %93 = arith.truncf %92 : vector<2x8x32xf32> to vector<2x8x32xbf16>
    %94 = vector.extract_strided_slice %43 {offsets = [0, 0, 64], sizes = [2, 8, 32], strides = [1, 1, 1]} : vector<2x8x128xf32> to vector<2x8x32xf32>
    %95 = arith.truncf %94 : vector<2x8x32xf32> to vector<2x8x32xbf16>
    "tpu.trace_start"() <{level = 10 : i32, message = "bqd,bkd->bqk"}> : () -> ()
    %cst_30 = arith.constant dense<0.000000e+00> : vector<2x8x8xf32>
    %96 = tpu.matmul %91, %93, %cst_30 {dimension_numbers = #tpu.dot_dimension_numbers<[2], [2], [1], [1], [0, 0, 0, 1, 1, 1], [0], [0]>} : vector<2x8x32xbf16>, vector<2x8x32xbf16>, vector<2x8x8xf32> -> vector<2x8x8xf32>
    %cst_31 = arith.constant -1.000000e+09 : f32
    "tpu.trace_stop"() : () -> ()
    %97 = vector.shape_cast %27 : vector<2x1x8xi1> to vector<2x1x8xi1>
    %98 = vector.broadcast %97 : vector<2x1x8xi1> to vector<2x8x8xi1>
    %99 = vector.broadcast %cst_31 : f32 to vector<2x8x8xf32>
    %100 = arith.select %98, %99, %96 : vector<2x8x8xi1>, vector<2x8x8xf32>
    %cst_32 = arith.constant dense<0xFF800000> : vector<2x8xf32>
    %101 = vector.multi_reduction <maximumf>, %100, %cst_32 [2] : vector<2x8x8xf32> to vector<2x8xf32>
    %102 = vector.shape_cast %101 : vector<2x8xf32> to vector<2x8x1xf32>
    %103 = vector.broadcast %102 : vector<2x8x1xf32> to vector<2x8x8xf32>
    %104 = arith.subf %100, %103 : vector<2x8x8xf32>
    %105 = math.exp %104 : vector<2x8x8xf32>
    %cst_33 = arith.constant dense<0.000000e+00> : vector<2x8xf32>
    %106 = vector.multi_reduction <add>, %105, %cst_33 [2] : vector<2x8x8xf32> to vector<2x8xf32>
    %107 = vector.shape_cast %106 : vector<2x8xf32> to vector<2x8x1xf32>
    %108 = tpu.reciprocal %107 {approx = true} : vector<2x8x1xf32> -> vector<2x8x1xf32>
    %109 = vector.broadcast %108 : vector<2x8x1xf32> to vector<2x8x8xf32>
    %110 = arith.mulf %105, %109 : vector<2x8x8xf32>
    %111 = arith.truncf %110 : vector<2x8x8xf32> to vector<2x8x8xbf16>
    "tpu.trace_start"() <{level = 10 : i32, message = "bqk,bkd->bqd"}> : () -> ()
    %cst_34 = arith.constant dense<0.000000e+00> : vector<2x8x32xf32>
    %112 = tpu.matmul %111, %95, %cst_34 {dimension_numbers = #tpu.dot_dimension_numbers<[2], [1], [1], [2], [0, 0, 0, 1, 1, 2], [0], [0]>} : vector<2x8x8xbf16>, vector<2x8x32xbf16>, vector<2x8x32xf32> -> vector<2x8x32xf32>
    "tpu.trace_stop"() : () -> ()
    %113 = vector.extract_strided_slice %39 {offsets = [0, 0, 96], sizes = [2, 8, 32], strides = [1, 1, 1]} : vector<2x8x128xf32> to vector<2x8x32xf32>
    %114 = arith.truncf %113 : vector<2x8x32xf32> to vector<2x8x32xbf16>
    %115 = vector.extract_strided_slice %41 {offsets = [0, 0, 96], sizes = [2, 8, 32], strides = [1, 1, 1]} : vector<2x8x128xf32> to vector<2x8x32xf32>
    %116 = arith.truncf %115 : vector<2x8x32xf32> to vector<2x8x32xbf16>
    %117 = vector.extract_strided_slice %43 {offsets = [0, 0, 96], sizes = [2, 8, 32], strides = [1, 1, 1]} : vector<2x8x128xf32> to vector<2x8x32xf32>
    %118 = arith.truncf %117 : vector<2x8x32xf32> to vector<2x8x32xbf16>
    "tpu.trace_start"() <{level = 10 : i32, message = "bqd,bkd->bqk"}> : () -> ()
    %cst_35 = arith.constant dense<0.000000e+00> : vector<2x8x8xf32>
    %119 = tpu.matmul %114, %116, %cst_35 {dimension_numbers = #tpu.dot_dimension_numbers<[2], [2], [1], [1], [0, 0, 0, 1, 1, 1], [0], [0]>} : vector<2x8x32xbf16>, vector<2x8x32xbf16>, vector<2x8x8xf32> -> vector<2x8x8xf32>
    %cst_36 = arith.constant -1.000000e+09 : f32
    "tpu.trace_stop"() : () -> ()
    %120 = vector.shape_cast %27 : vector<2x1x8xi1> to vector<2x1x8xi1>
    %121 = vector.broadcast %120 : vector<2x1x8xi1> to vector<2x8x8xi1>
    %122 = vector.broadcast %cst_36 : f32 to vector<2x8x8xf32>
    %123 = arith.select %121, %122, %119 : vector<2x8x8xi1>, vector<2x8x8xf32>
    %cst_37 = arith.constant dense<0xFF800000> : vector<2x8xf32>
    %124 = vector.multi_reduction <maximumf>, %123, %cst_37 [2] : vector<2x8x8xf32> to vector<2x8xf32>
    %125 = vector.shape_cast %124 : vector<2x8xf32> to vector<2x8x1xf32>
    %126 = vector.broadcast %125 : vector<2x8x1xf32> to vector<2x8x8xf32>
    %127 = arith.subf %123, %126 : vector<2x8x8xf32>
    %128 = math.exp %127 : vector<2x8x8xf32>
    %cst_38 = arith.constant dense<0.000000e+00> : vector<2x8xf32>
    %129 = vector.multi_reduction <add>, %128, %cst_38 [2] : vector<2x8x8xf32> to vector<2x8xf32>
    %130 = vector.shape_cast %129 : vector<2x8xf32> to vector<2x8x1xf32>
    %131 = tpu.reciprocal %130 {approx = true} : vector<2x8x1xf32> -> vector<2x8x1xf32>
    %132 = vector.broadcast %131 : vector<2x8x1xf32> to vector<2x8x8xf32>
    %133 = arith.mulf %128, %132 : vector<2x8x8xf32>
    %134 = arith.truncf %133 : vector<2x8x8xf32> to vector<2x8x8xbf16>
    "tpu.trace_start"() <{level = 10 : i32, message = "bqk,bkd->bqd"}> : () -> ()
    %cst_39 = arith.constant dense<0.000000e+00> : vector<2x8x32xf32>
    %135 = tpu.matmul %134, %118, %cst_39 {dimension_numbers = #tpu.dot_dimension_numbers<[2], [1], [1], [2], [0, 0, 0, 1, 1, 2], [0], [0]>} : vector<2x8x8xbf16>, vector<2x8x32xbf16>, vector<2x8x32xf32> -> vector<2x8x32xf32>
    "tpu.trace_stop"() : () -> ()
    %136 = tpu.concatenate %66, %89, %112, %135 in 2 : vector<2x8x32xf32>, vector<2x8x32xf32>, vector<2x8x32xf32>, vector<2x8x32xf32> -> vector<2x8x128xf32>
    %137 = vector.shape_cast %136 : vector<2x8x128xf32> to vector<16x128xf32>
    %c0_40 = arith.constant 0 : index
    %c0_41 = arith.constant 0 : index
    %c0_42 = arith.constant 0 : index
    %138 = vector.load %arg9[%c0_40, %c0_41, %c0_42] : memref<2x128x128xbf16, #tpu.memory_space<vmem>>, vector<1x128x128xbf16>
    %139 = vector.shape_cast %138 : vector<1x128x128xbf16> to vector<128x128xbf16>
    %140 = arith.truncf %137 : vector<16x128xf32> to vector<16x128xbf16>
    %cst_43 = arith.constant dense<0.000000e+00> : vector<16x128xf32>
    %141 = tpu.matmul %140, %139, %cst_43 {dimension_numbers = #tpu.dot_dimension_numbers<[1], [0], [0], [1], [0, 0, 1, 1], [], []>} : vector<16x128xbf16>, vector<128x128xbf16>, vector<16x128xf32> -> vector<16x128xf32>
    %c0_44 = arith.constant 0 : index
    %c0_45 = arith.constant 0 : index
    %c0_46 = arith.constant 0 : index
    %142 = vector.load %arg10[%c0_44, %c0_45, %c0_46] : memref<2x1x128xf32, #tpu.memory_space<vmem>>, vector<1x1x128xf32>
    %143 = vector.shape_cast %142 : vector<1x1x128xf32> to vector<1x128xf32>
    %144 = vector.broadcast %143 : vector<1x128xf32> to vector<16x128xf32>
    %145 = arith.addf %141, %144 : vector<16x128xf32>
    %146 = arith.addf %145, %24 : vector<16x128xf32>
    %c0_47 = arith.constant 0 : index
    %c0_48 = arith.constant 0 : index
    %c0_49 = arith.constant 0 : index
    %147 = vector.load %arg11[%c0_47, %c0_48, %c0_49] : memref<2x1x128xf32, #tpu.memory_space<vmem>>, vector<1x1x128xf32>
    %148 = vector.shape_cast %147 : vector<1x1x128xf32> to vector<1x128xf32>
    %c0_50 = arith.constant 0 : index
    %c0_51 = arith.constant 0 : index
    %c0_52 = arith.constant 0 : index
    %149 = vector.load %arg12[%c0_50, %c0_51, %c0_52] : memref<2x1x128xf32, #tpu.memory_space<vmem>>, vector<1x1x128xf32>
    %150 = vector.shape_cast %149 : vector<1x1x128xf32> to vector<1x128xf32>
    %cst_53 = arith.constant dense<0.000000e+00> : vector<16xf32>
    %151 = vector.multi_reduction <add>, %146, %cst_53 [1] : vector<16x128xf32> to vector<16xf32>
    %152 = vector.shape_cast %151 : vector<16xf32> to vector<16x1xf32>
    %cst_54 = arith.constant 1.280000e+02 : f32
    %153 = vector.broadcast %cst_54 : f32 to vector<16x1xf32>
    %154 = arith.divf %152, %153 : vector<16x1xf32>
    %155 = vector.broadcast %154 : vector<16x1xf32> to vector<16x128xf32>
    %156 = arith.subf %146, %155 : vector<16x128xf32>
    %157 = arith.mulf %156, %156 : vector<16x128xf32>
    %cst_55 = arith.constant dense<0.000000e+00> : vector<16xf32>
    %158 = vector.multi_reduction <add>, %157, %cst_55 [1] : vector<16x128xf32> to vector<16xf32>
    %159 = vector.shape_cast %158 : vector<16xf32> to vector<16x1xf32>
    %cst_56 = arith.constant 1.280000e+02 : f32
    %160 = vector.broadcast %cst_56 : f32 to vector<16x1xf32>
    %161 = arith.divf %159, %160 : vector<16x1xf32>
    %162 = vector.broadcast %154 : vector<16x1xf32> to vector<16x128xf32>
    %163 = arith.subf %146, %162 : vector<16x128xf32>
    %cst_57 = arith.constant 9.99999974E-6 : f32
    %164 = vector.broadcast %cst_57 : f32 to vector<16x1xf32>
    %165 = arith.addf %161, %164 : vector<16x1xf32>
    %166 = math.rsqrt %165 : vector<16x1xf32>
    %167 = vector.broadcast %166 : vector<16x1xf32> to vector<16x128xf32>
    %168 = arith.mulf %163, %167 : vector<16x128xf32>
    %169 = vector.broadcast %148 : vector<1x128xf32> to vector<16x128xf32>
    %170 = arith.mulf %168, %169 : vector<16x128xf32>
    %171 = vector.broadcast %150 : vector<1x128xf32> to vector<16x128xf32>
    %172 = arith.addf %170, %171 : vector<16x128xf32>
    %c0_58 = arith.constant 0 : index
    %c0_59 = arith.constant 0 : index
    %c0_60 = arith.constant 0 : index
    %173 = vector.load %arg13[%c0_58, %c0_59, %c0_60] : memref<2x128x256xbf16, #tpu.memory_space<vmem>>, vector<1x128x256xbf16>
    %174 = vector.shape_cast %173 : vector<1x128x256xbf16> to vector<128x256xbf16>
    %175 = arith.truncf %172 : vector<16x128xf32> to vector<16x128xbf16>
    %cst_61 = arith.constant dense<0.000000e+00> : vector<16x256xf32>
    %176 = tpu.matmul %175, %174, %cst_61 {dimension_numbers = #tpu.dot_dimension_numbers<[1], [0], [0], [1], [0, 0, 1, 1], [], []>} : vector<16x128xbf16>, vector<128x256xbf16>, vector<16x256xf32> -> vector<16x256xf32>
    %c0_62 = arith.constant 0 : index
    %c0_63 = arith.constant 0 : index
    %c0_64 = arith.constant 0 : index
    %177 = vector.load %arg14[%c0_62, %c0_63, %c0_64] : memref<2x1x256xf32, #tpu.memory_space<vmem>>, vector<1x1x256xf32>
    %178 = vector.shape_cast %177 : vector<1x1x256xf32> to vector<1x256xf32>
    %179 = vector.broadcast %178 : vector<1x256xf32> to vector<16x256xf32>
    %180 = arith.addf %176, %179 : vector<16x256xf32>
    %cst_65 = arith.constant 5.000000e-01 : f32
    %181 = vector.broadcast %cst_65 : f32 to vector<16x256xf32>
    %182 = arith.mulf %181, %180 : vector<16x256xf32>
    %cst_66 = arith.constant 4.471500e-02 : f32
    %183 = vector.broadcast %cst_66 : f32 to vector<16x256xf32>
    %184 = arith.mulf %183, %180 : vector<16x256xf32>
    %185 = arith.mulf %184, %180 : vector<16x256xf32>
    %186 = arith.mulf %185, %180 : vector<16x256xf32>
    %187 = arith.addf %180, %186 : vector<16x256xf32>
    %cst_67 = arith.constant 0.797884583 : f32
    %188 = vector.broadcast %cst_67 : f32 to vector<16x256xf32>
    %189 = arith.mulf %188, %187 : vector<16x256xf32>
    %190 = math.tanh %189 : vector<16x256xf32>
    %cst_68 = arith.constant 1.000000e+00 : f32
    %191 = vector.broadcast %cst_68 : f32 to vector<16x256xf32>
    %192 = arith.addf %191, %190 : vector<16x256xf32>
    %193 = arith.mulf %182, %192 : vector<16x256xf32>
    %c0_69 = arith.constant 0 : index
    %c0_70 = arith.constant 0 : index
    %c0_71 = arith.constant 0 : index
    %194 = vector.load %arg15[%c0_69, %c0_70, %c0_71] : memref<2x256x128xbf16, #tpu.memory_space<vmem>>, vector<1x256x128xbf16>
    %195 = vector.shape_cast %194 : vector<1x256x128xbf16> to vector<256x128xbf16>
    %196 = arith.truncf %193 : vector<16x256xf32> to vector<16x256xbf16>
    %cst_72 = arith.constant dense<0.000000e+00> : vector<16x128xf32>
    %197 = tpu.matmul %196, %195, %cst_72 {dimension_numbers = #tpu.dot_dimension_numbers<[1], [0], [0], [1], [0, 0, 1, 1], [], []>} : vector<16x256xbf16>, vector<256x128xbf16>, vector<16x128xf32> -> vector<16x128xf32>
    %c0_73 = arith.constant 0 : index
    %c0_74 = arith.constant 0 : index
    %c0_75 = arith.constant 0 : index
    %198 = vector.load %arg16[%c0_73, %c0_74, %c0_75] : memref<2x1x128xf32, #tpu.memory_space<vmem>>, vector<1x1x128xf32>
    %199 = vector.shape_cast %198 : vector<1x1x128xf32> to vector<1x128xf32>
    %200 = vector.broadcast %199 : vector<1x128xf32> to vector<16x128xf32>
    %201 = arith.addf %197, %200 : vector<16x128xf32>
    %c1 = arith.constant 1 : index
    %c0_76 = arith.constant 0 : index
    %c0_77 = arith.constant 0 : index
    %202 = vector.load %arg7[%c1, %c0_76, %c0_77] : memref<2x128x384xbf16, #tpu.memory_space<vmem>>, vector<1x128x384xbf16>
    %203 = vector.shape_cast %202 : vector<1x128x384xbf16> to vector<128x384xbf16>
    %204 = arith.truncf %201 : vector<16x128xf32> to vector<16x128xbf16>
    %cst_78 = arith.constant dense<0.000000e+00> : vector<16x384xf32>
    %205 = tpu.matmul %204, %203, %cst_78 {dimension_numbers = #tpu.dot_dimension_numbers<[1], [0], [0], [1], [0, 0, 1, 1], [], []>} : vector<16x128xbf16>, vector<128x384xbf16>, vector<16x384xf32> -> vector<16x384xf32>
    %c1_79 = arith.constant 1 : index
    %c0_80 = arith.constant 0 : index
    %c0_81 = arith.constant 0 : index
    %206 = vector.load %arg8[%c1_79, %c0_80, %c0_81] : memref<2x1x384xf32, #tpu.memory_space<vmem>>, vector<1x1x384xf32>
    %207 = vector.shape_cast %206 : vector<1x1x384xf32> to vector<1x384xf32>
    %208 = vector.broadcast %207 : vector<1x384xf32> to vector<16x384xf32>
    %209 = arith.addf %205, %208 : vector<16x384xf32>
    %210 = vector.extract_strided_slice %209 {offsets = [0, 0], sizes = [16, 128], strides = [1, 1]} : vector<16x384xf32> to vector<16x128xf32>
    %211 = vector.shape_cast %210 : vector<16x128xf32> to vector<2x8x128xf32>
    %cst_82 = arith.constant 0.176776692 : f32
    %212 = vector.broadcast %cst_82 : f32 to vector<2x8x128xf32>
    %213 = arith.mulf %211, %212 : vector<2x8x128xf32>
    %214 = vector.extract_strided_slice %209 {offsets = [0, 128], sizes = [16, 128], strides = [1, 1]} : vector<16x384xf32> to vector<16x128xf32>
    %215 = vector.shape_cast %214 : vector<16x128xf32> to vector<2x8x128xf32>
    %216 = vector.extract_strided_slice %209 {offsets = [0, 256], sizes = [16, 128], strides = [1, 1]} : vector<16x384xf32> to vector<16x128xf32>
    %217 = vector.shape_cast %216 : vector<16x128xf32> to vector<2x8x128xf32>
    %218 = vector.extract_strided_slice %213 {offsets = [0, 0, 0], sizes = [2, 8, 32], strides = [1, 1, 1]} : vector<2x8x128xf32> to vector<2x8x32xf32>
    %219 = arith.truncf %218 : vector<2x8x32xf32> to vector<2x8x32xbf16>
    %220 = vector.extract_strided_slice %215 {offsets = [0, 0, 0], sizes = [2, 8, 32], strides = [1, 1, 1]} : vector<2x8x128xf32> to vector<2x8x32xf32>
    %221 = arith.truncf %220 : vector<2x8x32xf32> to vector<2x8x32xbf16>
    %222 = vector.extract_strided_slice %217 {offsets = [0, 0, 0], sizes = [2, 8, 32], strides = [1, 1, 1]} : vector<2x8x128xf32> to vector<2x8x32xf32>
    %223 = arith.truncf %222 : vector<2x8x32xf32> to vector<2x8x32xbf16>
    "tpu.trace_start"() <{level = 10 : i32, message = "bqd,bkd->bqk"}> : () -> ()
    %cst_83 = arith.constant dense<0.000000e+00> : vector<2x8x8xf32>
    %224 = tpu.matmul %219, %221, %cst_83 {dimension_numbers = #tpu.dot_dimension_numbers<[2], [2], [1], [1], [0, 0, 0, 1, 1, 1], [0], [0]>} : vector<2x8x32xbf16>, vector<2x8x32xbf16>, vector<2x8x8xf32> -> vector<2x8x8xf32>
    %cst_84 = arith.constant -1.000000e+09 : f32
    "tpu.trace_stop"() : () -> ()
    %225 = vector.shape_cast %27 : vector<2x1x8xi1> to vector<2x1x8xi1>
    %226 = vector.broadcast %225 : vector<2x1x8xi1> to vector<2x8x8xi1>
    %227 = vector.broadcast %cst_84 : f32 to vector<2x8x8xf32>
    %228 = arith.select %226, %227, %224 : vector<2x8x8xi1>, vector<2x8x8xf32>
    %cst_85 = arith.constant dense<0xFF800000> : vector<2x8xf32>
    %229 = vector.multi_reduction <maximumf>, %228, %cst_85 [2] : vector<2x8x8xf32> to vector<2x8xf32>
    %230 = vector.shape_cast %229 : vector<2x8xf32> to vector<2x8x1xf32>
    %231 = vector.broadcast %230 : vector<2x8x1xf32> to vector<2x8x8xf32>
    %232 = arith.subf %228, %231 : vector<2x8x8xf32>
    %233 = math.exp %232 : vector<2x8x8xf32>
    %cst_86 = arith.constant dense<0.000000e+00> : vector<2x8xf32>
    %234 = vector.multi_reduction <add>, %233, %cst_86 [2] : vector<2x8x8xf32> to vector<2x8xf32>
    %235 = vector.shape_cast %234 : vector<2x8xf32> to vector<2x8x1xf32>
    %236 = tpu.reciprocal %235 {approx = true} : vector<2x8x1xf32> -> vector<2x8x1xf32>
    %237 = vector.broadcast %236 : vector<2x8x1xf32> to vector<2x8x8xf32>
    %238 = arith.mulf %233, %237 : vector<2x8x8xf32>
    %239 = arith.truncf %238 : vector<2x8x8xf32> to vector<2x8x8xbf16>
    "tpu.trace_start"() <{level = 10 : i32, message = "bqk,bkd->bqd"}> : () -> ()
    %cst_87 = arith.constant dense<0.000000e+00> : vector<2x8x32xf32>
    %240 = tpu.matmul %239, %223, %cst_87 {dimension_numbers = #tpu.dot_dimension_numbers<[2], [1], [1], [2], [0, 0, 0, 1, 1, 2], [0], [0]>} : vector<2x8x8xbf16>, vector<2x8x32xbf16>, vector<2x8x32xf32> -> vector<2x8x32xf32>
    "tpu.trace_stop"() : () -> ()
    %241 = vector.extract_strided_slice %213 {offsets = [0, 0, 32], sizes = [2, 8, 32], strides = [1, 1, 1]} : vector<2x8x128xf32> to vector<2x8x32xf32>
    %242 = arith.truncf %241 : vector<2x8x32xf32> to vector<2x8x32xbf16>
    %243 = vector.extract_strided_slice %215 {offsets = [0, 0, 32], sizes = [2, 8, 32], strides = [1, 1, 1]} : vector<2x8x128xf32> to vector<2x8x32xf32>
    %244 = arith.truncf %243 : vector<2x8x32xf32> to vector<2x8x32xbf16>
    %245 = vector.extract_strided_slice %217 {offsets = [0, 0, 32], sizes = [2, 8, 32], strides = [1, 1, 1]} : vector<2x8x128xf32> to vector<2x8x32xf32>
    %246 = arith.truncf %245 : vector<2x8x32xf32> to vector<2x8x32xbf16>
    "tpu.trace_start"() <{level = 10 : i32, message = "bqd,bkd->bqk"}> : () -> ()
    %cst_88 = arith.constant dense<0.000000e+00> : vector<2x8x8xf32>
    %247 = tpu.matmul %242, %244, %cst_88 {dimension_numbers = #tpu.dot_dimension_numbers<[2], [2], [1], [1], [0, 0, 0, 1, 1, 1], [0], [0]>} : vector<2x8x32xbf16>, vector<2x8x32xbf16>, vector<2x8x8xf32> -> vector<2x8x8xf32>
    %cst_89 = arith.constant -1.000000e+09 : f32
    "tpu.trace_stop"() : () -> ()
    %248 = vector.shape_cast %27 : vector<2x1x8xi1> to vector<2x1x8xi1>
    %249 = vector.broadcast %248 : vector<2x1x8xi1> to vector<2x8x8xi1>
    %250 = vector.broadcast %cst_89 : f32 to vector<2x8x8xf32>
    %251 = arith.select %249, %250, %247 : vector<2x8x8xi1>, vector<2x8x8xf32>
    %cst_90 = arith.constant dense<0xFF800000> : vector<2x8xf32>
    %252 = vector.multi_reduction <maximumf>, %251, %cst_90 [2] : vector<2x8x8xf32> to vector<2x8xf32>
    %253 = vector.shape_cast %252 : vector<2x8xf32> to vector<2x8x1xf32>
    %254 = vector.broadcast %253 : vector<2x8x1xf32> to vector<2x8x8xf32>
    %255 = arith.subf %251, %254 : vector<2x8x8xf32>
    %256 = math.exp %255 : vector<2x8x8xf32>
    %cst_91 = arith.constant dense<0.000000e+00> : vector<2x8xf32>
    %257 = vector.multi_reduction <add>, %256, %cst_91 [2] : vector<2x8x8xf32> to vector<2x8xf32>
    %258 = vector.shape_cast %257 : vector<2x8xf32> to vector<2x8x1xf32>
    %259 = tpu.reciprocal %258 {approx = true} : vector<2x8x1xf32> -> vector<2x8x1xf32>
    %260 = vector.broadcast %259 : vector<2x8x1xf32> to vector<2x8x8xf32>
    %261 = arith.mulf %256, %260 : vector<2x8x8xf32>
    %262 = arith.truncf %261 : vector<2x8x8xf32> to vector<2x8x8xbf16>
    "tpu.trace_start"() <{level = 10 : i32, message = "bqk,bkd->bqd"}> : () -> ()
    %cst_92 = arith.constant dense<0.000000e+00> : vector<2x8x32xf32>
    %263 = tpu.matmul %262, %246, %cst_92 {dimension_numbers = #tpu.dot_dimension_numbers<[2], [1], [1], [2], [0, 0, 0, 1, 1, 2], [0], [0]>} : vector<2x8x8xbf16>, vector<2x8x32xbf16>, vector<2x8x32xf32> -> vector<2x8x32xf32>
    "tpu.trace_stop"() : () -> ()
    %264 = vector.extract_strided_slice %213 {offsets = [0, 0, 64], sizes = [2, 8, 32], strides = [1, 1, 1]} : vector<2x8x128xf32> to vector<2x8x32xf32>
    %265 = arith.truncf %264 : vector<2x8x32xf32> to vector<2x8x32xbf16>
    %266 = vector.extract_strided_slice %215 {offsets = [0, 0, 64], sizes = [2, 8, 32], strides = [1, 1, 1]} : vector<2x8x128xf32> to vector<2x8x32xf32>
    %267 = arith.truncf %266 : vector<2x8x32xf32> to vector<2x8x32xbf16>
    %268 = vector.extract_strided_slice %217 {offsets = [0, 0, 64], sizes = [2, 8, 32], strides = [1, 1, 1]} : vector<2x8x128xf32> to vector<2x8x32xf32>
    %269 = arith.truncf %268 : vector<2x8x32xf32> to vector<2x8x32xbf16>
    "tpu.trace_start"() <{level = 10 : i32, message = "bqd,bkd->bqk"}> : () -> ()
    %cst_93 = arith.constant dense<0.000000e+00> : vector<2x8x8xf32>
    %270 = tpu.matmul %265, %267, %cst_93 {dimension_numbers = #tpu.dot_dimension_numbers<[2], [2], [1], [1], [0, 0, 0, 1, 1, 1], [0], [0]>} : vector<2x8x32xbf16>, vector<2x8x32xbf16>, vector<2x8x8xf32> -> vector<2x8x8xf32>
    %cst_94 = arith.constant -1.000000e+09 : f32
    "tpu.trace_stop"() : () -> ()
    %271 = vector.shape_cast %27 : vector<2x1x8xi1> to vector<2x1x8xi1>
    %272 = vector.broadcast %271 : vector<2x1x8xi1> to vector<2x8x8xi1>
    %273 = vector.broadcast %cst_94 : f32 to vector<2x8x8xf32>
    %274 = arith.select %272, %273, %270 : vector<2x8x8xi1>, vector<2x8x8xf32>
    %cst_95 = arith.constant dense<0xFF800000> : vector<2x8xf32>
    %275 = vector.multi_reduction <maximumf>, %274, %cst_95 [2] : vector<2x8x8xf32> to vector<2x8xf32>
    %276 = vector.shape_cast %275 : vector<2x8xf32> to vector<2x8x1xf32>
    %277 = vector.broadcast %276 : vector<2x8x1xf32> to vector<2x8x8xf32>
    %278 = arith.subf %274, %277 : vector<2x8x8xf32>
    %279 = math.exp %278 : vector<2x8x8xf32>
    %cst_96 = arith.constant dense<0.000000e+00> : vector<2x8xf32>
    %280 = vector.multi_reduction <add>, %279, %cst_96 [2] : vector<2x8x8xf32> to vector<2x8xf32>
    %281 = vector.shape_cast %280 : vector<2x8xf32> to vector<2x8x1xf32>
    %282 = tpu.reciprocal %281 {approx = true} : vector<2x8x1xf32> -> vector<2x8x1xf32>
    %283 = vector.broadcast %282 : vector<2x8x1xf32> to vector<2x8x8xf32>
    %284 = arith.mulf %279, %283 : vector<2x8x8xf32>
    %285 = arith.truncf %284 : vector<2x8x8xf32> to vector<2x8x8xbf16>
    "tpu.trace_start"() <{level = 10 : i32, message = "bqk,bkd->bqd"}> : () -> ()
    %cst_97 = arith.constant dense<0.000000e+00> : vector<2x8x32xf32>
    %286 = tpu.matmul %285, %269, %cst_97 {dimension_numbers = #tpu.dot_dimension_numbers<[2], [1], [1], [2], [0, 0, 0, 1, 1, 2], [0], [0]>} : vector<2x8x8xbf16>, vector<2x8x32xbf16>, vector<2x8x32xf32> -> vector<2x8x32xf32>
    "tpu.trace_stop"() : () -> ()
    %287 = vector.extract_strided_slice %213 {offsets = [0, 0, 96], sizes = [2, 8, 32], strides = [1, 1, 1]} : vector<2x8x128xf32> to vector<2x8x32xf32>
    %288 = arith.truncf %287 : vector<2x8x32xf32> to vector<2x8x32xbf16>
    %289 = vector.extract_strided_slice %215 {offsets = [0, 0, 96], sizes = [2, 8, 32], strides = [1, 1, 1]} : vector<2x8x128xf32> to vector<2x8x32xf32>
    %290 = arith.truncf %289 : vector<2x8x32xf32> to vector<2x8x32xbf16>
    %291 = vector.extract_strided_slice %217 {offsets = [0, 0, 96], sizes = [2, 8, 32], strides = [1, 1, 1]} : vector<2x8x128xf32> to vector<2x8x32xf32>
    %292 = arith.truncf %291 : vector<2x8x32xf32> to vector<2x8x32xbf16>
    "tpu.trace_start"() <{level = 10 : i32, message = "bqd,bkd->bqk"}> : () -> ()
    %cst_98 = arith.constant dense<0.000000e+00> : vector<2x8x8xf32>
    %293 = tpu.matmul %288, %290, %cst_98 {dimension_numbers = #tpu.dot_dimension_numbers<[2], [2], [1], [1], [0, 0, 0, 1, 1, 1], [0], [0]>} : vector<2x8x32xbf16>, vector<2x8x32xbf16>, vector<2x8x8xf32> -> vector<2x8x8xf32>
    %cst_99 = arith.constant -1.000000e+09 : f32
    "tpu.trace_stop"() : () -> ()
    %294 = vector.shape_cast %27 : vector<2x1x8xi1> to vector<2x1x8xi1>
    %295 = vector.broadcast %294 : vector<2x1x8xi1> to vector<2x8x8xi1>
    %296 = vector.broadcast %cst_99 : f32 to vector<2x8x8xf32>
    %297 = arith.select %295, %296, %293 : vector<2x8x8xi1>, vector<2x8x8xf32>
    %cst_100 = arith.constant dense<0xFF800000> : vector<2x8xf32>
    %298 = vector.multi_reduction <maximumf>, %297, %cst_100 [2] : vector<2x8x8xf32> to vector<2x8xf32>
    %299 = vector.shape_cast %298 : vector<2x8xf32> to vector<2x8x1xf32>
    %300 = vector.broadcast %299 : vector<2x8x1xf32> to vector<2x8x8xf32>
    %301 = arith.subf %297, %300 : vector<2x8x8xf32>
    %302 = math.exp %301 : vector<2x8x8xf32>
    %cst_101 = arith.constant dense<0.000000e+00> : vector<2x8xf32>
    %303 = vector.multi_reduction <add>, %302, %cst_101 [2] : vector<2x8x8xf32> to vector<2x8xf32>
    %304 = vector.shape_cast %303 : vector<2x8xf32> to vector<2x8x1xf32>
    %305 = tpu.reciprocal %304 {approx = true} : vector<2x8x1xf32> -> vector<2x8x1xf32>
    %306 = vector.broadcast %305 : vector<2x8x1xf32> to vector<2x8x8xf32>
    %307 = arith.mulf %302, %306 : vector<2x8x8xf32>
    %308 = arith.truncf %307 : vector<2x8x8xf32> to vector<2x8x8xbf16>
    "tpu.trace_start"() <{level = 10 : i32, message = "bqk,bkd->bqd"}> : () -> ()
    %cst_102 = arith.constant dense<0.000000e+00> : vector<2x8x32xf32>
    %309 = tpu.matmul %308, %292, %cst_102 {dimension_numbers = #tpu.dot_dimension_numbers<[2], [1], [1], [2], [0, 0, 0, 1, 1, 2], [0], [0]>} : vector<2x8x8xbf16>, vector<2x8x32xbf16>, vector<2x8x32xf32> -> vector<2x8x32xf32>
    "tpu.trace_stop"() : () -> ()
    %310 = tpu.concatenate %240, %263, %286, %309 in 2 : vector<2x8x32xf32>, vector<2x8x32xf32>, vector<2x8x32xf32>, vector<2x8x32xf32> -> vector<2x8x128xf32>
    %311 = vector.shape_cast %310 : vector<2x8x128xf32> to vector<16x128xf32>
    %c1_103 = arith.constant 1 : index
    %c0_104 = arith.constant 0 : index
    %c0_105 = arith.constant 0 : index
    %312 = vector.load %arg9[%c1_103, %c0_104, %c0_105] : memref<2x128x128xbf16, #tpu.memory_space<vmem>>, vector<1x128x128xbf16>
    %313 = vector.shape_cast %312 : vector<1x128x128xbf16> to vector<128x128xbf16>
    %314 = arith.truncf %311 : vector<16x128xf32> to vector<16x128xbf16>
    %cst_106 = arith.constant dense<0.000000e+00> : vector<16x128xf32>
    %315 = tpu.matmul %314, %313, %cst_106 {dimension_numbers = #tpu.dot_dimension_numbers<[1], [0], [0], [1], [0, 0, 1, 1], [], []>} : vector<16x128xbf16>, vector<128x128xbf16>, vector<16x128xf32> -> vector<16x128xf32>
    %c1_107 = arith.constant 1 : index
    %c0_108 = arith.constant 0 : index
    %c0_109 = arith.constant 0 : index
    %316 = vector.load %arg10[%c1_107, %c0_108, %c0_109] : memref<2x1x128xf32, #tpu.memory_space<vmem>>, vector<1x1x128xf32>
    %317 = vector.shape_cast %316 : vector<1x1x128xf32> to vector<1x128xf32>
    %318 = vector.broadcast %317 : vector<1x128xf32> to vector<16x128xf32>
    %319 = arith.addf %315, %318 : vector<16x128xf32>
    %320 = arith.addf %319, %201 : vector<16x128xf32>
    %c1_110 = arith.constant 1 : index
    %c0_111 = arith.constant 0 : index
    %c0_112 = arith.constant 0 : index
    %321 = vector.load %arg11[%c1_110, %c0_111, %c0_112] : memref<2x1x128xf32, #tpu.memory_space<vmem>>, vector<1x1x128xf32>
    %322 = vector.shape_cast %321 : vector<1x1x128xf32> to vector<1x128xf32>
    %c1_113 = arith.constant 1 : index
    %c0_114 = arith.constant 0 : index
    %c0_115 = arith.constant 0 : index
    %323 = vector.load %arg12[%c1_113, %c0_114, %c0_115] : memref<2x1x128xf32, #tpu.memory_space<vmem>>, vector<1x1x128xf32>
    %324 = vector.shape_cast %323 : vector<1x1x128xf32> to vector<1x128xf32>
    %cst_116 = arith.constant dense<0.000000e+00> : vector<16xf32>
    %325 = vector.multi_reduction <add>, %320, %cst_116 [1] : vector<16x128xf32> to vector<16xf32>
    %326 = vector.shape_cast %325 : vector<16xf32> to vector<16x1xf32>
    %cst_117 = arith.constant 1.280000e+02 : f32
    %327 = vector.broadcast %cst_117 : f32 to vector<16x1xf32>
    %328 = arith.divf %326, %327 : vector<16x1xf32>
    %329 = vector.broadcast %328 : vector<16x1xf32> to vector<16x128xf32>
    %330 = arith.subf %320, %329 : vector<16x128xf32>
    %331 = arith.mulf %330, %330 : vector<16x128xf32>
    %cst_118 = arith.constant dense<0.000000e+00> : vector<16xf32>
    %332 = vector.multi_reduction <add>, %331, %cst_118 [1] : vector<16x128xf32> to vector<16xf32>
    %333 = vector.shape_cast %332 : vector<16xf32> to vector<16x1xf32>
    %cst_119 = arith.constant 1.280000e+02 : f32
    %334 = vector.broadcast %cst_119 : f32 to vector<16x1xf32>
    %335 = arith.divf %333, %334 : vector<16x1xf32>
    %336 = vector.broadcast %328 : vector<16x1xf32> to vector<16x128xf32>
    %337 = arith.subf %320, %336 : vector<16x128xf32>
    %cst_120 = arith.constant 9.99999974E-6 : f32
    %338 = vector.broadcast %cst_120 : f32 to vector<16x1xf32>
    %339 = arith.addf %335, %338 : vector<16x1xf32>
    %340 = math.rsqrt %339 : vector<16x1xf32>
    %341 = vector.broadcast %340 : vector<16x1xf32> to vector<16x128xf32>
    %342 = arith.mulf %337, %341 : vector<16x128xf32>
    %343 = vector.broadcast %322 : vector<1x128xf32> to vector<16x128xf32>
    %344 = arith.mulf %342, %343 : vector<16x128xf32>
    %345 = vector.broadcast %324 : vector<1x128xf32> to vector<16x128xf32>
    %346 = arith.addf %344, %345 : vector<16x128xf32>
    %c1_121 = arith.constant 1 : index
    %c0_122 = arith.constant 0 : index
    %c0_123 = arith.constant 0 : index
    %347 = vector.load %arg13[%c1_121, %c0_122, %c0_123] : memref<2x128x256xbf16, #tpu.memory_space<vmem>>, vector<1x128x256xbf16>
    %348 = vector.shape_cast %347 : vector<1x128x256xbf16> to vector<128x256xbf16>
    %349 = arith.truncf %346 : vector<16x128xf32> to vector<16x128xbf16>
    %cst_124 = arith.constant dense<0.000000e+00> : vector<16x256xf32>
    %350 = tpu.matmul %349, %348, %cst_124 {dimension_numbers = #tpu.dot_dimension_numbers<[1], [0], [0], [1], [0, 0, 1, 1], [], []>} : vector<16x128xbf16>, vector<128x256xbf16>, vector<16x256xf32> -> vector<16x256xf32>
    %c1_125 = arith.constant 1 : index
    %c0_126 = arith.constant 0 : index
    %c0_127 = arith.constant 0 : index
    %351 = vector.load %arg14[%c1_125, %c0_126, %c0_127] : memref<2x1x256xf32, #tpu.memory_space<vmem>>, vector<1x1x256xf32>
    %352 = vector.shape_cast %351 : vector<1x1x256xf32> to vector<1x256xf32>
    %353 = vector.broadcast %352 : vector<1x256xf32> to vector<16x256xf32>
    %354 = arith.addf %350, %353 : vector<16x256xf32>
    %cst_128 = arith.constant 5.000000e-01 : f32
    %355 = vector.broadcast %cst_128 : f32 to vector<16x256xf32>
    %356 = arith.mulf %355, %354 : vector<16x256xf32>
    %cst_129 = arith.constant 4.471500e-02 : f32
    %357 = vector.broadcast %cst_129 : f32 to vector<16x256xf32>
    %358 = arith.mulf %357, %354 : vector<16x256xf32>
    %359 = arith.mulf %358, %354 : vector<16x256xf32>
    %360 = arith.mulf %359, %354 : vector<16x256xf32>
    %361 = arith.addf %354, %360 : vector<16x256xf32>
    %cst_130 = arith.constant 0.797884583 : f32
    %362 = vector.broadcast %cst_130 : f32 to vector<16x256xf32>
    %363 = arith.mulf %362, %361 : vector<16x256xf32>
    %364 = math.tanh %363 : vector<16x256xf32>
    %cst_131 = arith.constant 1.000000e+00 : f32
    %365 = vector.broadcast %cst_131 : f32 to vector<16x256xf32>
    %366 = arith.addf %365, %364 : vector<16x256xf32>
    %367 = arith.mulf %356, %366 : vector<16x256xf32>
    %c1_132 = arith.constant 1 : index
    %c0_133 = arith.constant 0 : index
    %c0_134 = arith.constant 0 : index
    %368 = vector.load %arg15[%c1_132, %c0_133, %c0_134] : memref<2x256x128xbf16, #tpu.memory_space<vmem>>, vector<1x256x128xbf16>
    %369 = vector.shape_cast %368 : vector<1x256x128xbf16> to vector<256x128xbf16>
    %370 = arith.truncf %367 : vector<16x256xf32> to vector<16x256xbf16>
    %cst_135 = arith.constant dense<0.000000e+00> : vector<16x128xf32>
    %371 = tpu.matmul %370, %369, %cst_135 {dimension_numbers = #tpu.dot_dimension_numbers<[1], [0], [0], [1], [0, 0, 1, 1], [], []>} : vector<16x256xbf16>, vector<256x128xbf16>, vector<16x128xf32> -> vector<16x128xf32>
    %c1_136 = arith.constant 1 : index
    %c0_137 = arith.constant 0 : index
    %c0_138 = arith.constant 0 : index
    %372 = vector.load %arg16[%c1_136, %c0_137, %c0_138] : memref<2x1x128xf32, #tpu.memory_space<vmem>>, vector<1x1x128xf32>
    %373 = vector.shape_cast %372 : vector<1x1x128xf32> to vector<1x128xf32>
    %374 = vector.broadcast %373 : vector<1x128xf32> to vector<16x128xf32>
    %375 = arith.addf %371, %374 : vector<16x128xf32>
    %c0_139 = arith.constant 0 : index
    %c0_140 = arith.constant 0 : index
    %376 = vector.load %arg2[%c0_139, %c0_140] : memref<2x16xbf16, #tpu.memory_space<vmem>>, vector<2x16xbf16>
    %377 = arith.truncf %375 : vector<16x128xf32> to vector<16x128xbf16>
    %cst_141 = arith.constant dense<0.000000e+00> : vector<2x128xf32>
    %378 = tpu.matmul %376, %377, %cst_141 {dimension_numbers = #tpu.dot_dimension_numbers<[1], [0], [0], [1], [0, 0, 1, 1], [], []>} : vector<2x16xbf16>, vector<16x128xbf16>, vector<2x128xf32> -> vector<2x128xf32>
    %c0_142 = arith.constant 0 : index
    %c0_143 = arith.constant 0 : index
    %379 = vector.load %arg17[%c0_142, %c0_143] : memref<128x128xbf16, #tpu.memory_space<vmem>>, vector<128x128xbf16>
    %380 = arith.truncf %378 : vector<2x128xf32> to vector<2x128xbf16>
    %cst_144 = arith.constant dense<0.000000e+00> : vector<2x128xf32>
    %381 = tpu.matmul %380, %379, %cst_144 {dimension_numbers = #tpu.dot_dimension_numbers<[1], [0], [0], [1], [0, 0, 1, 1], [], []>} : vector<2x128xbf16>, vector<128x128xbf16>, vector<2x128xf32> -> vector<2x128xf32>
    %c0_145 = arith.constant 0 : index
    %c0_146 = arith.constant 0 : index
    %382 = vector.load %arg18[%c0_145, %c0_146] : memref<1x128xf32, #tpu.memory_space<vmem>>, vector<1x128xf32>
    %383 = vector.broadcast %382 : vector<1x128xf32> to vector<2x128xf32>
    %384 = arith.addf %381, %383 : vector<2x128xf32>
    %385 = math.tanh %384 : vector<2x128xf32>
    %c0_147 = arith.constant 0 : index
    %c0_148 = arith.constant 0 : index
    %386 = vector.load %arg19[%c0_147, %c0_148] : memref<128x2xbf16, #tpu.memory_space<vmem>>, vector<128x2xbf16>
    %387 = arith.truncf %385 : vector<2x128xf32> to vector<2x128xbf16>
    %cst_149 = arith.constant dense<0.000000e+00> : vector<2x2xf32>
    %388 = tpu.matmul %387, %386, %cst_149 {dimension_numbers = #tpu.dot_dimension_numbers<[1], [0], [0], [1], [0, 0, 1, 1], [], []>} : vector<2x128xbf16>, vector<128x2xbf16>, vector<2x2xf32> -> vector<2x2xf32>
    %c0_150 = arith.constant 0 : index
    %c0_151 = arith.constant 0 : index
    %389 = vector.load %arg20[%c0_150, %c0_151] : memref<1x2xf32, #tpu.memory_space<vmem>>, vector<1x2xf32>
    %390 = vector.broadcast %389 : vector<1x2xf32> to vector<2x2xf32>
    %391 = arith.addf %388, %390 : vector<2x2xf32>
    %c0_152 = arith.constant 0 : index
    %c0_153 = arith.constant 0 : index
    %392 = vector.load %arg28[%c0_152, %c0_153] : memref<2x2xf32, #tpu.memory_space<vmem>>, vector<2x2xf32>
    tpu.vector_store %arg28[%c0_152, %c0_153], %391 {strides = array<i32>} : memref<2x2xf32, #tpu.memory_space<vmem>>, vector<2x2xf32>,
    %c0_154 = arith.constant 0 : index
    %c0_155 = arith.constant 0 : index
    %393 = vector.load %arg3[%c0_154, %c0_155] : memref<8x16xbf16, #tpu.memory_space<vmem>>, vector<8x16xbf16>
    %394 = arith.truncf %375 : vector<16x128xf32> to vector<16x128xbf16>
    %cst_156 = arith.constant dense<0.000000e+00> : vector<8x128xf32>
    %395 = tpu.matmul %393, %394, %cst_156 {dimension_numbers = #tpu.dot_dimension_numbers<[1], [0], [0], [1], [0, 0, 1, 1], [], []>} : vector<8x16xbf16>, vector<16x128xbf16>, vector<8x128xf32> -> vector<8x128xf32>
    %c0_157 = arith.constant 0 : index
    %c0_158 = arith.constant 0 : index
    %396 = vector.load %arg4[%c0_157, %c0_158] : memref<8x1xi32, #tpu.memory_space<vmem>>, vector<8x1xi32>
    %c0_i32_159 = arith.constant 0 : i32
    %397 = vector.broadcast %c0_i32_159 : i32 to vector<8x1xi32>
    %398 = arith.cmpi ne, %396, %397 : vector<8x1xi32>
    %cst_160 = arith.constant -1.000000e+09 : f32
    %399 = vector.shape_cast %398 : vector<8x1xi1> to vector<8x1xi1>
    %400 = vector.broadcast %399 : vector<8x1xi1> to vector<8x128xi1>
    %401 = vector.broadcast %cst_160 : f32 to vector<8x128xf32>
    %402 = arith.select %400, %401, %395 : vector<8x128xi1>, vector<8x128xf32>
    %cst_161 = arith.constant dense<0xFF800000> : vector<8xf32>
    %403 = vector.multi_reduction <maximumf>, %402, %cst_161 [1] : vector<8x128xf32> to vector<8xf32>
    %404 = vector.shape_cast %403 : vector<8xf32> to vector<8x1xf32>
    %405 = vector.broadcast %404 : vector<8x1xf32> to vector<8x128xf32>
    %406 = arith.subf %402, %405 : vector<8x128xf32>
    %407 = math.exp %406 : vector<8x128xf32>
    %cst_162 = arith.constant dense<0.000000e+00> : vector<8xf32>
    %408 = vector.multi_reduction <add>, %407, %cst_162 [1] : vector<8x128xf32> to vector<8xf32>
    %409 = vector.shape_cast %408 : vector<8xf32> to vector<8x1xf32>
    %410 = tpu.reciprocal %409 {approx = true} : vector<8x1xf32> -> vector<8x1xf32>
    %411 = vector.broadcast %410 : vector<8x1xf32> to vector<8x128xf32>
    %412 = arith.mulf %407, %411 : vector<8x128xf32>
    %c0_163 = arith.constant 0 : index
    %c0_164 = arith.constant 0 : index
    %413 = vector.load %arg21[%c0_163, %c0_164] : memref<128x128xbf16, #tpu.memory_space<vmem>>, vector<128x128xbf16>
    %414 = arith.truncf %412 : vector<8x128xf32> to vector<8x128xbf16>
    %cst_165 = arith.constant dense<0.000000e+00> : vector<8x128xf32>
    %415 = tpu.matmul %414, %413, %cst_165 {dimension_numbers = #tpu.dot_dimension_numbers<[1], [0], [0], [1], [0, 0, 1, 1], [], []>} : vector<8x128xbf16>, vector<128x128xbf16>, vector<8x128xf32> -> vector<8x128xf32>
    %c0_166 = arith.constant 0 : index
    %c0_167 = arith.constant 0 : index
    %416 = vector.load %arg22[%c0_166, %c0_167] : memref<1x128xf32, #tpu.memory_space<vmem>>, vector<1x128xf32>
    %417 = vector.broadcast %416 : vector<1x128xf32> to vector<8x128xf32>
    %418 = arith.addf %415, %417 : vector<8x128xf32>
    %cst_168 = arith.constant 5.000000e-01 : f32
    %419 = vector.broadcast %cst_168 : f32 to vector<8x128xf32>
    %420 = arith.mulf %419, %418 : vector<8x128xf32>
    %cst_169 = arith.constant 4.471500e-02 : f32
    %421 = vector.broadcast %cst_169 : f32 to vector<8x128xf32>
    %422 = arith.mulf %421, %418 : vector<8x128xf32>
    %423 = arith.mulf %422, %418 : vector<8x128xf32>
    %424 = arith.mulf %423, %418 : vector<8x128xf32>
    %425 = arith.addf %418, %424 : vector<8x128xf32>
    %cst_170 = arith.constant 0.797884583 : f32
    %426 = vector.broadcast %cst_170 : f32 to vector<8x128xf32>
    %427 = arith.mulf %426, %425 : vector<8x128xf32>
    %428 = math.tanh %427 : vector<8x128xf32>
    %cst_171 = arith.constant 1.000000e+00 : f32
    %429 = vector.broadcast %cst_171 : f32 to vector<8x128xf32>
    %430 = arith.addf %429, %428 : vector<8x128xf32>
    %431 = arith.mulf %420, %430 : vector<8x128xf32>
    %c0_172 = arith.constant 0 : index
    %c0_173 = arith.constant 0 : index
    %432 = vector.load %arg23[%c0_172, %c0_173] : memref<1x128xf32, #tpu.memory_space<vmem>>, vector<1x128xf32>
    %c0_174 = arith.constant 0 : index
    %c0_175 = arith.constant 0 : index
    %433 = vector.load %arg24[%c0_174, %c0_175] : memref<1x128xf32, #tpu.memory_space<vmem>>, vector<1x128xf32>
    %cst_176 = arith.constant dense<0.000000e+00> : vector<8xf32>
    %434 = vector.multi_reduction <add>, %431, %cst_176 [1] : vector<8x128xf32> to vector<8xf32>
    %435 = vector.shape_cast %434 : vector<8xf32> to vector<8x1xf32>
    %cst_177 = arith.constant 1.280000e+02 : f32
    %436 = vector.broadcast %cst_177 : f32 to vector<8x1xf32>
    %437 = arith.divf %435, %436 : vector<8x1xf32>
    %438 = vector.broadcast %437 : vector<8x1xf32> to vector<8x128xf32>
    %439 = arith.subf %431, %438 : vector<8x128xf32>
    %440 = arith.mulf %439, %439 : vector<8x128xf32>
    %cst_178 = arith.constant dense<0.000000e+00> : vector<8xf32>
    %441 = vector.multi_reduction <add>, %440, %cst_178 [1] : vector<8x128xf32> to vector<8xf32>
    %442 = vector.shape_cast %441 : vector<8xf32> to vector<8x1xf32>
    %cst_179 = arith.constant 1.280000e+02 : f32
    %443 = vector.broadcast %cst_179 : f32 to vector<8x1xf32>
    %444 = arith.divf %442, %443 : vector<8x1xf32>
    %445 = vector.broadcast %437 : vector<8x1xf32> to vector<8x128xf32>
    %446 = arith.subf %431, %445 : vector<8x128xf32>
    %cst_180 = arith.constant 9.99999974E-6 : f32
    %447 = vector.broadcast %cst_180 : f32 to vector<8x1xf32>
    %448 = arith.addf %444, %447 : vector<8x1xf32>
    %449 = math.rsqrt %448 : vector<8x1xf32>
    %450 = vector.broadcast %449 : vector<8x1xf32> to vector<8x128xf32>
    %451 = arith.mulf %446, %450 : vector<8x128xf32>
    %452 = vector.broadcast %432 : vector<1x128xf32> to vector<8x128xf32>
    %453 = arith.mulf %451, %452 : vector<8x128xf32>
    %454 = vector.broadcast %433 : vector<1x128xf32> to vector<8x128xf32>
    %455 = arith.addf %453, %454 : vector<8x128xf32>
    %c0_181 = arith.constant 0 : index
    %c0_182 = arith.constant 0 : index
    %456 = vector.load %arg25[%c0_181, %c0_182] : memref<128x256xbf16, #tpu.memory_space<vmem>>, vector<128x256xbf16>
    %457 = arith.truncf %455 : vector<8x128xf32> to vector<8x128xbf16>
    %cst_183 = arith.constant dense<0.000000e+00> : vector<8x256xf32>
    %458 = tpu.matmul %457, %456, %cst_183 {dimension_numbers = #tpu.dot_dimension_numbers<[1], [0], [0], [1], [0, 0, 1, 1], [], []>} : vector<8x128xbf16>, vector<128x256xbf16>, vector<8x256xf32> -> vector<8x256xf32>
    %c0_184 = arith.constant 0 : index
    %c0_185 = arith.constant 0 : index
    %459 = vector.load %arg26[%c0_184, %c0_185] : memref<1x256xf32, #tpu.memory_space<vmem>>, vector<1x256xf32>
    %460 = vector.broadcast %459 : vector<1x256xf32> to vector<8x256xf32>
    %461 = arith.addf %458, %460 : vector<8x256xf32>
    %c0_186 = arith.constant 0 : index
    %c0_187 = arith.constant 0 : index
    %462 = vector.load %arg27[%c0_186, %c0_187] : memref<8x256xf32, #tpu.memory_space<vmem>>, vector<8x256xf32>
    tpu.vector_store %arg27[%c0_186, %c0_187], %461 {strides = array<i32>} : memref<8x256xf32, #tpu.memory_space<vmem>>, vector<8x256xf32>,
    return
  }
}

</mosaic_0001>

<llo_original>
// kernel: eq.15
$region0: #{eq.15}
  %s0 = inlined_call_operand.vmem [shape: s32[2,4], index: 0, kind: input, shape index: {}]
  %s1 = inlined_call_operand.vmem [shape: s32[8], index: 1, kind: output, shape index: {}]
  $region1: #{eq.15} parent=0
    #allocation0 [shape = 'u8[4096]{0}', space=vmem, size = 0x1000, scoped, tag = 'scoped mem for output reshape']
    #allocation1 [shape = 'u8[4096]{0}', space=vmem, size = 0x1000, scoped, tag = 'scoped mem for input reshape']
    %s3 = sshll.u32 1, 2
    %s4 = ssub.s32 %s3, 1
    %v5 = vld [vmem:[%s0] sm:%s4]
    %6 = vst [vmem:[#allocation1] sm:%s4] %v5
    %v7 = vld [vmem:[#allocation1] sm:$0x1]
    %vm8 = vcmask 31744
    %9 = vst.msk [vmem:[#allocation0] sm:$0x1] %vm8, %v7
    %s10 = scalar_lea.vmem [#allocation1], 1
    %v11 = vld [vmem:[%s10] sm:$0x1]
    %12 = vrot.lane.b32.xlu0 %v11, 4
    %v13 = vpop.permute.xlu0 %12
    %vm14 = vcmask 64544
    %15 = vst.msk [vmem:[#allocation0] sm:$0x1] %vm14, %v13
    %s17 = sshll.u32 1, 1
    %s18 = ssub.s32 %s17, 1
    %v20 = vld [vmem:[#allocation0] sm:%s18]
    %s21 = sshll.u32 1, 1
    %s22 = ssub.s32 %s21, 1
    %23 = vst [vmem:[%s1] sm:%s22] %v20

// kernel: bert_forward.1
$region0: #{bert_forward.1}
  #allocation0 [shape = 'u32[]', space=smem, size = 0x4, offset = 0x4, fixed_abs, tag = 'smem constant byte address 0x4 - core index']
  #allocation1 [shape = 'u32[144,128]{1,0:T(1,128)}', space=vmem, size = 0x12000, scoped, tag = 'internal scratch']
  %s0 = inlined_call_operand.vmem [shape: f32[16,128], index: 0, kind: input, shape index: {}]
  %s1 = inlined_call_operand.vmem [shape: s32[2,1,8], index: 1, kind: input, shape index: {}]
  %s2 = inlined_call_operand.vmem [shape: bf16[2,16], index: 2, kind: input, shape index: {}]
  %s3 = inlined_call_operand.vmem [shape: bf16[8,16], index: 3, kind: input, shape index: {}]
  %s4 = inlined_call_operand.vmem [shape: s32[8,1], index: 4, kind: input, shape index: {}]
  %s5 = inlined_call_operand.vmem [shape: f32[1,128], index: 5, kind: input, shape index: {}]
  %s6 = inlined_call_operand.vmem [shape: f32[1,128], index: 6, kind: input, shape index: {}]
  %s7 = inlined_call_operand.vmem [shape: bf16[2,128,384], index: 7, kind: input, shape index: {}]
  %s8 = inlined_call_operand.vmem [shape: f32[2,1,384], index: 8, kind: input, shape index: {}]
  %s9 = inlined_call_operand.vmem [shape: bf16[2,128,128], index: 9, kind: input, shape index: {}]
  %s10 = inlined_call_operand.vmem [shape: f32[2,1,128], index: 10, kind: input, shape index: {}]
  %s11 = inlined_call_operand.vmem [shape: f32[2,1,128], index: 11, kind: input, shape index: {}]
  %s12 = inlined_call_operand.vmem [shape: f32[2,1,128], index: 12, kind: input, shape index: {}]
  %s13 = inlined_call_operand.hbm [shape: bf16[2,128,256], index: 13, kind: input, shape index: {}]
  %s14 = inlined_call_operand.vmem [shape: f32[2,1,256], index: 14, kind: input, shape index: {}]
  %s15 = inlined_call_operand.hbm [shape: bf16[2,256,128], index: 15, kind: input, shape index: {}]
  %s16 = inlined_call_operand.vmem [shape: f32[2,1,128], index: 16, kind: input, shape index: {}]
  %s17 = inlined_call_operand.vmem [shape: bf16[128,128], index: 17, kind: input, shape index: {}]
  %s18 = inlined_call_operand.vmem [shape: f32[1,128], index: 18, kind: input, shape index: {}]
  %s19 = inlined_call_operand.vmem [shape: bf16[128,2], index: 19, kind: input, shape index: {}]
  %s20 = inlined_call_operand.vmem [shape: f32[1,2], index: 20, kind: input, shape index: {}]
  %s21 = inlined_call_operand.vmem [shape: bf16[128,128], index: 21, kind: input, shape index: {}]
  %s22 = inlined_call_operand.vmem [shape: f32[1,128], index: 22, kind: input, shape index: {}]
  %s23 = inlined_call_operand.vmem [shape: f32[1,128], index: 23, kind: input, shape index: {}]
  %s24 = inlined_call_operand.vmem [shape: f32[1,128], index: 24, kind: input, shape index: {}]
  %s25 = inlined_call_operand.vmem [shape: bf16[128,256], index: 25, kind: input, shape index: {}]
  %s26 = inlined_call_operand.vmem [shape: f32[1,256], index: 26, kind: input, shape index: {}]
  %s27 = inlined_call_operand.vmem [shape: f32[8,256], index: 27, kind: output, shape index: {0}]
  %s28 = inlined_call_operand.hbm [shape: f32[2,2], index: 28, kind: output, shape index: {1}]
  %29 = xla_tuple %s27, %s28
  %s30 = sld [smem:[#allocation0]]
  $region134: #{bert_forward.1} parent=0
    _
  %s32 = ssub.s32 1, %s30
  %s33 = scalar_select 0, %s32, %s30
  $region1: #{bert_forward.1} parent=0
    #allocation2 [shape = 'u8[131072]{0}', space=vmem, size = 0x20000, scoped, tag = 'input window, operand 13, single buffered']
    #allocation3 [shape = 's32[1]{0}', space=sflag, size = 0x4, scoped, tag = 'scoped memory for bert_forward.1']
    #allocation4 [shape = 's32[1]{0}', space=sflag, size = 0x4, scoped, tag = 'scoped memory for bert_forward.1']
    #allocation5 [shape = 'u8[131072]{0}', space=vmem, size = 0x20000, scoped, tag = 'input window, operand 15, single buffered']
    #allocation6 [shape = 's32[1]{0}', space=sflag, size = 0x4, scoped, tag = 'scoped memory for bert_forward.1']
    #allocation7 [shape = 'u8[1024]{0}', space=vmem, size = 0x400, scoped, tag = 'output window, operand 1, single buffered']
    %34 = vsyncpa [#allocation3], 0
    %35 = vsyncpa [#allocation6], 0
    %36 = vsyncpa [#allocation4], 0
    // Predicated region
    $region2: #{bert_forward.1} parent=1 // pred_check
      _
    $region3: #{bert_forward.1} parent=1 // pred_check_branch
      %38 = sbr.rel (0) target = $region5
    $region4: #{bert_forward.1} parent=1 // pred_region
      _
    $region5: #{bert_forward.1} parent=1 // pred_fallthru
      _
    // Predicated region
    $region6: #{bert_forward.1} parent=1 // pred_check
      _
    $region7: #{bert_forward.1} parent=1 // pred_check_branch
      %40 = sbr.rel (0) target = $region9
    $region8: #{bert_forward.1} parent=1 // pred_region
      _
    $region9: #{bert_forward.1} parent=1 // pred_fallthru
      _
    // Predicated region
    $region10: #{bert_forward.1} parent=1 // pred_check
      _
    $region11: #{bert_forward.1} parent=1 // pred_check_branch
      %42 = sbr.rel (0) target = $region13
    $region12: #{bert_forward.1} parent=1 // pred_region
      _
    $region13: #{bert_forward.1} parent=1 // pred_fallthru
      _
    // Predicated region
    $region14: #{bert_forward.1} parent=1 // pred_check
      _
    $region15: #{bert_forward.1} parent=1 // pred_check_branch
      %44 = sbr.rel (0) target = $region17
    $region16: #{bert_forward.1} parent=1 // pred_region
      _
    $region17: #{bert_forward.1} parent=1 // pred_fallthru
      _
    // Predicated region
    $region18: #{bert_forward.1} parent=1 // pred_check
      _
    $region19: #{bert_forward.1} parent=1 // pred_check_branch
      %46 = sbr.rel (0) target = $region21
    $region20: #{bert_forward.1} parent=1 // pred_region
      _
    $region21: #{bert_forward.1} parent=1 // pred_fallthru
      _
    // Predicated region
    $region22: #{bert_forward.1} parent=1 // pred_check
      _
    $region23: #{bert_forward.1} parent=1 // pred_check_branch
      %48 = sbr.rel (0) target = $region25
    $region24: #{bert_forward.1} parent=1 // pred_region
      _
    $region25: #{bert_forward.1} parent=1 // pred_fallthru
      _
    // Predicated region
    $region26: #{bert_forward.1} parent=1 // pred_check
      _
    $region27: #{bert_forward.1} parent=1 // pred_check_branch
      %50 = sbr.rel (0) target = $region29
    $region28: #{bert_forward.1} parent=1 // pred_region
      _
    $region29: #{bert_forward.1} parent=1 // pred_fallthru
      _
    // Predicated region
    $region30: #{bert_forward.1} parent=1 // pred_check
      _
    $region31: #{bert_forward.1} parent=1 // pred_check_branch
      %52 = sbr.rel (0) target = $region33
    $region32: #{bert_forward.1} parent=1 // pred_region
      _
    $region33: #{bert_forward.1} parent=1 // pred_fallthru
      _
    // Predicated region
    $region34: #{bert_forward.1} parent=1 // pred_check
      _
    $region35: #{bert_forward.1} parent=1 // pred_check_branch
      %54 = sbr.rel (0) target = $region37
    $region36: #{bert_forward.1} parent=1 // pred_region
      _
    $region37: #{bert_forward.1} parent=1 // pred_fallthru
      _
    // Predicated region
    $region38: #{bert_forward.1} parent=1 // pred_check
      _
    $region39: #{bert_forward.1} parent=1 // pred_check_branch
      %56 = sbr.rel (0) target = $region41
    $region40: #{bert_forward.1} parent=1 // pred_region
      _
    $region41: #{bert_forward.1} parent=1 // pred_fallthru
      _
    // Predicated region
    $region42: #{bert_forward.1} parent=1 // pred_check
      _
    $region43: #{bert_forward.1} parent=1 // pred_check_branch
      %58 = sbr.rel (0) target = $region45
    $region44: #{bert_forward.1} parent=1 // pred_region
      _
    $region45: #{bert_forward.1} parent=1 // pred_fallthru
      _
    // Predicated region
    $region46: #{bert_forward.1} parent=1 // pred_check
      _
    $region47: #{bert_forward.1} parent=1 // pred_check_branch
      %60 = sbr.rel (0) target = $region49
    $region48: #{bert_forward.1} parent=1 // pred_region
      _
    $region49: #{bert_forward.1} parent=1 // pred_fallthru
      _
    // Predicated region
    $region50: #{bert_forward.1} parent=1 // pred_check
      _
    $region51: #{bert_forward.1} parent=1 // pred_check_branch
      %62 = sbr.rel (0) target = $region53
    $region52: #{bert_forward.1} parent=1 // pred_region
      _
    $region53: #{bert_forward.1} parent=1 // pred_fallthru
      _
    // Predicated region
    $region54: #{bert_forward.1} parent=1 // pred_check
      _
    $region55: #{bert_forward.1} parent=1 // pred_check_branch
      %64 = sbr.rel (0) target = $region57
    $region56: #{bert_forward.1} parent=1 // pred_region
      %s66 = ssub.s32 4096, 4096
      %67 = vsyncadd [#allocation3], %s66
      %s68 = sshll.u32 [#allocation2], 4
      %s69 = int_to_ptr.vmem [resolvable:$true] %s68
      %74 = dma.hbm_to_vmem [thread:$0]  %s13, 4096, %s69, [#allocation3], 128, 128, 8
    $region57: #{bert_forward.1} parent=1 // pred_fallthru
      _
    // Predicated region
    $region58: #{bert_forward.1} parent=1 // pred_check
      _
    $region59: #{bert_forward.1} parent=1 // pred_check_branch
      %76 = sbr.rel (0) target = $region61
    $region60: #{bert_forward.1} parent=1 // pred_region
      _
    $region61: #{bert_forward.1} parent=1 // pred_fallthru
      _
    // Predicated region
    $region62: #{bert_forward.1} parent=1 // pred_check
      _
    $region63: #{bert_forward.1} parent=1 // pred_check_branch
      %78 = sbr.rel (0) target = $region65
    $region64: #{bert_forward.1} parent=1 // pred_region
      %s80 = ssub.s32 4096, 4096
      %81 = vsyncadd [#allocation6], %s80
      %s82 = sshll.u32 [#allocation5], 4
      %s83 = int_to_ptr.vmem [resolvable:$true] %s82
      %88 = dma.hbm_to_vmem [thread:$0]  %s15, 4096, %s83, [#allocation6], 64, 64, 4
    $region65: #{bert_forward.1} parent=1 // pred_fallthru
      _
    // Predicated region
    $region66: #{bert_forward.1} parent=1 // pred_check
      _
    $region67: #{bert_forward.1} parent=1 // pred_check_branch
      %90 = sbr.rel (0) target = $region69
    $region68: #{bert_forward.1} parent=1 // pred_region
      _
    $region69: #{bert_forward.1} parent=1 // pred_fallthru
      _
    // Predicated region
    $region70: #{bert_forward.1} parent=1 // pred_check
      _
    $region71: #{bert_forward.1} parent=1 // pred_check_branch
      %92 = sbr.rel (0) target = $region73
    $region72: #{bert_forward.1} parent=1 // pred_region
      _
    $region73: #{bert_forward.1} parent=1 // pred_fallthru
      _
    // Predicated region
    $region74: #{bert_forward.1} parent=1 // pred_check
      _
    $region75: #{bert_forward.1} parent=1 // pred_check_branch
      %94 = sbr.rel (0) target = $region77
    $region76: #{bert_forward.1} parent=1 // pred_region
      _
    $region77: #{bert_forward.1} parent=1 // pred_fallthru
      _
    // Predicated region
    $region78: #{bert_forward.1} parent=1 // pred_check
      _
    $region79: #{bert_forward.1} parent=1 // pred_check_branch
      %96 = sbr.rel (0) target = $region81
    $region80: #{bert_forward.1} parent=1 // pred_region
      _
    $region81: #{bert_forward.1} parent=1 // pred_fallthru
      _
    // Predicated region
    $region82: #{bert_forward.1} parent=1 // pred_check
      _
    $region83: #{bert_forward.1} parent=1 // pred_check_branch
      %98 = sbr.rel (0) target = $region85
    $region84: #{bert_forward.1} parent=1 // pred_region
      _
    $region85: #{bert_forward.1} parent=1 // pred_fallthru
      _
    // Predicated region
    $region86: #{bert_forward.1} parent=1 // pred_check
      _
    $region87: #{bert_forward.1} parent=1 // pred_check_branch
      %100 = sbr.rel (0) target = $region89
    $region88: #{bert_forward.1} parent=1 // pred_region
      _
    $region89: #{bert_forward.1} parent=1 // pred_fallthru
      _
    // Predicated region
    $region90: #{bert_forward.1} parent=1 // pred_check
      _
    $region91: #{bert_forward.1} parent=1 // pred_check_branch
      %102 = sbr.rel (0) target = $region93
    $region92: #{bert_forward.1} parent=1 // pred_region
      _
    $region93: #{bert_forward.1} parent=1 // pred_fallthru
      _
    // Predicated region
    $region94: #{bert_forward.1} parent=1 // pred_check
      _
    $region95: #{bert_forward.1} parent=1 // pred_check_branch
      %104 = sbr.rel (0) target = $region97
    $region96: #{bert_forward.1} parent=1 // pred_region
      _
    $region97: #{bert_forward.1} parent=1 // pred_fallthru
      _
    // Predicated region
    $region98: #{bert_forward.1} parent=1 // pred_check
      _
    $region99: #{bert_forward.1} parent=1 // pred_check_branch
      %106 = sbr.rel (0) target = $region101
    $region100: #{bert_forward.1} parent=1 // pred_region
      _
    $region101: #{bert_forward.1} parent=1 // pred_fallthru
      _
    // Predicated region
    $region102: #{bert_forward.1} parent=1 // pred_check
      _
    $region103: #{bert_forward.1} parent=1 // pred_check_branch
      %108 = sbr.rel (0) target = $region105
    $region104: #{bert_forward.1} parent=1 // pred_region
      _
    $region105: #{bert_forward.1} parent=1 // pred_fallthru
      _
    // Predicated region
    $region106: #{bert_forward.1} parent=1 // pred_check
      _
    $region107: #{bert_forward.1} parent=1 // pred_check_branch
      %110 = sbr.rel (0) target = $region109
    $region108: #{bert_forward.1} parent=1 // pred_region
      _
    $region109: #{bert_forward.1} parent=1 // pred_fallthru
      _
    // Predicated region
    $region110: #{bert_forward.1} parent=1 // pred_check
      _
    $region111: #{bert_forward.1} parent=1 // pred_check_branch
      %112 = sbr.rel (0) target = $region113
    $region112: #{bert_forward.1} parent=1 // pred_region
      %113 = dma.done [#allocation3], 4096
    $region113: #{bert_forward.1} parent=1 // pred_fallthru
      _
    // Predicated region
    $region114: #{bert_forward.1} parent=1 // pred_check
      _
    $region115: #{bert_forward.1} parent=1 // pred_check_branch
      %115 = sbr.rel (0) target = $region117
    $region116: #{bert_forward.1} parent=1 // pred_region
      %116 = dma.done [#allocation6], 4096
    $region117: #{bert_forward.1} parent=1 // pred_fallthru
      _
    %v118 = vld [vmem:[%s0] sm:$0xff]
    %v119 = vld [vmem:[%s0 + $0x8] sm:$0xff]
    %v120 = vld [vmem:[%s5] sm:$0x1]
    %v121 = vld [vmem:[%s6] sm:$0x1]
    %122 = vadd.xlane.f32.xlu0 %v118
    %v123 = vpop.xlane.xlu0 %122
    %124 = vadd.xlane.f32.xlu0 %v119
    %v125 = vpop.xlane.xlu0 %124
    %v126 = vrcp.pop 128.0
    %v127 = vmul.f32 %v123, %v126
    %v128 = vmul.f32 %v125, %v126
    %v129 = vsub.f32 %v118, %v127
    %v130 = vsub.f32 %v119, %v128
    %v131 = vmul.f32 %v129, %v129
    %v132 = vmul.f32 %v130, %v130
    %133 = vadd.xlane.f32.xlu0 %v131
    %v134 = vpop.xlane.xlu0 %133
    %135 = vadd.xlane.f32.xlu0 %v132
    %v136 = vpop.xlane.xlu0 %135
    %v137 = vmul.f32 %v134, %v126
    %v138 = vmul.f32 %v136, %v126
    %v139 = vadd.f32 %v137, 1e-05
    %v140 = vadd.f32 %v138, 1e-05
    %v141 = vrsqrt.pop %v139
    %v142 = vrsqrt.pop %v140
    %v143 = vmul.f32 %v129, %v141
    %v144 = vmul.f32 %v130, %v142
    %v146 = vlaneseq
    %v147 = vshrl.u32 %v146, 7
    %v148 = vsub.s32 0, %v147
    %v149 = vrot.slane %v120, %v148
    %v151 = vmul.f32 %v143, %v149
    %v152 = vmul.f32 %v144, %v149
    %v154 = vlaneseq
    %v155 = vshrl.u32 %v154, 7
    %v156 = vsub.s32 0, %v155
    %v157 = vrot.slane %v121, %v156
    %v159 = vadd.f32 %v151, %v157
    %v160 = vadd.f32 %v152, %v157
    %v161 = vld [vmem:[%s1] sm:$0x1]
    %v162 = vld [vmem:[%s1 + $0x1] sm:$0x1]
    %vm163 = vcmp.ne.s32.totalorder %v161, 0
    %vm164 = vcmp.ne.s32.totalorder %v162, 0
    %v165 = vld [vmem:[%s7] sm:$0xff]
    %v166 = vld [vmem:[%s7 + $0x8] sm:$0xf]
    %v167 = vld [vmem:[%s7 + $0xc] sm:$0xff]
    %v168 = vld [vmem:[%s7 + $0x14] sm:$0xf]
    %v169 = vld [vmem:[%s7 + $0x18] sm:$0xff]
    %v170 = vld [vmem:[%s7 + $0x20] sm:$0xf]
    %v171 = vld [vmem:[%s7 + $0x24] sm:$0xff]
    %v172 = vld [vmem:[%s7 + $0x2c] sm:$0xf]
    %v173 = vld [vmem:[%s7 + $0x30] sm:$0xff]
    %v174 = vld [vmem:[%s7 + $0x38] sm:$0xf]
    %v175 = vld [vmem:[%s7 + $0x3c] sm:$0xff]
    %v176 = vld [vmem:[%s7 + $0x44] sm:$0xf]
    %v177 = vld [vmem:[%s7 + $0x48] sm:$0xff]
    %v178 = vld [vmem:[%s7 + $0x50] sm:$0xf]
    %v179 = vld [vmem:[%s7 + $0x54] sm:$0xff]
    %v180 = vld [vmem:[%s7 + $0x5c] sm:$0xf]
    %v181 = vld [vmem:[%s7 + $0x60] sm:$0xff]
    %v182 = vld [vmem:[%s7 + $0x68] sm:$0xf]
    %v183 = vld [vmem:[%s7 + $0x6c] sm:$0xff]
    %v184 = vld [vmem:[%s7 + $0x74] sm:$0xf]
    %v185 = vld [vmem:[%s7 + $0x78] sm:$0xff]
    %v186 = vld [vmem:[%s7 + $0x80] sm:$0xf]
    %v187 = vld [vmem:[%s7 + $0x84] sm:$0xff]
    %v188 = vld [vmem:[%s7 + $0x8c] sm:$0xf]
    %v189 = vld [vmem:[%s7 + $0x90] sm:$0xff]
    %v190 = vld [vmem:[%s7 + $0x98] sm:$0xf]
    %v191 = vld [vmem:[%s7 + $0x9c] sm:$0xff]
    %v192 = vld [vmem:[%s7 + $0xa4] sm:$0xf]
    %v193 = vld [vmem:[%s7 + $0xa8] sm:$0xff]
    %v194 = vld [vmem:[%s7 + $0xb0] sm:$0xf]
    %v195 = vld [vmem:[%s7 + $0xb4] sm:$0xff]
    %v196 = vld [vmem:[%s7 + $0xbc] sm:$0xf]
    %v197 = vpack.c.bf16 %v160, %v159
    %v198 = vld [vmem:[%s8] sm:$0x7]
    %v200 = vlaneseq
    %v201 = vshrl.u32 %v200, 7
    %v202 = vsub.s32 0, %v201
    %v203 = vrot.slane %v198, %v202
    %v204 = vlaneseq
    %v205 = vshrl.u32 %v204, 7
    %v206 = vsub.s32 1, %v205
    %v207 = vrot.slane %v198, %v206
    %v208 = vlaneseq
    %v209 = vshrl.u32 %v208, 7
    %v210 = vsub.s32 2, %v209
    %v211 = vrot.slane %v198, %v210
    %v247 = vunpack.c.l.b16 %v165
    %v248 = vunpack.c.h.b16 %v165
    %v249 = vunpack.c.l.b16 %v166
    %v250 = vunpack.c.l.b16 %v167
    %v251 = vunpack.c.h.b16 %v167
    %v252 = vunpack.c.l.b16 %v168
    %v253 = vunpack.c.l.b16 %v169
    %v254 = vunpack.c.h.b16 %v169
    %v255 = vunpack.c.l.b16 %v170
    %v256 = vunpack.c.l.b16 %v171
    %v257 = vunpack.c.h.b16 %v171
    %v258 = vunpack.c.l.b16 %v172
    %v259 = vunpack.c.l.b16 %v173
    %v260 = vunpack.c.h.b16 %v173
    %v261 = vunpack.c.l.b16 %v174
    %v262 = vunpack.c.l.b16 %v175
    %v263 = vunpack.c.h.b16 %v175
    %v264 = vunpack.c.l.b16 %v176
    %v265 = vunpack.c.l.b16 %v177
    %v266 = vunpack.c.h.b16 %v177
    %v267 = vunpack.c.l.b16 %v178
    %v268 = vunpack.c.l.b16 %v179
    %v269 = vunpack.c.h.b16 %v179
    %v270 = vunpack.c.l.b16 %v180
    %v271 = vunpack.c.l.b16 %v181
    %v272 = vunpack.c.h.b16 %v181
    %v273 = vunpack.c.l.b16 %v182
    %v274 = vunpack.c.l.b16 %v183
    %v275 = vunpack.c.h.b16 %v183
    %v276 = vunpack.c.l.b16 %v184
    %v277 = vunpack.c.l.b16 %v185
    %v278 = vunpack.c.h.b16 %v185
    %v279 = vunpack.c.l.b16 %v186
    %v280 = vunpack.c.l.b16 %v187
    %v281 = vunpack.c.h.b16 %v187
    %v282 = vunpack.c.l.b16 %v188
    %v283 = vunpack.c.l.b16 %v189
    %v284 = vunpack.c.h.b16 %v189
    %v285 = vunpack.c.l.b16 %v190
    %v286 = vunpack.c.l.b16 %v191
    %v287 = vunpack.c.h.b16 %v191
    %v288 = vunpack.c.l.b16 %v192
    %v289 = vunpack.c.l.b16 %v193
    %v290 = vunpack.c.h.b16 %v193
    %v291 = vunpack.c.l.b16 %v194
    %v292 = vunpack.c.l.b16 %v195
    %v293 = vunpack.c.h.b16 %v195
    %v294 = vunpack.c.l.b16 %v196
    %v295 = vpack.c.b16 %v250, %v247
    %v296 = vpack.c.b16 %v251, %v248
    %v297 = vpack.c.b16 %v252, %v249
    %v298 = vpack.c.b16 %v256, %v253
    %v299 = vpack.c.b16 %v257, %v254
    %v300 = vpack.c.b16 %v258, %v255
    %v301 = vpack.c.b16 %v262, %v259
    %v302 = vpack.c.b16 %v263, %v260
    %v303 = vpack.c.b16 %v264, %v261
    %v304 = vpack.c.b16 %v268, %v265
    %v305 = vpack.c.b16 %v269, %v266
    %v306 = vpack.c.b16 %v270, %v267
    %v307 = vpack.c.b16 %v274, %v271
    %v308 = vpack.c.b16 %v275, %v272
    %v309 = vpack.c.b16 %v276, %v273
    %v310 = vpack.c.b16 %v280, %v277
    %v311 = vpack.c.b16 %v281, %v278
    %v312 = vpack.c.b16 %v282, %v279
    %v313 = vpack.c.b16 %v286, %v283
    %v314 = vpack.c.b16 %v287, %v284
    %v315 = vpack.c.b16 %v288, %v285
    %v316 = vpack.c.b16 %v292, %v289
    %v317 = vpack.c.b16 %v293, %v290
    %v318 = vpack.c.b16 %v294, %v291
    %343 = vmatprep.subr.bf16.mxu0 %v317
    %344 = vmatpush1.bf16.msra.mxu0 %v316
    %345 = vmatprep.subr.bf16.mxu0 %v314
    %346 = vmatpush1.bf16.msra.mxu0 %v313
    %347 = vmatprep.subr.bf16.mxu0 %v311
    %348 = vmatpush1.bf16.msra.mxu0 %v310
    %349 = vmatprep.subr.bf16.mxu0 %v308
    %350 = vmatpush1.bf16.msra.mxu0 %v307
    %351 = vmatprep.subr.bf16.mxu0 %v305
    %352 = vmatpush1.bf16.msra.mxu0 %v304
    %353 = vmatprep.subr.bf16.mxu0 %v302
    %354 = vmatpush1.bf16.msra.mxu0 %v301
    %355 = vmatprep.subr.bf16.mxu0 %v299
    %356 = vmatpush1.bf16.msra.mxu0 %v298
    %357 = vmatprep.subr.bf16.mxu0 %v296
    %358 = vmatpush1.bf16.msra.mxu0 %v295
    %359 = vmatprep.subr.bf16.mxu0 0
    %360 = vmatpush2.bf16.msra.mxu0 0
    %361 = vmatprep.subr.bf16.mxu0 0
    %362 = vmatpush2.bf16.msra.mxu0 0
    %363 = vmatprep.subr.bf16.mxu0 0
    %364 = vmatpush2.bf16.msra.mxu0 0
    %365 = vmatprep.subr.bf16.mxu0 0
    %366 = vmatpush2.bf16.msra.mxu0 0
    %367 = vmatprep.subr.bf16.mxu0 0
    %368 = vmatpush2.bf16.msra.mxu0 0
    %369 = vmatprep.subr.bf16.mxu0 0
    %370 = vmatpush2.bf16.msra.mxu0 0
    %371 = vmatprep.subr.bf16.mxu0 0
    %372 = vmatpush2.bf16.msra.mxu0 0
    %373 = vmatprep.subr.bf16.mxu0 0
    %374 = vmatpush2.bf16.msra.mxu0 0
    %375 = vmatprep.mubr.bf16.mxu0 0
    %376 = vmatmul.mubr.bf16.gmra.mxu0 %v197
    %v377 = vpop.f32.mrf.mxu0
    %v378 = vadd.f32 %v203, %v377
    %v379 = vpop.f32.mrf.mxu0
    %v380 = vadd.f32 %v207, %v379
    %v381 = vpop.f32.mrf.mxu0
    %v382 = vadd.f32 %v203, %v381
    %v383 = vpop.f32.mrf.mxu0
    %v384 = vadd.f32 %v207, %v383
    %385 = vdwg.mxu0
    %386 = vmatprep.subr.bf16.mxu0 0
    %387 = vmatpush1.bf16.msra.mxu0 %v318
    %388 = vmatprep.subr.bf16.mxu0 0
    %389 = vmatpush1.bf16.msra.mxu0 %v315
    %390 = vmatprep.subr.bf16.mxu0 0
    %391 = vmatpush1.bf16.msra.mxu0 %v312
    %392 = vmatprep.subr.bf16.mxu0 0
    %393 = vmatpush1.bf16.msra.mxu0 %v309
    %394 = vmatprep.subr.bf16.mxu0 0
    %395 = vmatpush1.bf16.msra.mxu0 %v306
    %396 = vmatprep.subr.bf16.mxu0 0
    %397 = vmatpush1.bf16.msra.mxu0 %v303
    %398 = vmatprep.subr.bf16.mxu0 0
    %399 = vmatpush1.bf16.msra.mxu0 %v300
    %400 = vmatprep.subr.bf16.mxu0 0
    %401 = vmatpush1.bf16.msra.mxu0 %v297
    %402 = vmatprep.subr.bf16.mxu0 0
    %403 = vmatpush2.bf16.msra.mxu0 0
    %404 = vmatprep.subr.bf16.mxu0 0
    %405 = vmatpush2.bf16.msra.mxu0 0
    %406 = vmatprep.subr.bf16.mxu0 0
    %407 = vmatpush2.bf16.msra.mxu0 0
    %408 = vmatprep.subr.bf16.mxu0 0
    %409 = vmatpush2.bf16.msra.mxu0 0
    %410 = vmatprep.subr.bf16.mxu0 0
    %411 = vmatpush2.bf16.msra.mxu0 0
    %412 = vmatprep.subr.bf16.mxu0 0
    %413 = vmatpush2.bf16.msra.mxu0 0
    %414 = vmatprep.subr.bf16.mxu0 0
    %415 = vmatpush2.bf16.msra.mxu0 0
    %416 = vmatprep.subr.bf16.mxu0 0
    %417 = vmatpush2.bf16.msra.mxu0 0
    %418 = vmatprep.mubr.bf16.mxu0 0
    %419 = vmatmul.mubr.bf16.gmra.mxu0 %v197
    %v420 = vpop.f32.mrf.mxu0
    %v421 = vadd.f32 %v211, %v420
    %v422 = vpop.f32.mrf.mxu0
    %v423 = vpop.f32.mrf.mxu0
    %v424 = vadd.f32 %v211, %v423
    %v425 = vpop.f32.mrf.mxu0
    %426 = vdwg.mxu0
    %v427 = vmul.f32 %v378, 0.17677669
    %v428 = vmul.f32 %v382, 0.17677669
    %v429 = vpack.c.bf16 %v427, %v427
    %v430 = vpack.c.bf16 %v428, %v428
    %v431 = vpack.c.bf16 %v380, %v380
    %v432 = vpack.c.bf16 %v384, %v384
    %v433 = vpack.c.bf16 %v421, %v421
    %v434 = vpack.c.bf16 %v424, %v424
    %vm435 = vcmask 261120
    %v437 = vsel %vm435, %v429, 0
    %v440 = vsel %vm435, %v431, 0
    %442 = vmatprep.subr.bf16.mxu0 0
    %443 = vmatpush1.bf16.xpose.msra.mxu0 0
    %444 = vmatprep.subr.bf16.mxu0 0
    %445 = vmatpush1.bf16.xpose.msra.mxu0 0
    %446 = vmatprep.subr.bf16.mxu0 0
    %447 = vmatpush1.bf16.xpose.msra.mxu0 0
    %448 = vmatprep.subr.bf16.mxu0 0
    %449 = vmatpush1.bf16.xpose.msra.mxu0 0
    %450 = vmatprep.subr.bf16.mxu0 0
    %451 = vmatpush1.bf16.xpose.msra.mxu0 0
    %452 = vmatprep.subr.bf16.mxu0 0
    %453 = vmatpush1.bf16.xpose.msra.mxu0 0
    %454 = vmatprep.subr.bf16.mxu0 0
    %455 = vmatpush1.bf16.xpose.msra.mxu0 0
    %456 = vmatprep.subr.bf16.mxu0 0
    %457 = vmatpush1.bf16.xpose.msra.mxu0 %v440
    %458 = vmatprep.subr.bf16.mxu0 0
    %459 = vmatpush2.bf16.xpose.msra.mxu0 0
    %460 = vmatprep.subr.bf16.mxu0 0
    %461 = vmatpush2.bf16.xpose.msra.mxu0 0
    %462 = vmatprep.subr.bf16.mxu0 0
    %463 = vmatpush2.bf16.xpose.msra.mxu0 0
    %464 = vmatprep.subr.bf16.mxu0 0
    %465 = vmatpush2.bf16.xpose.msra.mxu0 0
    %466 = vmatprep.subr.bf16.mxu0 0
    %467 = vmatpush2.bf16.xpose.msra.mxu0 0
    %468 = vmatprep.subr.bf16.mxu0 0
    %469 = vmatpush2.bf16.xpose.msra.mxu0 0
    %470 = vmatprep.subr.bf16.mxu0 0
    %471 = vmatpush2.bf16.xpose.msra.mxu0 0
    %472 = vmatprep.subr.bf16.mxu0 0
    %473 = vmatpush2.bf16.xpose.msra.mxu0 0
    %474 = vmatprep.mubr.bf16.mxu0 0
    %475 = vmatmul.mubr.bf16.gmra.mxu0 %v437
    %v476 = vpop.f32.mrf.mxu0
    %v477 = vadd.f32 0.0, %v476
    %v478 = vpop.f32.mrf.mxu0
    %v479 = vpop.f32.mrf.mxu0
    %v480 = vpop.f32.mrf.mxu0
    %481 = vdwg.mxu0
    %v483 = vsel %vm435, %v430, 0
    %v486 = vsel %vm435, %v432, 0
    %488 = vmatprep.subr.bf16.mxu0 0
    %489 = vmatpush1.bf16.xpose.msra.mxu0 0
    %490 = vmatprep.subr.bf16.mxu0 0
    %491 = vmatpush1.bf16.xpose.msra.mxu0 0
    %492 = vmatprep.subr.bf16.mxu0 0
    %493 = vmatpush1.bf16.xpose.msra.mxu0 0
    %494 = vmatprep.subr.bf16.mxu0 0
    %495 = vmatpush1.bf16.xpose.msra.mxu0 0
    %496 = vmatprep.subr.bf16.mxu0 0
    %497 = vmatpush1.bf16.xpose.msra.mxu0 0
    %498 = vmatprep.subr.bf16.mxu0 0
    %499 = vmatpush1.bf16.xpose.msra.mxu0 0
    %500 = vmatprep.subr.bf16.mxu0 0
    %501 = vmatpush1.bf16.xpose.msra.mxu0 0
    %502 = vmatprep.subr.bf16.mxu0 0
    %503 = vmatpush1.bf16.xpose.msra.mxu0 %v486
    %504 = vmatprep.subr.bf16.mxu0 0
    %505 = vmatpush2.bf16.xpose.msra.mxu0 0
    %506 = vmatprep.subr.bf16.mxu0 0
    %507 = vmatpush2.bf16.xpose.msra.mxu0 0
    %508 = vmatprep.subr.bf16.mxu0 0
    %509 = vmatpush2.bf16.xpose.msra.mxu0 0
    %510 = vmatprep.subr.bf16.mxu0 0
    %511 = vmatpush2.bf16.xpose.msra.mxu0 0
    %512 = vmatprep.subr.bf16.mxu0 0
    %513 = vmatpush2.bf16.xpose.msra.mxu0 0
    %514 = vmatprep.subr.bf16.mxu0 0
    %515 = vmatpush2.bf16.xpose.msra.mxu0 0
    %516 = vmatprep.subr.bf16.mxu0 0
    %517 = vmatpush2.bf16.xpose.msra.mxu0 0
    %518 = vmatprep.subr.bf16.mxu0 0
    %519 = vmatpush2.bf16.xpose.msra.mxu0 0
    %520 = vmatprep.mubr.bf16.mxu0 0
    %521 = vmatmul.mubr.bf16.gmra.mxu0 %v483
    %v522 = vpop.f32.mrf.mxu0
    %v523 = vadd.f32 0.0, %v522
    %v524 = vpop.f32.mrf.mxu0
    %v525 = vpop.f32.mrf.mxu0
    %v526 = vpop.f32.mrf.mxu0
    %527 = vdwg.mxu0
    %v528 = vsel %vm163, 1, 0
    %v529 = vsel %vm164, 1, 0
    %v530 = vlaneseq
    %v531 = vshrl.u32 %v530, 7
    %v532 = vsub.s32 0, %v531
    %v533 = vrot.slane %v528, %v532
    %v534 = vlaneseq
    %v535 = vshrl.u32 %v534, 7
    %v536 = vsub.s32 0, %v535
    %v537 = vrot.slane %v529, %v536
    %vm538 = vcmp.eq.s32.totalorder %v533, 1
    %vm539 = vcmp.eq.s32.totalorder %v537, 1
    %v540 = vsel %vm538, -1e+09, %v477
    %v541 = vsel %vm539, -1e+09, %v523
    %vm542 = vcmask 64512
    %v543 = vsel %vm542, %v540, -inf
    %544 = vmax.xlane.f32.xlu0 %v543
    %v545 = vpop.xlane.xlu0 %544
    %v546 = vsel %vm542, %v541, -inf
    %547 = vmax.xlane.f32.xlu0 %v546
    %v548 = vpop.xlane.xlu0 %547
    %v549 = vsub.f32 %v540, %v545
    %v550 = vsub.f32 %v541, %v548
    %v551 = vmul.f32 %v549, 1.442695
    %v552 = vpow.pop %v551
    %v553 = vmul.f32 %v550, 1.442695
    %v554 = vpow.pop %v553
    %v555 = vsel %vm542, %v552, 0.0
    %556 = vadd.xlane.f32.xlu0 %v555
    %v557 = vpop.xlane.xlu0 %556
    %v558 = vsel %vm542, %v554, 0.0
    %559 = vadd.xlane.f32.xlu0 %v558
    %v560 = vpop.xlane.xlu0 %559
    %v561 = vrcp.pop %v557
    %v562 = vrcp.pop %v560
    %v563 = vmul.f32 %v552, %v561
    %v564 = vmul.f32 %v554, %v562
    %v565 = vpack.c.bf16 %v563, %v563
    %v566 = vpack.c.bf16 %v564, %v564
    %v568 = vsel %vm542, %v565, 0
    %vm570 = vcmask 1043456
    %v572 = vsel %vm570, %v433, 0
    %574 = vmatprep.subr.bf16.mxu0 0
    %575 = vmatpush1.bf16.msra.mxu0 0
    %576 = vmatprep.subr.bf16.mxu0 0
    %577 = vmatpush1.bf16.msra.mxu0 0
    %578 = vmatprep.subr.bf16.mxu0 0
    %579 = vmatpush1.bf16.msra.mxu0 0
    %580 = vmatprep.subr.bf16.mxu0 0
    %581 = vmatpush1.bf16.msra.mxu0 0
    %582 = vmatprep.subr.bf16.mxu0 0
    %583 = vmatpush1.bf16.msra.mxu0 0
    %584 = vmatprep.subr.bf16.mxu0 0
    %585 = vmatpush1.bf16.msra.mxu0 0
    %586 = vmatprep.subr.bf16.mxu0 0
    %587 = vmatpush1.bf16.msra.mxu0 0
    %588 = vmatprep.subr.bf16.mxu0 0
    %589 = vmatpush1.bf16.msra.mxu0 %v572
    %590 = vmatprep.subr.bf16.mxu0 0
    %591 = vmatpush2.bf16.msra.mxu0 0
    %592 = vmatprep.subr.bf16.mxu0 0
    %593 = vmatpush2.bf16.msra.mxu0 0
    %594 = vmatprep.subr.bf16.mxu0 0
    %595 = vmatpush2.bf16.msra.mxu0 0
    %596 = vmatprep.subr.bf16.mxu0 0
    %597 = vmatpush2.bf16.msra.mxu0 0
    %598 = vmatprep.subr.bf16.mxu0 0
    %599 = vmatpush2.bf16.msra.mxu0 0
    %600 = vmatprep.subr.bf16.mxu0 0
    %601 = vmatpush2.bf16.msra.mxu0 0
    %602 = vmatprep.subr.bf16.mxu0 0
    %603 = vmatpush2.bf16.msra.mxu0 0
    %604 = vmatprep.subr.bf16.mxu0 0
    %605 = vmatpush2.bf16.msra.mxu0 0
    %606 = vmatprep.mubr.bf16.mxu0 0
    %607 = vmatmul.mubr.bf16.gmra.mxu0 %v568
    %v608 = vpop.f32.mrf.mxu0
    %v609 = vadd.f32 0.0, %v608
    %v610 = vpop.f32.mrf.mxu0
    %v611 = vpop.f32.mrf.mxu0
    %v612 = vpop.f32.mrf.mxu0
    %613 = vdwg.mxu0
    %v615 = vsel %vm542, %v566, 0
    %v618 = vsel %vm570, %v434, 0
    %620 = vmatprep.subr.bf16.mxu0 0
    %621 = vmatpush1.bf16.msra.mxu0 0
    %622 = vmatprep.subr.bf16.mxu0 0
    %623 = vmatpush1.bf16.msra.mxu0 0
    %624 = vmatprep.subr.bf16.mxu0 0
    %625 = vmatpush1.bf16.msra.mxu0 0
    %626 = vmatprep.subr.bf16.mxu0 0
    %627 = vmatpush1.bf16.msra.mxu0 0
    %628 = vmatprep.subr.bf16.mxu0 0
    %629 = vmatpush1.bf16.msra.mxu0 0
    %630 = vmatprep.subr.bf16.mxu0 0
    %631 = vmatpush1.bf16.msra.mxu0 0
    %632 = vmatprep.subr.bf16.mxu0 0
    %633 = vmatpush1.bf16.msra.mxu0 0
    %634 = vmatprep.subr.bf16.mxu0 0
    %635 = vmatpush1.bf16.msra.mxu0 %v618
    %636 = vmatprep.subr.bf16.mxu0 0
    %637 = vmatpush2.bf16.msra.mxu0 0
    %638 = vmatprep.subr.bf16.mxu0 0
    %639 = vmatpush2.bf16.msra.mxu0 0
    %640 = vmatprep.subr.bf16.mxu0 0
    %641 = vmatpush2.bf16.msra.mxu0 0
    %642 = vmatprep.subr.bf16.mxu0 0
    %643 = vmatpush2.bf16.msra.mxu0 0
    %644 = vmatprep.subr.bf16.mxu0 0
    %645 = vmatpush2.bf16.msra.mxu0 0
    %646 = vmatprep.subr.bf16.mxu0 0
    %647 = vmatpush2.bf16.msra.mxu0 0
    %648 = vmatprep.subr.bf16.mxu0 0
    %649 = vmatpush2.bf16.msra.mxu0 0
    %650 = vmatprep.subr.bf16.mxu0 0
    %651 = vmatpush2.bf16.msra.mxu0 0
    %652 = vmatprep.mubr.bf16.mxu0 0
    %653 = vmatmul.mubr.bf16.gmra.mxu0 %v615
    %v654 = vpop.f32.mrf.mxu0
    %v655 = vadd.f32 0.0, %v654
    %v656 = vpop.f32.mrf.mxu0
    %v657 = vpop.f32.mrf.mxu0
    %v658 = vpop.f32.mrf.mxu0
    %659 = vdwg.mxu0
    %661 = vrot.lane.b32.xlu0 %v429, 96
    %v662 = vpop.permute.xlu0 %661
    %664 = vrot.lane.b32.xlu0 %v431, 96
    %v665 = vpop.permute.xlu0 %664
    %v667 = vsel %vm435, %v662, 0
    %v670 = vsel %vm435, %v665, 0
    %672 = vmatprep.subr.bf16.mxu0 0
    %673 = vmatpush1.bf16.xpose.msra.mxu0 0
    %674 = vmatprep.subr.bf16.mxu0 0
    %675 = vmatpush1.bf16.xpose.msra.mxu0 0
    %676 = vmatprep.subr.bf16.mxu0 0
    %677 = vmatpush1.bf16.xpose.msra.mxu0 0
    %678 = vmatprep.subr.bf16.mxu0 0
    %679 = vmatpush1.bf16.xpose.msra.mxu0 0
    %680 = vmatprep.subr.bf16.mxu0 0
    %681 = vmatpush1.bf16.xpose.msra.mxu0 0
    %682 = vmatprep.subr.bf16.mxu0 0
    %683 = vmatpush1.bf16.xpose.msra.mxu0 0
    %684 = vmatprep.subr.bf16.mxu0 0
    %685 = vmatpush1.bf16.xpose.msra.mxu0 0
    %686 = vmatprep.subr.bf16.mxu0 0
    %687 = vmatpush1.bf16.xpose.msra.mxu0 %v670
    %688 = vmatprep.subr.bf16.mxu0 0
    %689 = vmatpush2.bf16.xpose.msra.mxu0 0
    %690 = vmatprep.subr.bf16.mxu0 0
    %691 = vmatpush2.bf16.xpose.msra.mxu0 0
    %692 = vmatprep.subr.bf16.mxu0 0
    %693 = vmatpush2.bf16.xpose.msra.mxu0 0
    %694 = vmatprep.subr.bf16.mxu0 0
    %695 = vmatpush2.bf16.xpose.msra.mxu0 0
    %696 = vmatprep.subr.bf16.mxu0 0
    %697 = vmatpush2.bf16.xpose.msra.mxu0 0
    %698 = vmatprep.subr.bf16.mxu0 0
    %699 = vmatpush2.bf16.xpose.msra.mxu0 0
    %700 = vmatprep.subr.bf16.mxu0 0
    %701 = vmatpush2.bf16.xpose.msra.mxu0 0
    %702 = vmatprep.subr.bf16.mxu0 0
    %703 = vmatpush2.bf16.xpose.msra.mxu0 0
    %704 = vmatprep.mubr.bf16.mxu0 0
    %705 = vmatmul.mubr.bf16.gmra.mxu0 %v667
    %v706 = vpop.f32.mrf.mxu0
    %v707 = vadd.f32 0.0, %v706
    %v708 = vpop.f32.mrf.mxu0
    %v709 = vpop.f32.mrf.mxu0
    %v710 = vpop.f32.mrf.mxu0
    %711 = vdwg.mxu0
    %713 = vrot.lane.b32.xlu0 %v430, 96
    %v714 = vpop.permute.xlu0 %713
    %716 = vrot.lane.b32.xlu0 %v432, 96
    %v717 = vpop.permute.xlu0 %716
    %v719 = vsel %vm435, %v714, 0
    %v722 = vsel %vm435, %v717, 0
    %724 = vmatprep.subr.bf16.mxu0 0
    %725 = vmatpush1.bf16.xpose.msra.mxu0 0
    %726 = vmatprep.subr.bf16.mxu0 0
    %727 = vmatpush1.bf16.xpose.msra.mxu0 0
    %728 = vmatprep.subr.bf16.mxu0 0
    %729 = vmatpush1.bf16.xpose.msra.mxu0 0
    %730 = vmatprep.subr.bf16.mxu0 0
    %731 = vmatpush1.bf16.xpose.msra.mxu0 0
    %732 = vmatprep.subr.bf16.mxu0 0
    %733 = vmatpush1.bf16.xpose.msra.mxu0 0
    %734 = vmatprep.subr.bf16.mxu0 0
    %735 = vmatpush1.bf16.xpose.msra.mxu0 0
    %736 = vmatprep.subr.bf16.mxu0 0
    %737 = vmatpush1.bf16.xpose.msra.mxu0 0
    %738 = vmatprep.subr.bf16.mxu0 0
    %739 = vmatpush1.bf16.xpose.msra.mxu0 %v722
    %740 = vmatprep.subr.bf16.mxu0 0
    %741 = vmatpush2.bf16.xpose.msra.mxu0 0
    %742 = vmatprep.subr.bf16.mxu0 0
    %743 = vmatpush2.bf16.xpose.msra.mxu0 0
    %744 = vmatprep.subr.bf16.mxu0 0
    %745 = vmatpush2.bf16.xpose.msra.mxu0 0
    %746 = vmatprep.subr.bf16.mxu0 0
    %747 = vmatpush2.bf16.xpose.msra.mxu0 0
    %748 = vmatprep.subr.bf16.mxu0 0
    %749 = vmatpush2.bf16.xpose.msra.mxu0 0
    %750 = vmatprep.subr.bf16.mxu0 0
    %751 = vmatpush2.bf16.xpose.msra.mxu0 0
    %752 = vmatprep.subr.bf16.mxu0 0
    %753 = vmatpush2.bf16.xpose.msra.mxu0 0
    %754 = vmatprep.subr.bf16.mxu0 0
    %755 = vmatpush2.bf16.xpose.msra.mxu0 0
    %756 = vmatprep.mubr.bf16.mxu0 0
    %757 = vmatmul.mubr.bf16.gmra.mxu0 %v719
    %v758 = vpop.f32.mrf.mxu0
    %v759 = vadd.f32 0.0, %v758
    %v760 = vpop.f32.mrf.mxu0
    %v761 = vpop.f32.mrf.mxu0
    %v762 = vpop.f32.mrf.mxu0
    %763 = vdwg.mxu0
    %v764 = vsel %vm538, -1e+09, %v707
    %v765 = vsel %vm539, -1e+09, %v759
    %v766 = vsel %vm542, %v764, -inf
    %767 = vmax.xlane.f32.xlu0 %v766
    %v768 = vpop.xlane.xlu0 %767
    %v769 = vsel %vm542, %v765, -inf
    %770 = vmax.xlane.f32.xlu0 %v769
    %v771 = vpop.xlane.xlu0 %770
    %v772 = vsub.f32 %v764, %v768
    %v773 = vsub.f32 %v765, %v771
    %v774 = vmul.f32 %v772, 1.442695
    %v775 = vpow.pop %v774
    %v776 = vmul.f32 %v773, 1.442695
    %v777 = vpow.pop %v776
    %v778 = vsel %vm542, %v775, 0.0
    %779 = vadd.xlane.f32.xlu0 %v778
    %v780 = vpop.xlane.xlu0 %779
    %v781 = vsel %vm542, %v777, 0.0
    %782 = vadd.xlane.f32.xlu0 %v781
    %v783 = vpop.xlane.xlu0 %782
    %v784 = vrcp.pop %v780
    %v785 = vrcp.pop %v783
    %v786 = vmul.f32 %v775, %v784
    %v787 = vmul.f32 %v777, %v785
    %v788 = vpack.c.bf16 %v786, %v786
    %v789 = vpack.c.bf16 %v787, %v787
    %791 = vrot.lane.b32.xlu0 %v433, 96
    %v792 = vpop.permute.xlu0 %791
    %v794 = vsel %vm542, %v788, 0
    %v797 = vsel %vm570, %v792, 0
    %799 = vmatprep.subr.bf16.mxu0 0
    %800 = vmatpush1.bf16.msra.mxu0 0
    %801 = vmatprep.subr.bf16.mxu0 0
    %802 = vmatpush1.bf16.msra.mxu0 0
    %803 = vmatprep.subr.bf16.mxu0 0
    %804 = vmatpush1.bf16.msra.mxu0 0
    %805 = vmatprep.subr.bf16.mxu0 0
    %806 = vmatpush1.bf16.msra.mxu0 0
    %807 = vmatprep.subr.bf16.mxu0 0
    %808 = vmatpush1.bf16.msra.mxu0 0
    %809 = vmatprep.subr.bf16.mxu0 0
    %810 = vmatpush1.bf16.msra.mxu0 0
    %811 = vmatprep.subr.bf16.mxu0 0
    %812 = vmatpush1.bf16.msra.mxu0 0
    %813 = vmatprep.subr.bf16.mxu0 0
    %814 = vmatpush1.bf16.msra.mxu0 %v797
    %815 = vmatprep.subr.bf16.mxu0 0
    %816 = vmatpush2.bf16.msra.mxu0 0
    %817 = vmatprep.subr.bf16.mxu0 0
    %818 = vmatpush2.bf16.msra.mxu0 0
    %819 = vmatprep.subr.bf16.mxu0 0
    %820 = vmatpush2.bf16.msra.mxu0 0
    %821 = vmatprep.subr.bf16.mxu0 0
    %822 = vmatpush2.bf16.msra.mxu0 0
    %823 = vmatprep.subr.bf16.mxu0 0
    %824 = vmatpush2.bf16.msra.mxu0 0
    %825 = vmatprep.subr.bf16.mxu0 0
    %826 = vmatpush2.bf16.msra.mxu0 0
    %827 = vmatprep.subr.bf16.mxu0 0
    %828 = vmatpush2.bf16.msra.mxu0 0
    %829 = vmatprep.subr.bf16.mxu0 0
    %830 = vmatpush2.bf16.msra.mxu0 0
    %831 = vmatprep.mubr.bf16.mxu0 0
    %832 = vmatmul.mubr.bf16.gmra.mxu0 %v794
    %v833 = vpop.f32.mrf.mxu0
    %v834 = vadd.f32 0.0, %v833
    %v835 = vpop.f32.mrf.mxu0
    %v836 = vpop.f32.mrf.mxu0
    %v837 = vpop.f32.mrf.mxu0
    %838 = vdwg.mxu0
    %840 = vrot.lane.b32.xlu0 %v434, 96
    %v841 = vpop.permute.xlu0 %840
    %v843 = vsel %vm542, %v789, 0
    %v846 = vsel %vm570, %v841, 0
    %848 = vmatprep.subr.bf16.mxu0 0
    %849 = vmatpush1.bf16.msra.mxu0 0
    %850 = vmatprep.subr.bf16.mxu0 0
    %851 = vmatpush1.bf16.msra.mxu0 0
    %852 = vmatprep.subr.bf16.mxu0 0
    %853 = vmatpush1.bf16.msra.mxu0 0
    %854 = vmatprep.subr.bf16.mxu0 0
    %855 = vmatpush1.bf16.msra.mxu0 0
    %856 = vmatprep.subr.bf16.mxu0 0
    %857 = vmatpush1.bf16.msra.mxu0 0
    %858 = vmatprep.subr.bf16.mxu0 0
    %859 = vmatpush1.bf16.msra.mxu0 0
    %860 = vmatprep.subr.bf16.mxu0 0
    %861 = vmatpush1.bf16.msra.mxu0 0
    %862 = vmatprep.subr.bf16.mxu0 0
    %863 = vmatpush1.bf16.msra.mxu0 %v846
    %864 = vmatprep.subr.bf16.mxu0 0
    %865 = vmatpush2.bf16.msra.mxu0 0
    %866 = vmatprep.subr.bf16.mxu0 0
    %867 = vmatpush2.bf16.msra.mxu0 0
    %868 = vmatprep.subr.bf16.mxu0 0
    %869 = vmatpush2.bf16.msra.mxu0 0
    %870 = vmatprep.subr.bf16.mxu0 0
    %871 = vmatpush2.bf16.msra.mxu0 0
    %872 = vmatprep.subr.bf16.mxu0 0
    %873 = vmatpush2.bf16.msra.mxu0 0
    %874 = vmatprep.subr.bf16.mxu0 0
    %875 = vmatpush2.bf16.msra.mxu0 0
    %876 = vmatprep.subr.bf16.mxu0 0
    %877 = vmatpush2.bf16.msra.mxu0 0
    %878 = vmatprep.subr.bf16.mxu0 0
    %879 = vmatpush2.bf16.msra.mxu0 0
    %880 = vmatprep.mubr.bf16.mxu0 0
    %881 = vmatmul.mubr.bf16.gmra.mxu0 %v843
    %v882 = vpop.f32.mrf.mxu0
    %v883 = vadd.f32 0.0, %v882
    %v884 = vpop.f32.mrf.mxu0
    %v885 = vpop.f32.mrf.mxu0
    %v886 = vpop.f32.mrf.mxu0
    %887 = vdwg.mxu0
    %888 = vrot.lane.b32.xlu0 %v429, 64
    %v889 = vpop.permute.xlu0 %888
    %890 = vrot.lane.b32.xlu0 %v431, 64
    %v891 = vpop.permute.xlu0 %890
    %v893 = vsel %vm435, %v889, 0
    %v896 = vsel %vm435, %v891, 0
    %898 = vmatprep.subr.bf16.mxu0 0
    %899 = vmatpush1.bf16.xpose.msra.mxu0 0
    %900 = vmatprep.subr.bf16.mxu0 0
    %901 = vmatpush1.bf16.xpose.msra.mxu0 0
    %902 = vmatprep.subr.bf16.mxu0 0
    %903 = vmatpush1.bf16.xpose.msra.mxu0 0
    %904 = vmatprep.subr.bf16.mxu0 0
    %905 = vmatpush1.bf16.xpose.msra.mxu0 0
    %906 = vmatprep.subr.bf16.mxu0 0
    %907 = vmatpush1.bf16.xpose.msra.mxu0 0
    %908 = vmatprep.subr.bf16.mxu0 0
    %909 = vmatpush1.bf16.xpose.msra.mxu0 0
    %910 = vmatprep.subr.bf16.mxu0 0
    %911 = vmatpush1.bf16.xpose.msra.mxu0 0
    %912 = vmatprep.subr.bf16.mxu0 0
    %913 = vmatpush1.bf16.xpose.msra.mxu0 %v896
    %914 = vmatprep.subr.bf16.mxu0 0
    %915 = vmatpush2.bf16.xpose.msra.mxu0 0
    %916 = vmatprep.subr.bf16.mxu0 0
    %917 = vmatpush2.bf16.xpose.msra.mxu0 0
    %918 = vmatprep.subr.bf16.mxu0 0
    %919 = vmatpush2.bf16.xpose.msra.mxu0 0
    %920 = vmatprep.subr.bf16.mxu0 0
    %921 = vmatpush2.bf16.xpose.msra.mxu0 0
    %922 = vmatprep.subr.bf16.mxu0 0
    %923 = vmatpush2.bf16.xpose.msra.mxu0 0
    %924 = vmatprep.subr.bf16.mxu0 0
    %925 = vmatpush2.bf16.xpose.msra.mxu0 0
    %926 = vmatprep.subr.bf16.mxu0 0
    %927 = vmatpush2.bf16.xpose.msra.mxu0 0
    %928 = vmatprep.subr.bf16.mxu0 0
    %929 = vmatpush2.bf16.xpose.msra.mxu0 0
    %930 = vmatprep.mubr.bf16.mxu0 0
    %931 = vmatmul.mubr.bf16.gmra.mxu0 %v893
    %v932 = vpop.f32.mrf.mxu0
    %v933 = vadd.f32 0.0, %v932
    %v934 = vpop.f32.mrf.mxu0
    %v935 = vpop.f32.mrf.mxu0
    %v936 = vpop.f32.mrf.mxu0
    %937 = vdwg.mxu0
    %938 = vrot.lane.b32.xlu0 %v430, 64
    %v939 = vpop.permute.xlu0 %938
    %940 = vrot.lane.b32.xlu0 %v432, 64
    %v941 = vpop.permute.xlu0 %940
    %v943 = vsel %vm435, %v939, 0
    %v946 = vsel %vm435, %v941, 0
    %948 = vmatprep.subr.bf16.mxu0 0
    %949 = vmatpush1.bf16.xpose.msra.mxu0 0
    %950 = vmatprep.subr.bf16.mxu0 0
    %951 = vmatpush1.bf16.xpose.msra.mxu0 0
    %952 = vmatprep.subr.bf16.mxu0 0
    %953 = vmatpush1.bf16.xpose.msra.mxu0 0
    %954 = vmatprep.subr.bf16.mxu0 0
    %955 = vmatpush1.bf16.xpose.msra.mxu0 0
    %956 = vmatprep.subr.bf16.mxu0 0
    %957 = vmatpush1.bf16.xpose.msra.mxu0 0
    %958 = vmatprep.subr.bf16.mxu0 0
    %959 = vmatpush1.bf16.xpose.msra.mxu0 0
    %960 = vmatprep.subr.bf16.mxu0 0
    %961 = vmatpush1.bf16.xpose.msra.mxu0 0
    %962 = vmatprep.subr.bf16.mxu0 0
    %963 = vmatpush1.bf16.xpose.msra.mxu0 %v946
    %964 = vmatprep.subr.bf16.mxu0 0
    %965 = vmatpush2.bf16.xpose.msra.mxu0 0
    %966 = vmatprep.subr.bf16.mxu0 0
    %967 = vmatpush2.bf16.xpose.msra.mxu0 0
    %968 = vmatprep.subr.bf16.mxu0 0
    %969 = vmatpush2.bf16.xpose.msra.mxu0 0
    %970 = vmatprep.subr.bf16.mxu0 0
    %971 = vmatpush2.bf16.xpose.msra.mxu0 0
    %972 = vmatprep.subr.bf16.mxu0 0
    %973 = vmatpush2.bf16.xpose.msra.mxu0 0
    %974 = vmatprep.subr.bf16.mxu0 0
    %975 = vmatpush2.bf16.xpose.msra.mxu0 0
    %976 = vmatprep.subr.bf16.mxu0 0
    %977 = vmatpush2.bf16.xpose.msra.mxu0 0
    %978 = vmatprep.subr.bf16.mxu0 0
    %979 = vmatpush2.bf16.xpose.msra.mxu0 0
    %980 = vmatprep.mubr.bf16.mxu0 0
    %981 = vmatmul.mubr.bf16.gmra.mxu0 %v943
    %v982 = vpop.f32.mrf.mxu0
    %v983 = vadd.f32 0.0, %v982
    %v984 = vpop.f32.mrf.mxu0
    %v985 = vpop.f32.mrf.mxu0
    %v986 = vpop.f32.mrf.mxu0
    %987 = vdwg.mxu0
    %v988 = vsel %vm538, -1e+09, %v933
    %v989 = vsel %vm539, -1e+09, %v983
    %v990 = vsel %vm542, %v988, -inf
    %991 = vmax.xlane.f32.xlu0 %v990
    %v992 = vpop.xlane.xlu0 %991
    %v993 = vsel %vm542, %v989, -inf
    %994 = vmax.xlane.f32.xlu0 %v993
    %v995 = vpop.xlane.xlu0 %994
    %v996 = vsub.f32 %v988, %v992
    %v997 = vsub.f32 %v989, %v995
    %v998 = vmul.f32 %v996, 1.442695
    %v999 = vpow.pop %v998
    %v1000 = vmul.f32 %v997, 1.442695
    %v1001 = vpow.pop %v1000
    %v1002 = vsel %vm542, %v999, 0.0
    %1003 = vadd.xlane.f32.xlu0 %v1002
    %v1004 = vpop.xlane.xlu0 %1003
    %v1005 = vsel %vm542, %v1001, 0.0
    %1006 = vadd.xlane.f32.xlu0 %v1005
    %v1007 = vpop.xlane.xlu0 %1006
    %v1008 = vrcp.pop %v1004
    %v1009 = vrcp.pop %v1007
    %v1010 = vmul.f32 %v999, %v1008
    %v1011 = vmul.f32 %v1001, %v1009
    %v1012 = vpack.c.bf16 %v1010, %v1010
    %v1013 = vpack.c.bf16 %v1011, %v1011
    %1014 = vrot.lane.b32.xlu0 %v433, 64
    %v1015 = vpop.permute.xlu0 %1014
    %v1017 = vsel %vm542, %v1012, 0
    %v1020 = vsel %vm570, %v1015, 0
    %1022 = vmatprep.subr.bf16.mxu0 0
    %1023 = vmatpush1.bf16.msra.mxu0 0
    %1024 = vmatprep.subr.bf16.mxu0 0
    %1025 = vmatpush1.bf16.msra.mxu0 0
    %1026 = vmatprep.subr.bf16.mxu0 0
    %1027 = vmatpush1.bf16.msra.mxu0 0
    %1028 = vmatprep.subr.bf16.mxu0 0
    %1029 = vmatpush1.bf16.msra.mxu0 0
    %1030 = vmatprep.subr.bf16.mxu0 0
    %1031 = vmatpush1.bf16.msra.mxu0 0
    %1032 = vmatprep.subr.bf16.mxu0 0
    %1033 = vmatpush1.bf16.msra.mxu0 0
    %1034 = vmatprep.subr.bf16.mxu0 0
    %1035 = vmatpush1.bf16.msra.mxu0 0
    %1036 = vmatprep.subr.bf16.mxu0 0
    %1037 = vmatpush1.bf16.msra.mxu0 %v1020
    %1038 = vmatprep.subr.bf16.mxu0 0
    %1039 = vmatpush2.bf16.msra.mxu0 0
    %1040 = vmatprep.subr.bf16.mxu0 0
    %1041 = vmatpush2.bf16.msra.mxu0 0
    %1042 = vmatprep.subr.bf16.mxu0 0
    %1043 = vmatpush2.bf16.msra.mxu0 0
    %1044 = vmatprep.subr.bf16.mxu0 0
    %1045 = vmatpush2.bf16.msra.mxu0 0
    %1046 = vmatprep.subr.bf16.mxu0 0
    %1047 = vmatpush2.bf16.msra.mxu0 0
    %1048 = vmatprep.subr.bf16.mxu0 0
    %1049 = vmatpush2.bf16.msra.mxu0 0
    %1050 = vmatprep.subr.bf16.mxu0 0
    %1051 = vmatpush2.bf16.msra.mxu0 0
    %1052 = vmatprep.subr.bf16.mxu0 0
    %1053 = vmatpush2.bf16.msra.mxu0 0
    %1054 = vmatprep.mubr.bf16.mxu0 0
    %1055 = vmatmul.mubr.bf16.gmra.mxu0 %v1017
    %v1056 = vpop.f32.mrf.mxu0
    %v1057 = vadd.f32 0.0, %v1056
    %v1058 = vpop.f32.mrf.mxu0
    %v1059 = vpop.f32.mrf.mxu0
    %v1060 = vpop.f32.mrf.mxu0
    %1061 = vdwg.mxu0
    %1062 = vrot.lane.b32.xlu0 %v434, 64
    %v1063 = vpop.permute.xlu0 %1062
    %v1065 = vsel %vm542, %v1013, 0
    %v1068 = vsel %vm570, %v1063, 0
    %1070 = vmatprep.subr.bf16.mxu0 0
    %1071 = vmatpush1.bf16.msra.mxu0 0
    %1072 = vmatprep.subr.bf16.mxu0 0
    %1073 = vmatpush1.bf16.msra.mxu0 0
    %1074 = vmatprep.subr.bf16.mxu0 0
    %1075 = vmatpush1.bf16.msra.mxu0 0
    %1076 = vmatprep.subr.bf16.mxu0 0
    %1077 = vmatpush1.bf16.msra.mxu0 0
    %1078 = vmatprep.subr.bf16.mxu0 0
    %1079 = vmatpush1.bf16.msra.mxu0 0
    %1080 = vmatprep.subr.bf16.mxu0 0
    %1081 = vmatpush1.bf16.msra.mxu0 0
    %1082 = vmatprep.subr.bf16.mxu0 0
    %1083 = vmatpush1.bf16.msra.mxu0 0
    %1084 = vmatprep.subr.bf16.mxu0 0
    %1085 = vmatpush1.bf16.msra.mxu0 %v1068
    %1086 = vmatprep.subr.bf16.mxu0 0
    %1087 = vmatpush2.bf16.msra.mxu0 0
    %1088 = vmatprep.subr.bf16.mxu0 0
    %1089 = vmatpush2.bf16.msra.mxu0 0
    %1090 = vmatprep.subr.bf16.mxu0 0
    %1091 = vmatpush2.bf16.msra.mxu0 0
    %1092 = vmatprep.subr.bf16.mxu0 0
    %1093 = vmatpush2.bf16.msra.mxu0 0
    %1094 = vmatprep.subr.bf16.mxu0 0
    %1095 = vmatpush2.bf16.msra.mxu0 0
    %1096 = vmatprep.subr.bf16.mxu0 0
    %1097 = vmatpush2.bf16.msra.mxu0 0
    %1098 = vmatprep.subr.bf16.mxu0 0
    %1099 = vmatpush2.bf16.msra.mxu0 0
    %1100 = vmatprep.subr.bf16.mxu0 0
    %1101 = vmatpush2.bf16.msra.mxu0 0
    %1102 = vmatprep.mubr.bf16.mxu0 0
    %1103 = vmatmul.mubr.bf16.gmra.mxu0 %v1065
    %v1104 = vpop.f32.mrf.mxu0
    %v1105 = vadd.f32 0.0, %v1104
    %v1106 = vpop.f32.mrf.mxu0
    %v1107 = vpop.f32.mrf.mxu0
    %v1108 = vpop.f32.mrf.mxu0
    %1109 = vdwg.mxu0
    %1110 = vrot.lane.b32.xlu0 %v429, 32
    %v1111 = vpop.permute.xlu0 %1110
    %1112 = vrot.lane.b32.xlu0 %v431, 32
    %v1113 = vpop.permute.xlu0 %1112
    %v1115 = vsel %vm435, %v1111, 0
    %v1118 = vsel %vm435, %v1113, 0
    %1120 = vmatprep.subr.bf16.mxu0 0
    %1121 = vmatpush1.bf16.xpose.msra.mxu0 0
    %1122 = vmatprep.subr.bf16.mxu0 0
    %1123 = vmatpush1.bf16.xpose.msra.mxu0 0
    %1124 = vmatprep.subr.bf16.mxu0 0
    %1125 = vmatpush1.bf16.xpose.msra.mxu0 0
    %1126 = vmatprep.subr.bf16.mxu0 0
    %1127 = vmatpush1.bf16.xpose.msra.mxu0 0
    %1128 = vmatprep.subr.bf16.mxu0 0
    %1129 = vmatpush1.bf16.xpose.msra.mxu0 0
    %1130 = vmatprep.subr.bf16.mxu0 0
    %1131 = vmatpush1.bf16.xpose.msra.mxu0 0
    %1132 = vmatprep.subr.bf16.mxu0 0
    %1133 = vmatpush1.bf16.xpose.msra.mxu0 0
    %1134 = vmatprep.subr.bf16.mxu0 0
    %1135 = vmatpush1.bf16.xpose.msra.mxu0 %v1118
    %1136 = vmatprep.subr.bf16.mxu0 0
    %1137 = vmatpush2.bf16.xpose.msra.mxu0 0
    %1138 = vmatprep.subr.bf16.mxu0 0
    %1139 = vmatpush2.bf16.xpose.msra.mxu0 0
    %1140 = vmatprep.subr.bf16.mxu0 0
    %1141 = vmatpush2.bf16.xpose.msra.mxu0 0
    %1142 = vmatprep.subr.bf16.mxu0 0
    %1143 = vmatpush2.bf16.xpose.msra.mxu0 0
    %1144 = vmatprep.subr.bf16.mxu0 0
    %1145 = vmatpush2.bf16.xpose.msra.mxu0 0
    %1146 = vmatprep.subr.bf16.mxu0 0
    %1147 = vmatpush2.bf16.xpose.msra.mxu0 0
    %1148 = vmatprep.subr.bf16.mxu0 0
    %1149 = vmatpush2.bf16.xpose.msra.mxu0 0
    %1150 = vmatprep.subr.bf16.mxu0 0
    %1151 = vmatpush2.bf16.xpose.msra.mxu0 0
    %1152 = vmatprep.mubr.bf16.mxu0 0
    %1153 = vmatmul.mubr.bf16.gmra.mxu0 %v1115
    %v1154 = vpop.f32.mrf.mxu0
    %v1155 = vadd.f32 0.0, %v1154
    %v1156 = vpop.f32.mrf.mxu0
    %v1157 = vpop.f32.mrf.mxu0
    %v1158 = vpop.f32.mrf.mxu0
    %1159 = vdwg.mxu0
    %1160 = vrot.lane.b32.xlu0 %v430, 32
    %v1161 = vpop.permute.xlu0 %1160
    %1162 = vrot.lane.b32.xlu0 %v432, 32
    %v1163 = vpop.permute.xlu0 %1162
    %v1165 = vsel %vm435, %v1161, 0
    %v1168 = vsel %vm435, %v1163, 0
    %1170 = vmatprep.subr.bf16.mxu0 0
    %1171 = vmatpush1.bf16.xpose.msra.mxu0 0
    %1172 = vmatprep.subr.bf16.mxu0 0
    %1173 = vmatpush1.bf16.xpose.msra.mxu0 0
    %1174 = vmatprep.subr.bf16.mxu0 0
    %1175 = vmatpush1.bf16.xpose.msra.mxu0 0
    %1176 = vmatprep.subr.bf16.mxu0 0
    %1177 = vmatpush1.bf16.xpose.msra.mxu0 0
    %1178 = vmatprep.subr.bf16.mxu0 0
    %1179 = vmatpush1.bf16.xpose.msra.mxu0 0
    %1180 = vmatprep.subr.bf16.mxu0 0
    %1181 = vmatpush1.bf16.xpose.msra.mxu0 0
    %1182 = vmatprep.subr.bf16.mxu0 0
    %1183 = vmatpush1.bf16.xpose.msra.mxu0 0
    %1184 = vmatprep.subr.bf16.mxu0 0
    %1185 = vmatpush1.bf16.xpose.msra.mxu0 %v1168
    %1186 = vmatprep.subr.bf16.mxu0 0
    %1187 = vmatpush2.bf16.xpose.msra.mxu0 0
    %1188 = vmatprep.subr.bf16.mxu0 0
    %1189 = vmatpush2.bf16.xpose.msra.mxu0 0
    %1190 = vmatprep.subr.bf16.mxu0 0
    %1191 = vmatpush2.bf16.xpose.msra.mxu0 0
    %1192 = vmatprep.subr.bf16.mxu0 0
    %1193 = vmatpush2.bf16.xpose.msra.mxu0 0
    %1194 = vmatprep.subr.bf16.mxu0 0
    %1195 = vmatpush2.bf16.xpose.msra.mxu0 0
    %1196 = vmatprep.subr.bf16.mxu0 0
    %1197 = vmatpush2.bf16.xpose.msra.mxu0 0
    %1198 = vmatprep.subr.bf16.mxu0 0
    %1199 = vmatpush2.bf16.xpose.msra.mxu0 0
    %1200 = vmatprep.subr.bf16.mxu0 0
    %1201 = vmatpush2.bf16.xpose.msra.mxu0 0
    %1202 = vmatprep.mubr.bf16.mxu0 0
    %1203 = vmatmul.mubr.bf16.gmra.mxu0 %v1165
    %v1204 = vpop.f32.mrf.mxu0
    %v1205 = vadd.f32 0.0, %v1204
    %v1206 = vpop.f32.mrf.mxu0
    %v1207 = vpop.f32.mrf.mxu0
    %v1208 = vpop.f32.mrf.mxu0
    %1209 = vdwg.mxu0
    %v1210 = vsel %vm538, -1e+09, %v1155
    %v1211 = vsel %vm539, -1e+09, %v1205
    %v1212 = vsel %vm542, %v1210, -inf
    %1213 = vmax.xlane.f32.xlu0 %v1212
    %v1214 = vpop.xlane.xlu0 %1213
    %v1215 = vsel %vm542, %v1211, -inf
    %1216 = vmax.xlane.f32.xlu0 %v1215
    %v1217 = vpop.xlane.xlu0 %1216
    %v1218 = vsub.f32 %v1210, %v1214
    %v1219 = vsub.f32 %v1211, %v1217
    %v1220 = vmul.f32 %v1218, 1.442695
    %v1221 = vpow.pop %v1220
    %v1222 = vmul.f32 %v1219, 1.442695
    %v1223 = vpow.pop %v1222
    %v1224 = vsel %vm542, %v1221, 0.0
    %1225 = vadd.xlane.f32.xlu0 %v1224
    %v1226 = vpop.xlane.xlu0 %1225
    %v1227 = vsel %vm542, %v1223, 0.0
    %1228 = vadd.xlane.f32.xlu0 %v1227
    %v1229 = vpop.xlane.xlu0 %1228
    %v1230 = vrcp.pop %v1226
    %v1231 = vrcp.pop %v1229
    %v1232 = vmul.f32 %v1221, %v1230
    %v1233 = vmul.f32 %v1223, %v1231
    %v1234 = vpack.c.bf16 %v1232, %v1232
    %v1235 = vpack.c.bf16 %v1233, %v1233
    %1236 = vrot.lane.b32.xlu0 %v433, 32
    %v1237 = vpop.permute.xlu0 %1236
    %v1239 = vsel %vm542, %v1234, 0
    %v1242 = vsel %vm570, %v1237, 0
    %1244 = vmatprep.subr.bf16.mxu0 0
    %1245 = vmatpush1.bf16.msra.mxu0 0
    %1246 = vmatprep.subr.bf16.mxu0 0
    %1247 = vmatpush1.bf16.msra.mxu0 0
    %1248 = vmatprep.subr.bf16.mxu0 0
    %1249 = vmatpush1.bf16.msra.mxu0 0
    %1250 = vmatprep.subr.bf16.mxu0 0
    %1251 = vmatpush1.bf16.msra.mxu0 0
    %1252 = vmatprep.subr.bf16.mxu0 0
    %1253 = vmatpush1.bf16.msra.mxu0 0
    %1254 = vmatprep.subr.bf16.mxu0 0
    %1255 = vmatpush1.bf16.msra.mxu0 0
    %1256 = vmatprep.subr.bf16.mxu0 0
    %1257 = vmatpush1.bf16.msra.mxu0 0
    %1258 = vmatprep.subr.bf16.mxu0 0
    %1259 = vmatpush1.bf16.msra.mxu0 %v1242
    %1260 = vmatprep.subr.bf16.mxu0 0
    %1261 = vmatpush2.bf16.msra.mxu0 0
    %1262 = vmatprep.subr.bf16.mxu0 0
    %1263 = vmatpush2.bf16.msra.mxu0 0
    %1264 = vmatprep.subr.bf16.mxu0 0
    %1265 = vmatpush2.bf16.msra.mxu0 0
    %1266 = vmatprep.subr.bf16.mxu0 0
    %1267 = vmatpush2.bf16.msra.mxu0 0
    %1268 = vmatprep.subr.bf16.mxu0 0
    %1269 = vmatpush2.bf16.msra.mxu0 0
    %1270 = vmatprep.subr.bf16.mxu0 0
    %1271 = vmatpush2.bf16.msra.mxu0 0
    %1272 = vmatprep.subr.bf16.mxu0 0
    %1273 = vmatpush2.bf16.msra.mxu0 0
    %1274 = vmatprep.subr.bf16.mxu0 0
    %1275 = vmatpush2.bf16.msra.mxu0 0
    %1276 = vmatprep.mubr.bf16.mxu0 0
    %1277 = vmatmul.mubr.bf16.gmra.mxu0 %v1239
    %v1278 = vpop.f32.mrf.mxu0
    %v1279 = vadd.f32 0.0, %v1278
    %v1280 = vpop.f32.mrf.mxu0
    %v1281 = vpop.f32.mrf.mxu0
    %v1282 = vpop.f32.mrf.mxu0
    %1283 = vdwg.mxu0
    %1284 = vrot.lane.b32.xlu0 %v434, 32
    %v1285 = vpop.permute.xlu0 %1284
    %v1287 = vsel %vm542, %v1235, 0
    %v1290 = vsel %vm570, %v1285, 0
    %1292 = vmatprep.subr.bf16.mxu0 0
    %1293 = vmatpush1.bf16.msra.mxu0 0
    %1294 = vmatprep.subr.bf16.mxu0 0
    %1295 = vmatpush1.bf16.msra.mxu0 0
    %1296 = vmatprep.subr.bf16.mxu0 0
    %1297 = vmatpush1.bf16.msra.mxu0 0
    %1298 = vmatprep.subr.bf16.mxu0 0
    %1299 = vmatpush1.bf16.msra.mxu0 0
    %1300 = vmatprep.subr.bf16.mxu0 0
    %1301 = vmatpush1.bf16.msra.mxu0 0
    %1302 = vmatprep.subr.bf16.mxu0 0
    %1303 = vmatpush1.bf16.msra.mxu0 0
    %1304 = vmatprep.subr.bf16.mxu0 0
    %1305 = vmatpush1.bf16.msra.mxu0 0
    %1306 = vmatprep.subr.bf16.mxu0 0
    %1307 = vmatpush1.bf16.msra.mxu0 %v1290
    %1308 = vmatprep.subr.bf16.mxu0 0
    %1309 = vmatpush2.bf16.msra.mxu0 0
    %1310 = vmatprep.subr.bf16.mxu0 0
    %1311 = vmatpush2.bf16.msra.mxu0 0
    %1312 = vmatprep.subr.bf16.mxu0 0
    %1313 = vmatpush2.bf16.msra.mxu0 0
    %1314 = vmatprep.subr.bf16.mxu0 0
    %1315 = vmatpush2.bf16.msra.mxu0 0
    %1316 = vmatprep.subr.bf16.mxu0 0
    %1317 = vmatpush2.bf16.msra.mxu0 0
    %1318 = vmatprep.subr.bf16.mxu0 0
    %1319 = vmatpush2.bf16.msra.mxu0 0
    %1320 = vmatprep.subr.bf16.mxu0 0
    %1321 = vmatpush2.bf16.msra.mxu0 0
    %1322 = vmatprep.subr.bf16.mxu0 0
    %1323 = vmatpush2.bf16.msra.mxu0 0
    %1324 = vmatprep.mubr.bf16.mxu0 0
    %1325 = vmatmul.mubr.bf16.gmra.mxu0 %v1287
    %v1326 = vpop.f32.mrf.mxu0
    %v1327 = vadd.f32 0.0, %v1326
    %v1328 = vpop.f32.mrf.mxu0
    %v1329 = vpop.f32.mrf.mxu0
    %v1330 = vpop.f32.mrf.mxu0
    %1331 = vdwg.mxu0
    %1334 = vrot.lane.b32.xlu0 %v834, 32
    %v1335 = vpop.permute.xlu0 %1334
    %1336 = vrot.lane.b32.xlu0 %v883, 32
    %v1337 = vpop.permute.xlu0 %1336
    %1342 = vrot.lane.b32.xlu0 %v1057, 64
    %v1343 = vpop.permute.xlu0 %1342
    %1344 = vrot.lane.b32.xlu0 %v1105, 64
    %v1345 = vpop.permute.xlu0 %1344
    %1350 = vrot.lane.b32.xlu0 %v1279, 96
    %v1351 = vpop.permute.xlu0 %1350
    %1352 = vrot.lane.b32.xlu0 %v1327, 96
    %v1353 = vpop.permute.xlu0 %1352
    %v1356 = vsel %vm435, %v609, %v1335
    %v1357 = vsel %vm435, %v655, %v1337
    %vm1358 = vcmask 523264
    %v1359 = vsel %vm1358, %v1356, %v1343
    %v1360 = vsel %vm1358, %v1357, %v1345
    %vm1361 = vcmask 785408
    %v1362 = vsel %vm1361, %v1359, %v1351
    %v1363 = vsel %vm1361, %v1360, %v1353
    %v1364 = vld [vmem:[%s9] sm:$0xf]
    %v1365 = vld [vmem:[%s9 + $0x4] sm:$0xf]
    %v1366 = vld [vmem:[%s9 + $0x8] sm:$0xf]
    %v1367 = vld [vmem:[%s9 + $0xc] sm:$0xf]
    %v1368 = vld [vmem:[%s9 + $0x10] sm:$0xf]
    %v1369 = vld [vmem:[%s9 + $0x14] sm:$0xf]
    %v1370 = vld [vmem:[%s9 + $0x18] sm:$0xf]
    %v1371 = vld [vmem:[%s9 + $0x1c] sm:$0xf]
    %v1372 = vld [vmem:[%s9 + $0x20] sm:$0xf]
    %v1373 = vld [vmem:[%s9 + $0x24] sm:$0xf]
    %v1374 = vld [vmem:[%s9 + $0x28] sm:$0xf]
    %v1375 = vld [vmem:[%s9 + $0x2c] sm:$0xf]
    %v1376 = vld [vmem:[%s9 + $0x30] sm:$0xf]
    %v1377 = vld [vmem:[%s9 + $0x34] sm:$0xf]
    %v1378 = vld [vmem:[%s9 + $0x38] sm:$0xf]
    %v1379 = vld [vmem:[%s9 + $0x3c] sm:$0xf]
    %v1380 = vpack.c.bf16 %v1363, %v1362
    %v1381 = vld [vmem:[%s10] sm:$0x1]
    %v1383 = vlaneseq
    %v1384 = vshrl.u32 %v1383, 7
    %v1385 = vsub.s32 0, %v1384
    %v1386 = vrot.slane %v1381, %v1385
    %v1404 = vunpack.c.l.b16 %v1364
    %v1405 = vunpack.c.l.b16 %v1365
    %v1406 = vunpack.c.l.b16 %v1366
    %v1407 = vunpack.c.l.b16 %v1367
    %v1408 = vunpack.c.l.b16 %v1368
    %v1409 = vunpack.c.l.b16 %v1369
    %v1410 = vunpack.c.l.b16 %v1370
    %v1411 = vunpack.c.l.b16 %v1371
    %v1412 = vunpack.c.l.b16 %v1372
    %v1413 = vunpack.c.l.b16 %v1373
    %v1414 = vunpack.c.l.b16 %v1374
    %v1415 = vunpack.c.l.b16 %v1375
    %v1416 = vunpack.c.l.b16 %v1376
    %v1417 = vunpack.c.l.b16 %v1377
    %v1418 = vunpack.c.l.b16 %v1378
    %v1419 = vunpack.c.l.b16 %v1379
    %v1420 = vpack.c.b16 %v1405, %v1404
    %v1421 = vpack.c.b16 %v1407, %v1406
    %v1422 = vpack.c.b16 %v1409, %v1408
    %v1423 = vpack.c.b16 %v1411, %v1410
    %v1424 = vpack.c.b16 %v1413, %v1412
    %v1425 = vpack.c.b16 %v1415, %v1414
    %v1426 = vpack.c.b16 %v1417, %v1416
    %v1427 = vpack.c.b16 %v1419, %v1418
    %1436 = vmatprep.subr.bf16.mxu0 0
    %1437 = vmatpush1.bf16.msra.mxu0 %v1427
    %1438 = vmatprep.subr.bf16.mxu0 0
    %1439 = vmatpush1.bf16.msra.mxu0 %v1426
    %1440 = vmatprep.subr.bf16.mxu0 0
    %1441 = vmatpush1.bf16.msra.mxu0 %v1425
    %1442 = vmatprep.subr.bf16.mxu0 0
    %1443 = vmatpush1.bf16.msra.mxu0 %v1424
    %1444 = vmatprep.subr.bf16.mxu0 0
    %1445 = vmatpush1.bf16.msra.mxu0 %v1423
    %1446 = vmatprep.subr.bf16.mxu0 0
    %1447 = vmatpush1.bf16.msra.mxu0 %v1422
    %1448 = vmatprep.subr.bf16.mxu0 0
    %1449 = vmatpush1.bf16.msra.mxu0 %v1421
    %1450 = vmatprep.subr.bf16.mxu0 0
    %1451 = vmatpush1.bf16.msra.mxu0 %v1420
    %1452 = vmatprep.subr.bf16.mxu0 0
    %1453 = vmatpush2.bf16.msra.mxu0 0
    %1454 = vmatprep.subr.bf16.mxu0 0
    %1455 = vmatpush2.bf16.msra.mxu0 0
    %1456 = vmatprep.subr.bf16.mxu0 0
    %1457 = vmatpush2.bf16.msra.mxu0 0
    %1458 = vmatprep.subr.bf16.mxu0 0
    %1459 = vmatpush2.bf16.msra.mxu0 0
    %1460 = vmatprep.subr.bf16.mxu0 0
    %1461 = vmatpush2.bf16.msra.mxu0 0
    %1462 = vmatprep.subr.bf16.mxu0 0
    %1463 = vmatpush2.bf16.msra.mxu0 0
    %1464 = vmatprep.subr.bf16.mxu0 0
    %1465 = vmatpush2.bf16.msra.mxu0 0
    %1466 = vmatprep.subr.bf16.mxu0 0
    %1467 = vmatpush2.bf16.msra.mxu0 0
    %1468 = vmatprep.mubr.bf16.mxu0 0
    %1469 = vmatmul.mubr.bf16.gmra.mxu0 %v1380
    %v1470 = vpop.f32.mrf.mxu0
    %v1471 = vadd.f32 %v1386, %v1470
    %v1472 = vpop.f32.mrf.mxu0
    %v1473 = vpop.f32.mrf.mxu0
    %v1474 = vadd.f32 %v1386, %v1473
    %v1475 = vpop.f32.mrf.mxu0
    %1476 = vdwg.mxu0
    %v1477 = vadd.f32 %v1471, %v159
    %v1478 = vadd.f32 %v1474, %v160
    %v1479 = vld [vmem:[%s11] sm:$0x1]
    %v1480 = vld [vmem:[%s12] sm:$0x1]
    %1481 = vadd.xlane.f32.xlu0 %v1477
    %v1482 = vpop.xlane.xlu0 %1481
    %1483 = vadd.xlane.f32.xlu0 %v1478
    %v1484 = vpop.xlane.xlu0 %1483
    %v1485 = vmul.f32 %v1482, %v126
    %v1486 = vmul.f32 %v1484, %v126
    %v1487 = vsub.f32 %v1477, %v1485
    %v1488 = vsub.f32 %v1478, %v1486
    %v1489 = vmul.f32 %v1487, %v1487
    %v1490 = vmul.f32 %v1488, %v1488
    %1491 = vadd.xlane.f32.xlu0 %v1489
    %v1492 = vpop.xlane.xlu0 %1491
    %1493 = vadd.xlane.f32.xlu0 %v1490
    %v1494 = vpop.xlane.xlu0 %1493
    %v1495 = vmul.f32 %v1492, %v126
    %v1496 = vmul.f32 %v1494, %v126
    %v1497 = vadd.f32 %v1495, 1e-05
    %v1498 = vadd.f32 %v1496, 1e-05
    %v1499 = vrsqrt.pop %v1497
    %v1500 = vrsqrt.pop %v1498
    %v1501 = vmul.f32 %v1487, %v1499
    %v1502 = vmul.f32 %v1488, %v1500
    %v1504 = vlaneseq
    %v1505 = vshrl.u32 %v1504, 7
    %v1506 = vsub.s32 0, %v1505
    %v1507 = vrot.slane %v1479, %v1506
    %v1509 = vmul.f32 %v1501, %v1507
    %v1510 = vmul.f32 %v1502, %v1507
    %v1512 = vlaneseq
    %v1513 = vshrl.u32 %v1512, 7
    %v1514 = vsub.s32 0, %v1513
    %v1515 = vrot.slane %v1480, %v1514
    %v1517 = vadd.f32 %v1509, %v1515
    %v1518 = vadd.f32 %v1510, %v1515
    %v1519 = vld [vmem:[#allocation2] sm:$0xff]
    %v1520 = vld [vmem:[#allocation2 + $0x8] sm:$0xff]
    %v1521 = vld [vmem:[#allocation2 + $0x10] sm:$0xff]
    %v1522 = vld [vmem:[#allocation2 + $0x18] sm:$0xff]
    %v1523 = vld [vmem:[#allocation2 + $0x20] sm:$0xff]
    %v1524 = vld [vmem:[#allocation2 + $0x28] sm:$0xff]
    %v1525 = vld [vmem:[#allocation2 + $0x30] sm:$0xff]
    %v1526 = vld [vmem:[#allocation2 + $0x38] sm:$0xff]
    %v1527 = vld [vmem:[#allocation2 + $0x40] sm:$0xff]
    %v1528 = vld [vmem:[#allocation2 + $0x48] sm:$0xff]
    %v1529 = vld [vmem:[#allocation2 + $0x50] sm:$0xff]
    %v1530 = vld [vmem:[#allocation2 + $0x58] sm:$0xff]
    %v1531 = vld [vmem:[#allocation2 + $0x60] sm:$0xff]
    %v1532 = vld [vmem:[#allocation2 + $0x68] sm:$0xff]
    %v1533 = vld [vmem:[#allocation2 + $0x70] sm:$0xff]
    %v1534 = vld [vmem:[#allocation2 + $0x78] sm:$0xff]
    %v1535 = vpack.c.bf16 %v1518, %v1517
    %v1536 = vld [vmem:[%s14] sm:$0x3]
    %v1538 = vlaneseq
    %v1539 = vshrl.u32 %v1538, 7
    %v1540 = vsub.s32 0, %v1539
    %v1541 = vrot.slane %v1536, %v1540
    %v1542 = vlaneseq
    %v1543 = vshrl.u32 %v1542, 7
    %v1544 = vsub.s32 1, %v1543
    %v1545 = vrot.slane %v1536, %v1544
    %v1564 = vunpack.c.l.b16 %v1519
    %v1565 = vunpack.c.h.b16 %v1519
    %v1566 = vunpack.c.l.b16 %v1520
    %v1567 = vunpack.c.h.b16 %v1520
    %v1568 = vunpack.c.l.b16 %v1521
    %v1569 = vunpack.c.h.b16 %v1521
    %v1570 = vunpack.c.l.b16 %v1522
    %v1571 = vunpack.c.h.b16 %v1522
    %v1572 = vunpack.c.l.b16 %v1523
    %v1573 = vunpack.c.h.b16 %v1523
    %v1574 = vunpack.c.l.b16 %v1524
    %v1575 = vunpack.c.h.b16 %v1524
    %v1576 = vunpack.c.l.b16 %v1525
    %v1577 = vunpack.c.h.b16 %v1525
    %v1578 = vunpack.c.l.b16 %v1526
    %v1579 = vunpack.c.h.b16 %v1526
    %v1580 = vunpack.c.l.b16 %v1527
    %v1581 = vunpack.c.h.b16 %v1527
    %v1582 = vunpack.c.l.b16 %v1528
    %v1583 = vunpack.c.h.b16 %v1528
    %v1584 = vunpack.c.l.b16 %v1529
    %v1585 = vunpack.c.h.b16 %v1529
    %v1586 = vunpack.c.l.b16 %v1530
    %v1587 = vunpack.c.h.b16 %v1530
    %v1588 = vunpack.c.l.b16 %v1531
    %v1589 = vunpack.c.h.b16 %v1531
    %v1590 = vunpack.c.l.b16 %v1532
    %v1591 = vunpack.c.h.b16 %v1532
    %v1592 = vunpack.c.l.b16 %v1533
    %v1593 = vunpack.c.h.b16 %v1533
    %v1594 = vunpack.c.l.b16 %v1534
    %v1595 = vunpack.c.h.b16 %v1534
    %v1596 = vpack.c.b16 %v1566, %v1564
    %v1597 = vpack.c.b16 %v1567, %v1565
    %v1598 = vpack.c.b16 %v1570, %v1568
    %v1599 = vpack.c.b16 %v1571, %v1569
    %v1600 = vpack.c.b16 %v1574, %v1572
    %v1601 = vpack.c.b16 %v1575, %v1573
    %v1602 = vpack.c.b16 %v1578, %v1576
    %v1603 = vpack.c.b16 %v1579, %v1577
    %v1604 = vpack.c.b16 %v1582, %v1580
    %v1605 = vpack.c.b16 %v1583, %v1581
    %v1606 = vpack.c.b16 %v1586, %v1584
    %v1607 = vpack.c.b16 %v1587, %v1585
    %v1608 = vpack.c.b16 %v1590, %v1588
    %v1609 = vpack.c.b16 %v1591, %v1589
    %v1610 = vpack.c.b16 %v1594, %v1592
    %v1611 = vpack.c.b16 %v1595, %v1593
    %1628 = vmatprep.subr.bf16.mxu0 %v1611
    %1629 = vmatpush1.bf16.msra.mxu0 %v1610
    %1630 = vmatprep.subr.bf16.mxu0 %v1609
    %1631 = vmatpush1.bf16.msra.mxu0 %v1608
    %1632 = vmatprep.subr.bf16.mxu0 %v1607
    %1633 = vmatpush1.bf16.msra.mxu0 %v1606
    %1634 = vmatprep.subr.bf16.mxu0 %v1605
    %1635 = vmatpush1.bf16.msra.mxu0 %v1604
    %1636 = vmatprep.subr.bf16.mxu0 %v1603
    %1637 = vmatpush1.bf16.msra.mxu0 %v1602
    %1638 = vmatprep.subr.bf16.mxu0 %v1601
    %1639 = vmatpush1.bf16.msra.mxu0 %v1600
    %1640 = vmatprep.subr.bf16.mxu0 %v1599
    %1641 = vmatpush1.bf16.msra.mxu0 %v1598
    %1642 = vmatprep.subr.bf16.mxu0 %v1597
    %1643 = vmatpush1.bf16.msra.mxu0 %v1596
    %1644 = vmatprep.subr.bf16.mxu0 0
    %1645 = vmatpush2.bf16.msra.mxu0 0
    %1646 = vmatprep.subr.bf16.mxu0 0
    %1647 = vmatpush2.bf16.msra.mxu0 0
    %1648 = vmatprep.subr.bf16.mxu0 0
    %1649 = vmatpush2.bf16.msra.mxu0 0
    %1650 = vmatprep.subr.bf16.mxu0 0
    %1651 = vmatpush2.bf16.msra.mxu0 0
    %1652 = vmatprep.subr.bf16.mxu0 0
    %1653 = vmatpush2.bf16.msra.mxu0 0
    %1654 = vmatprep.subr.bf16.mxu0 0
    %1655 = vmatpush2.bf16.msra.mxu0 0
    %1656 = vmatprep.subr.bf16.mxu0 0
    %1657 = vmatpush2.bf16.msra.mxu0 0
    %1658 = vmatprep.subr.bf16.mxu0 0
    %1659 = vmatpush2.bf16.msra.mxu0 0
    %1660 = vmatprep.mubr.bf16.mxu0 0
    %1661 = vmatmul.mubr.bf16.gmra.mxu0 %v1535
    %v1662 = vpop.f32.mrf.mxu0
    %v1663 = vadd.f32 %v1541, %v1662
    %v1664 = vpop.f32.mrf.mxu0
    %v1665 = vadd.f32 %v1545, %v1664
    %v1666 = vpop.f32.mrf.mxu0
    %v1667 = vadd.f32 %v1541, %v1666
    %v1668 = vpop.f32.mrf.mxu0
    %v1669 = vadd.f32 %v1545, %v1668
    %1670 = vdwg.mxu0
    %v1671 = vmul.f32 %v1663, 0.5
    %v1672 = vmul.f32 %v1665, 0.5
    %v1673 = vmul.f32 %v1667, 0.5
    %v1674 = vmul.f32 %v1669, 0.5
    %v1675 = vmul.f32 %v1663, 0.044715
    %v1676 = vmul.f32 %v1665, 0.044715
    %v1677 = vmul.f32 %v1667, 0.044715
    %v1678 = vmul.f32 %v1669, 0.044715
    %v1679 = vmul.f32 %v1675, %v1663
    %v1680 = vmul.f32 %v1676, %v1665
    %v1681 = vmul.f32 %v1677, %v1667
    %v1682 = vmul.f32 %v1678, %v1669
    %v1683 = vmul.f32 %v1679, %v1663
    %v1684 = vmul.f32 %v1680, %v1665
    %v1685 = vmul.f32 %v1681, %v1667
    %v1686 = vmul.f32 %v1682, %v1669
    %v1687 = vadd.f32 %v1663, %v1683
    %v1688 = vadd.f32 %v1665, %v1684
    %v1689 = vadd.f32 %v1667, %v1685
    %v1690 = vadd.f32 %v1669, %v1686
    %v1691 = vmul.f32 %v1687, 0.7978846
    %v1692 = vmul.f32 %v1688, 0.7978846
    %v1693 = vmul.f32 %v1689, 0.7978846
    %v1694 = vmul.f32 %v1690, 0.7978846
    %v1695 = vtanh.pop %v1691
    %v1696 = vtanh.pop %v1692
    %v1697 = vtanh.pop %v1693
    %v1698 = vtanh.pop %v1694
    %v1699 = vadd.f32 %v1695, 1.0
    %v1700 = vadd.f32 %v1696, 1.0
    %v1701 = vadd.f32 %v1697, 1.0
    %v1702 = vadd.f32 %v1698, 1.0
    %v1703 = vmul.f32 %v1671, %v1699
    %v1704 = vmul.f32 %v1672, %v1700
    %v1705 = vmul.f32 %v1673, %v1701
    %v1706 = vmul.f32 %v1674, %v1702
    %v1707 = vld [vmem:[#allocation5] sm:$0xf]
    %v1708 = vld [vmem:[#allocation5 + $0x4] sm:$0xf]
    %v1709 = vld [vmem:[#allocation5 + $0x8] sm:$0xf]
    %v1710 = vld [vmem:[#allocation5 + $0xc] sm:$0xf]
    %v1711 = vld [vmem:[#allocation5 + $0x10] sm:$0xf]
    %v1712 = vld [vmem:[#allocation5 + $0x14] sm:$0xf]
    %v1713 = vld [vmem:[#allocation5 + $0x18] sm:$0xf]
    %v1714 = vld [vmem:[#allocation5 + $0x1c] sm:$0xf]
    %v1715 = vld [vmem:[#allocation5 + $0x20] sm:$0xf]
    %v1716 = vld [vmem:[#allocation5 + $0x24] sm:$0xf]
    %v1717 = vld [vmem:[#allocation5 + $0x28] sm:$0xf]
    %v1718 = vld [vmem:[#allocation5 + $0x2c] sm:$0xf]
    %v1719 = vld [vmem:[#allocation5 + $0x30] sm:$0xf]
    %v1720 = vld [vmem:[#allocation5 + $0x34] sm:$0xf]
    %v1721 = vld [vmem:[#allocation5 + $0x38] sm:$0xf]
    %v1722 = vld [vmem:[#allocation5 + $0x3c] sm:$0xf]
    %v1723 = vld [vmem:[#allocation5 + $0x40] sm:$0xf]
    %v1724 = vld [vmem:[#allocation5 + $0x44] sm:$0xf]
    %v1725 = vld [vmem:[#allocation5 + $0x48] sm:$0xf]
    %v1726 = vld [vmem:[#allocation5 + $0x4c] sm:$0xf]
    %v1727 = vld [vmem:[#allocation5 + $0x50] sm:$0xf]
    %v1728 = vld [vmem:[#allocation5 + $0x54] sm:$0xf]
    %v1729 = vld [vmem:[#allocation5 + $0x58] sm:$0xf]
    %v1730 = vld [vmem:[#allocation5 + $0x5c] sm:$0xf]
    %v1731 = vld [vmem:[#allocation5 + $0x60] sm:$0xf]
    %v1732 = vld [vmem:[#allocation5 + $0x64] sm:$0xf]
    %v1733 = vld [vmem:[#allocation5 + $0x68] sm:$0xf]
    %v1734 = vld [vmem:[#allocation5 + $0x6c] sm:$0xf]
    %v1735 = vld [vmem:[#allocation5 + $0x70] sm:$0xf]
    %v1736 = vld [vmem:[#allocation5 + $0x74] sm:$0xf]
    %v1737 = vld [vmem:[#allocation5 + $0x78] sm:$0xf]
    %v1738 = vld [vmem:[#allocation5 + $0x7c] sm:$0xf]
    %v1739 = vpack.c.bf16 %v1705, %v1703
    %v1740 = vpack.c.bf16 %v1706, %v1704
    %v1741 = vld [vmem:[%s16] sm:$0x1]
    %v1743 = vlaneseq
    %v1744 = vshrl.u32 %v1743, 7
    %v1745 = vsub.s32 0, %v1744
    %v1746 = vrot.slane %v1741, %v1745
    %v1780 = vunpack.c.l.b16 %v1707
    %v1781 = vunpack.c.l.b16 %v1708
    %v1782 = vunpack.c.l.b16 %v1709
    %v1783 = vunpack.c.l.b16 %v1710
    %v1784 = vunpack.c.l.b16 %v1711
    %v1785 = vunpack.c.l.b16 %v1712
    %v1786 = vunpack.c.l.b16 %v1713
    %v1787 = vunpack.c.l.b16 %v1714
    %v1788 = vunpack.c.l.b16 %v1715
    %v1789 = vunpack.c.l.b16 %v1716
    %v1790 = vunpack.c.l.b16 %v1717
    %v1791 = vunpack.c.l.b16 %v1718
    %v1792 = vunpack.c.l.b16 %v1719
    %v1793 = vunpack.c.l.b16 %v1720
    %v1794 = vunpack.c.l.b16 %v1721
    %v1795 = vunpack.c.l.b16 %v1722
    %v1796 = vunpack.c.l.b16 %v1723
    %v1797 = vunpack.c.l.b16 %v1724
    %v1798 = vunpack.c.l.b16 %v1725
    %v1799 = vunpack.c.l.b16 %v1726
    %v1800 = vunpack.c.l.b16 %v1727
    %v1801 = vunpack.c.l.b16 %v1728
    %v1802 = vunpack.c.l.b16 %v1729
    %v1803 = vunpack.c.l.b16 %v1730
    %v1804 = vunpack.c.l.b16 %v1731
    %v1805 = vunpack.c.l.b16 %v1732
    %v1806 = vunpack.c.l.b16 %v1733
    %v1807 = vunpack.c.l.b16 %v1734
    %v1808 = vunpack.c.l.b16 %v1735
    %v1809 = vunpack.c.l.b16 %v1736
    %v1810 = vunpack.c.l.b16 %v1737
    %v1811 = vunpack.c.l.b16 %v1738
    %v1812 = vpack.c.b16 %v1781, %v1780
    %v1813 = vpack.c.b16 %v1783, %v1782
    %v1814 = vpack.c.b16 %v1785, %v1784
    %v1815 = vpack.c.b16 %v1787, %v1786
    %v1816 = vpack.c.b16 %v1789, %v1788
    %v1817 = vpack.c.b16 %v1791, %v1790
    %v1818 = vpack.c.b16 %v1793, %v1792
    %v1819 = vpack.c.b16 %v1795, %v1794
    %v1820 = vpack.c.b16 %v1797, %v1796
    %v1821 = vpack.c.b16 %v1799, %v1798
    %v1822 = vpack.c.b16 %v1801, %v1800
    %v1823 = vpack.c.b16 %v1803, %v1802
    %v1824 = vpack.c.b16 %v1805, %v1804
    %v1825 = vpack.c.b16 %v1807, %v1806
    %v1826 = vpack.c.b16 %v1809, %v1808
    %v1827 = vpack.c.b16 %v1811, %v1810
    %1844 = vmatprep.subr.bf16.mxu0 0
    %1845 = vmatpush1.bf16.msra.mxu0 %v1819
    %1846 = vmatprep.subr.bf16.mxu0 0
    %1847 = vmatpush1.bf16.msra.mxu0 %v1818
    %1848 = vmatprep.subr.bf16.mxu0 0
    %1849 = vmatpush1.bf16.msra.mxu0 %v1817
    %1850 = vmatprep.subr.bf16.mxu0 0
    %1851 = vmatpush1.bf16.msra.mxu0 %v1816
    %1852 = vmatprep.subr.bf16.mxu0 0
    %1853 = vmatpush1.bf16.msra.mxu0 %v1815
    %1854 = vmatprep.subr.bf16.mxu0 0
    %1855 = vmatpush1.bf16.msra.mxu0 %v1814
    %1856 = vmatprep.subr.bf16.mxu0 0
    %1857 = vmatpush1.bf16.msra.mxu0 %v1813
    %1858 = vmatprep.subr.bf16.mxu0 0
    %1859 = vmatpush1.bf16.msra.mxu0 %v1812
    %1860 = vmatprep.subr.bf16.mxu0 0
    %1861 = vmatpush2.bf16.msra.mxu0 %v1827
    %1862 = vmatprep.subr.bf16.mxu0 0
    %1863 = vmatpush2.bf16.msra.mxu0 %v1826
    %1864 = vmatprep.subr.bf16.mxu0 0
    %1865 = vmatpush2.bf16.msra.mxu0 %v1825
    %1866 = vmatprep.subr.bf16.mxu0 0
    %1867 = vmatpush2.bf16.msra.mxu0 %v1824
    %1868 = vmatprep.subr.bf16.mxu0 0
    %1869 = vmatpush2.bf16.msra.mxu0 %v1823
    %1870 = vmatprep.subr.bf16.mxu0 0
    %1871 = vmatpush2.bf16.msra.mxu0 %v1822
    %1872 = vmatprep.subr.bf16.mxu0 0
    %1873 = vmatpush2.bf16.msra.mxu0 %v1821
    %1874 = vmatprep.subr.bf16.mxu0 0
    %1875 = vmatpush2.bf16.msra.mxu0 %v1820
    %1876 = vmatprep.mubr.bf16.mxu0 %v1740
    %1877 = vmatmul.mubr.bf16.gmra.mxu0 %v1739
    %v1878 = vpop.f32.mrf.mxu0
    %v1879 = vadd.f32 %v1746, %v1878
    %v1880 = vpop.f32.mrf.mxu0
    %v1881 = vpop.f32.mrf.mxu0
    %v1882 = vadd.f32 %v1746, %v1881
    %v1883 = vpop.f32.mrf.mxu0
    %1884 = vdwg.mxu0
    %s1885 = scalar_lea.vmem %s7, 192
    %v1886 = vld [vmem:[%s1885] sm:$0xff]
    %v1887 = vld [vmem:[%s1885 + $0x8] sm:$0xf]
    %v1888 = vld [vmem:[%s1885 + $0xc] sm:$0xff]
    %v1889 = vld [vmem:[%s1885 + $0x14] sm:$0xf]
    %v1890 = vld [vmem:[%s1885 + $0x18] sm:$0xff]
    %v1891 = vld [vmem:[%s1885 + $0x20] sm:$0xf]
    %v1892 = vld [vmem:[%s1885 + $0x24] sm:$0xff]
    %v1893 = vld [vmem:[%s1885 + $0x2c] sm:$0xf]
    %v1894 = vld [vmem:[%s1885 + $0x30] sm:$0xff]
    %v1895 = vld [vmem:[%s1885 + $0x38] sm:$0xf]
    %v1896 = vld [vmem:[%s1885 + $0x3c] sm:$0xff]
    %v1897 = vld [vmem:[%s1885 + $0x44] sm:$0xf]
    %v1898 = vld [vmem:[%s1885 + $0x48] sm:$0xff]
    %v1899 = vld [vmem:[%s1885 + $0x50] sm:$0xf]
    %v1900 = vld [vmem:[%s1885 + $0x54] sm:$0xff]
    %v1901 = vld [vmem:[%s1885 + $0x5c] sm:$0xf]
    %v1902 = vld [vmem:[%s1885 + $0x60] sm:$0xff]
    %v1903 = vld [vmem:[%s1885 + $0x68] sm:$0xf]
    %v1904 = vld [vmem:[%s1885 + $0x6c] sm:$0xff]
    %v1905 = vld [vmem:[%s1885 + $0x74] sm:$0xf]
    %v1906 = vld [vmem:[%s1885 + $0x78] sm:$0xff]
    %v1907 = vld [vmem:[%s1885 + $0x80] sm:$0xf]
    %v1908 = vld [vmem:[%s1885 + $0x84] sm:$0xff]
    %v1909 = vld [vmem:[%s1885 + $0x8c] sm:$0xf]
    %v1910 = vld [vmem:[%s1885 + $0x90] sm:$0xff]
    %v1911 = vld [vmem:[%s1885 + $0x98] sm:$0xf]
    %v1912 = vld [vmem:[%s1885 + $0x9c] sm:$0xff]
    %v1913 = vld [vmem:[%s1885 + $0xa4] sm:$0xf]
    %v1914 = vld [vmem:[%s1885 + $0xa8] sm:$0xff]
    %v1915 = vld [vmem:[%s1885 + $0xb0] sm:$0xf]
    %v1916 = vld [vmem:[%s1885 + $0xb4] sm:$0xff]
    %v1917 = vld [vmem:[%s1885 + $0xbc] sm:$0xf]
    %v1918 = vpack.c.bf16 %v1882, %v1879
    %s1919 = scalar_lea.vmem %s8, 3
    %v1920 = vld [vmem:[%s1919] sm:$0x7]
    %v1922 = vlaneseq
    %v1923 = vshrl.u32 %v1922, 7
    %v1924 = vsub.s32 0, %v1923
    %v1925 = vrot.slane %v1920, %v1924
    %v1926 = vlaneseq
    %v1927 = vshrl.u32 %v1926, 7
    %v1928 = vsub.s32 1, %v1927
    %v1929 = vrot.slane %v1920, %v1928
    %v1930 = vlaneseq
    %v1931 = vshrl.u32 %v1930, 7
    %v1932 = vsub.s32 2, %v1931
    %v1933 = vrot.slane %v1920, %v1932
    %v1969 = vunpack.c.l.b16 %v1886
    %v1970 = vunpack.c.h.b16 %v1886
    %v1971 = vunpack.c.l.b16 %v1887
    %v1972 = vunpack.c.l.b16 %v1888
    %v1973 = vunpack.c.h.b16 %v1888
    %v1974 = vunpack.c.l.b16 %v1889
    %v1975 = vunpack.c.l.b16 %v1890
    %v1976 = vunpack.c.h.b16 %v1890
    %v1977 = vunpack.c.l.b16 %v1891
    %v1978 = vunpack.c.l.b16 %v1892
    %v1979 = vunpack.c.h.b16 %v1892
    %v1980 = vunpack.c.l.b16 %v1893
    %v1981 = vunpack.c.l.b16 %v1894
    %v1982 = vunpack.c.h.b16 %v1894
    %v1983 = vunpack.c.l.b16 %v1895
    %v1984 = vunpack.c.l.b16 %v1896
    %v1985 = vunpack.c.h.b16 %v1896
    %v1986 = vunpack.c.l.b16 %v1897
    %v1987 = vunpack.c.l.b16 %v1898
    %v1988 = vunpack.c.h.b16 %v1898
    %v1989 = vunpack.c.l.b16 %v1899
    %v1990 = vunpack.c.l.b16 %v1900
    %v1991 = vunpack.c.h.b16 %v1900
    %v1992 = vunpack.c.l.b16 %v1901
    %v1993 = vunpack.c.l.b16 %v1902
    %v1994 = vunpack.c.h.b16 %v1902
    %v1995 = vunpack.c.l.b16 %v1903
    %v1996 = vunpack.c.l.b16 %v1904
    %v1997 = vunpack.c.h.b16 %v1904
    %v1998 = vunpack.c.l.b16 %v1905
    %v1999 = vunpack.c.l.b16 %v1906
    %v2000 = vunpack.c.h.b16 %v1906
    %v2001 = vunpack.c.l.b16 %v1907
    %v2002 = vunpack.c.l.b16 %v1908
    %v2003 = vunpack.c.h.b16 %v1908
    %v2004 = vunpack.c.l.b16 %v1909
    %v2005 = vunpack.c.l.b16 %v1910
    %v2006 = vunpack.c.h.b16 %v1910
    %v2007 = vunpack.c.l.b16 %v1911
    %v2008 = vunpack.c.l.b16 %v1912
    %v2009 = vunpack.c.h.b16 %v1912
    %v2010 = vunpack.c.l.b16 %v1913
    %v2011 = vunpack.c.l.b16 %v1914
    %v2012 = vunpack.c.h.b16 %v1914
    %v2013 = vunpack.c.l.b16 %v1915
    %v2014 = vunpack.c.l.b16 %v1916
    %v2015 = vunpack.c.h.b16 %v1916
    %v2016 = vunpack.c.l.b16 %v1917
    %v2017 = vpack.c.b16 %v1972, %v1969
    %v2018 = vpack.c.b16 %v1973, %v1970
    %v2019 = vpack.c.b16 %v1974, %v1971
    %v2020 = vpack.c.b16 %v1978, %v1975
    %v2021 = vpack.c.b16 %v1979, %v1976
    %v2022 = vpack.c.b16 %v1980, %v1977
    %v2023 = vpack.c.b16 %v1984, %v1981
    %v2024 = vpack.c.b16 %v1985, %v1982
    %v2025 = vpack.c.b16 %v1986, %v1983
    %v2026 = vpack.c.b16 %v1990, %v1987
    %v2027 = vpack.c.b16 %v1991, %v1988
    %v2028 = vpack.c.b16 %v1992, %v1989
    %v2029 = vpack.c.b16 %v1996, %v1993
    %v2030 = vpack.c.b16 %v1997, %v1994
    %v2031 = vpack.c.b16 %v1998, %v1995
    %v2032 = vpack.c.b16 %v2002, %v1999
    %v2033 = vpack.c.b16 %v2003, %v2000
    %v2034 = vpack.c.b16 %v2004, %v2001
    %v2035 = vpack.c.b16 %v2008, %v2005
    %v2036 = vpack.c.b16 %v2009, %v2006
    %v2037 = vpack.c.b16 %v2010, %v2007
    %v2038 = vpack.c.b16 %v2014, %v2011
    %v2039 = vpack.c.b16 %v2015, %v2012
    %v2040 = vpack.c.b16 %v2016, %v2013
    %2065 = vmatprep.subr.bf16.mxu0 %v2039
    %2066 = vmatpush1.bf16.msra.mxu0 %v2038
    %2067 = vmatprep.subr.bf16.mxu0 %v2036
    %2068 = vmatpush1.bf16.msra.mxu0 %v2035
    %2069 = vmatprep.subr.bf16.mxu0 %v2033
    %2070 = vmatpush1.bf16.msra.mxu0 %v2032
    %2071 = vmatprep.subr.bf16.mxu0 %v2030
    %2072 = vmatpush1.bf16.msra.mxu0 %v2029
    %2073 = vmatprep.subr.bf16.mxu0 %v2027
    %2074 = vmatpush1.bf16.msra.mxu0 %v2026
    %2075 = vmatprep.subr.bf16.mxu0 %v2024
    %2076 = vmatpush1.bf16.msra.mxu0 %v2023
    %2077 = vmatprep.subr.bf16.mxu0 %v2021
    %2078 = vmatpush1.bf16.msra.mxu0 %v2020
    %2079 = vmatprep.subr.bf16.mxu0 %v2018
    %2080 = vmatpush1.bf16.msra.mxu0 %v2017
    %2081 = vmatprep.subr.bf16.mxu0 0
    %2082 = vmatpush2.bf16.msra.mxu0 0
    %2083 = vmatprep.subr.bf16.mxu0 0
    %2084 = vmatpush2.bf16.msra.mxu0 0
    %2085 = vmatprep.subr.bf16.mxu0 0
    %2086 = vmatpush2.bf16.msra.mxu0 0
    %2087 = vmatprep.subr.bf16.mxu0 0
    %2088 = vmatpush2.bf16.msra.mxu0 0
    %2089 = vmatprep.subr.bf16.mxu0 0
    %2090 = vmatpush2.bf16.msra.mxu0 0
    %2091 = vmatprep.subr.bf16.mxu0 0
    %2092 = vmatpush2.bf16.msra.mxu0 0
    %2093 = vmatprep.subr.bf16.mxu0 0
    %2094 = vmatpush2.bf16.msra.mxu0 0
    %2095 = vmatprep.subr.bf16.mxu0 0
    %2096 = vmatpush2.bf16.msra.mxu0 0
    %2097 = vmatprep.mubr.bf16.mxu0 0
    %2098 = vmatmul.mubr.bf16.gmra.mxu0 %v1918
    %v2099 = vpop.f32.mrf.mxu0
    %v2100 = vadd.f32 %v1925, %v2099
    %v2101 = vpop.f32.mrf.mxu0
    %v2102 = vadd.f32 %v1929, %v2101
    %v2103 = vpop.f32.mrf.mxu0
    %v2104 = vadd.f32 %v1925, %v2103
    %v2105 = vpop.f32.mrf.mxu0
    %v2106 = vadd.f32 %v1929, %v2105
    %2107 = vdwg.mxu0
    %2108 = vmatprep.subr.bf16.mxu0 0
    %2109 = vmatpush1.bf16.msra.mxu0 %v2040
    %2110 = vmatprep.subr.bf16.mxu0 0
    %2111 = vmatpush1.bf16.msra.mxu0 %v2037
    %2112 = vmatprep.subr.bf16.mxu0 0
    %2113 = vmatpush1.bf16.msra.mxu0 %v2034
    %2114 = vmatprep.subr.bf16.mxu0 0
    %2115 = vmatpush1.bf16.msra.mxu0 %v2031
    %2116 = vmatprep.subr.bf16.mxu0 0
    %2117 = vmatpush1.bf16.msra.mxu0 %v2028
    %2118 = vmatprep.subr.bf16.mxu0 0
    %2119 = vmatpush1.bf16.msra.mxu0 %v2025
    %2120 = vmatprep.subr.bf16.mxu0 0
    %2121 = vmatpush1.bf16.msra.mxu0 %v2022
    %2122 = vmatprep.subr.bf16.mxu0 0
    %2123 = vmatpush1.bf16.msra.mxu0 %v2019
    %2124 = vmatprep.subr.bf16.mxu0 0
    %2125 = vmatpush2.bf16.msra.mxu0 0
    %2126 = vmatprep.subr.bf16.mxu0 0
    %2127 = vmatpush2.bf16.msra.mxu0 0
    %2128 = vmatprep.subr.bf16.mxu0 0
    %2129 = vmatpush2.bf16.msra.mxu0 0
    %2130 = vmatprep.subr.bf16.mxu0 0
    %2131 = vmatpush2.bf16.msra.mxu0 0
    %2132 = vmatprep.subr.bf16.mxu0 0
    %2133 = vmatpush2.bf16.msra.mxu0 0
    %2134 = vmatprep.subr.bf16.mxu0 0
    %2135 = vmatpush2.bf16.msra.mxu0 0
    %2136 = vmatprep.subr.bf16.mxu0 0
    %2137 = vmatpush2.bf16.msra.mxu0 0
    %2138 = vmatprep.subr.bf16.mxu0 0
    %2139 = vmatpush2.bf16.msra.mxu0 0
    %2140 = vmatprep.mubr.bf16.mxu0 0
    %2141 = vmatmul.mubr.bf16.gmra.mxu0 %v1918
    %v2142 = vpop.f32.mrf.mxu0
    %v2143 = vadd.f32 %v1933, %v2142
    %v2144 = vpop.f32.mrf.mxu0
    %v2145 = vpop.f32.mrf.mxu0
    %v2146 = vadd.f32 %v1933, %v2145
    %v2147 = vpop.f32.mrf.mxu0
    %2148 = vdwg.mxu0
    %v2149 = vmul.f32 %v2100, 0.17677669
    %v2150 = vmul.f32 %v2104, 0.17677669
    %v2151 = vpack.c.bf16 %v2149, %v2149
    %v2152 = vpack.c.bf16 %v2150, %v2150
    %v2153 = vpack.c.bf16 %v2102, %v2102
    %v2154 = vpack.c.bf16 %v2106, %v2106
    %v2155 = vpack.c.bf16 %v2143, %v2143
    %v2156 = vpack.c.bf16 %v2146, %v2146
    %v2158 = vsel %vm435, %v2151, 0
    %v2161 = vsel %vm435, %v2153, 0
    %2163 = vmatprep.subr.bf16.mxu0 0
    %2164 = vmatpush1.bf16.xpose.msra.mxu0 0
    %2165 = vmatprep.subr.bf16.mxu0 0
    %2166 = vmatpush1.bf16.xpose.msra.mxu0 0
    %2167 = vmatprep.subr.bf16.mxu0 0
    %2168 = vmatpush1.bf16.xpose.msra.mxu0 0
    %2169 = vmatprep.subr.bf16.mxu0 0
    %2170 = vmatpush1.bf16.xpose.msra.mxu0 0
    %2171 = vmatprep.subr.bf16.mxu0 0
    %2172 = vmatpush1.bf16.xpose.msra.mxu0 0
    %2173 = vmatprep.subr.bf16.mxu0 0
    %2174 = vmatpush1.bf16.xpose.msra.mxu0 0
    %2175 = vmatprep.subr.bf16.mxu0 0
    %2176 = vmatpush1.bf16.xpose.msra.mxu0 0
    %2177 = vmatprep.subr.bf16.mxu0 0
    %2178 = vmatpush1.bf16.xpose.msra.mxu0 %v2161
    %2179 = vmatprep.subr.bf16.mxu0 0
    %2180 = vmatpush2.bf16.xpose.msra.mxu0 0
    %2181 = vmatprep.subr.bf16.mxu0 0
    %2182 = vmatpush2.bf16.xpose.msra.mxu0 0
    %2183 = vmatprep.subr.bf16.mxu0 0
    %2184 = vmatpush2.bf16.xpose.msra.mxu0 0
    %2185 = vmatprep.subr.bf16.mxu0 0
    %2186 = vmatpush2.bf16.xpose.msra.mxu0 0
    %2187 = vmatprep.subr.bf16.mxu0 0
    %2188 = vmatpush2.bf16.xpose.msra.mxu0 0
    %2189 = vmatprep.subr.bf16.mxu0 0
    %2190 = vmatpush2.bf16.xpose.msra.mxu0 0
    %2191 = vmatprep.subr.bf16.mxu0 0
    %2192 = vmatpush2.bf16.xpose.msra.mxu0 0
    %2193 = vmatprep.subr.bf16.mxu0 0
    %2194 = vmatpush2.bf16.xpose.msra.mxu0 0
    %2195 = vmatprep.mubr.bf16.mxu0 0
    %2196 = vmatmul.mubr.bf16.gmra.mxu0 %v2158
    %v2197 = vpop.f32.mrf.mxu0
    %v2198 = vadd.f32 0.0, %v2197
    %v2199 = vpop.f32.mrf.mxu0
    %v2200 = vpop.f32.mrf.mxu0
    %v2201 = vpop.f32.mrf.mxu0
    %2202 = vdwg.mxu0
    %v2204 = vsel %vm435, %v2152, 0
    %v2207 = vsel %vm435, %v2154, 0
    %2209 = vmatprep.subr.bf16.mxu0 0
    %2210 = vmatpush1.bf16.xpose.msra.mxu0 0
    %2211 = vmatprep.subr.bf16.mxu0 0
    %2212 = vmatpush1.bf16.xpose.msra.mxu0 0
    %2213 = vmatprep.subr.bf16.mxu0 0
    %2214 = vmatpush1.bf16.xpose.msra.mxu0 0
    %2215 = vmatprep.subr.bf16.mxu0 0
    %2216 = vmatpush1.bf16.xpose.msra.mxu0 0
    %2217 = vmatprep.subr.bf16.mxu0 0
    %2218 = vmatpush1.bf16.xpose.msra.mxu0 0
    %2219 = vmatprep.subr.bf16.mxu0 0
    %2220 = vmatpush1.bf16.xpose.msra.mxu0 0
    %2221 = vmatprep.subr.bf16.mxu0 0
    %2222 = vmatpush1.bf16.xpose.msra.mxu0 0
    %2223 = vmatprep.subr.bf16.mxu0 0
    %2224 = vmatpush1.bf16.xpose.msra.mxu0 %v2207
    %2225 = vmatprep.subr.bf16.mxu0 0
    %2226 = vmatpush2.bf16.xpose.msra.mxu0 0
    %2227 = vmatprep.subr.bf16.mxu0 0
    %2228 = vmatpush2.bf16.xpose.msra.mxu0 0
    %2229 = vmatprep.subr.bf16.mxu0 0
    %2230 = vmatpush2.bf16.xpose.msra.mxu0 0
    %2231 = vmatprep.subr.bf16.mxu0 0
    %2232 = vmatpush2.bf16.xpose.msra.mxu0 0
    %2233 = vmatprep.subr.bf16.mxu0 0
    %2234 = vmatpush2.bf16.xpose.msra.mxu0 0
    %2235 = vmatprep.subr.bf16.mxu0 0
    %2236 = vmatpush2.bf16.xpose.msra.mxu0 0
    %2237 = vmatprep.subr.bf16.mxu0 0
    %2238 = vmatpush2.bf16.xpose.msra.mxu0 0
    %2239 = vmatprep.subr.bf16.mxu0 0
    %2240 = vmatpush2.bf16.xpose.msra.mxu0 0
    %2241 = vmatprep.mubr.bf16.mxu0 0
    %2242 = vmatmul.mubr.bf16.gmra.mxu0 %v2204
    %v2243 = vpop.f32.mrf.mxu0
    %v2244 = vadd.f32 0.0, %v2243
    %v2245 = vpop.f32.mrf.mxu0
    %v2246 = vpop.f32.mrf.mxu0
    %v2247 = vpop.f32.mrf.mxu0
    %2248 = vdwg.mxu0
    %v2249 = vsel %vm538, -1e+09, %v2198
    %v2250 = vsel %vm539, -1e+09, %v2244
    %v2251 = vsel %vm542, %v2249, -inf
    %2252 = vmax.xlane.f32.xlu0 %v2251
    %v2253 = vpop.xlane.xlu0 %2252
    %v2254 = vsel %vm542, %v2250, -inf
    %2255 = vmax.xlane.f32.xlu0 %v2254
    %v2256 = vpop.xlane.xlu0 %2255
    %v2257 = vsub.f32 %v2249, %v2253
    %v2258 = vsub.f32 %v2250, %v2256
    %v2259 = vmul.f32 %v2257, 1.442695
    %v2260 = vpow.pop %v2259
    %v2261 = vmul.f32 %v2258, 1.442695
    %v2262 = vpow.pop %v2261
    %v2263 = vsel %vm542, %v2260, 0.0
    %2264 = vadd.xlane.f32.xlu0 %v2263
    %v2265 = vpop.xlane.xlu0 %2264
    %v2266 = vsel %vm542, %v2262, 0.0
    %2267 = vadd.xlane.f32.xlu0 %v2266
    %v2268 = vpop.xlane.xlu0 %2267
    %v2269 = vrcp.pop %v2265
    %v2270 = vrcp.pop %v2268
    %v2271 = vmul.f32 %v2260, %v2269
    %v2272 = vmul.f32 %v2262, %v2270
    %v2273 = vpack.c.bf16 %v2271, %v2271
    %v2274 = vpack.c.bf16 %v2272, %v2272
    %v2276 = vsel %vm542, %v2273, 0
    %v2279 = vsel %vm570, %v2155, 0
    %2281 = vmatprep.subr.bf16.mxu0 0
    %2282 = vmatpush1.bf16.msra.mxu0 0
    %2283 = vmatprep.subr.bf16.mxu0 0
    %2284 = vmatpush1.bf16.msra.mxu0 0
    %2285 = vmatprep.subr.bf16.mxu0 0
    %2286 = vmatpush1.bf16.msra.mxu0 0
    %2287 = vmatprep.subr.bf16.mxu0 0
    %2288 = vmatpush1.bf16.msra.mxu0 0
    %2289 = vmatprep.subr.bf16.mxu0 0
    %2290 = vmatpush1.bf16.msra.mxu0 0
    %2291 = vmatprep.subr.bf16.mxu0 0
    %2292 = vmatpush1.bf16.msra.mxu0 0
    %2293 = vmatprep.subr.bf16.mxu0 0
    %2294 = vmatpush1.bf16.msra.mxu0 0
    %2295 = vmatprep.subr.bf16.mxu0 0
    %2296 = vmatpush1.bf16.msra.mxu0 %v2279
    %2297 = vmatprep.subr.bf16.mxu0 0
    %2298 = vmatpush2.bf16.msra.mxu0 0
    %2299 = vmatprep.subr.bf16.mxu0 0
    %2300 = vmatpush2.bf16.msra.mxu0 0
    %2301 = vmatprep.subr.bf16.mxu0 0
    %2302 = vmatpush2.bf16.msra.mxu0 0
    %2303 = vmatprep.subr.bf16.mxu0 0
    %2304 = vmatpush2.bf16.msra.mxu0 0
    %2305 = vmatprep.subr.bf16.mxu0 0
    %2306 = vmatpush2.bf16.msra.mxu0 0
    %2307 = vmatprep.subr.bf16.mxu0 0
    %2308 = vmatpush2.bf16.msra.mxu0 0
    %2309 = vmatprep.subr.bf16.mxu0 0
    %2310 = vmatpush2.bf16.msra.mxu0 0
    %2311 = vmatprep.subr.bf16.mxu0 0
    %2312 = vmatpush2.bf16.msra.mxu0 0
    %2313 = vmatprep.mubr.bf16.mxu0 0
    %2314 = vmatmul.mubr.bf16.gmra.mxu0 %v2276
    %v2315 = vpop.f32.mrf.mxu0
    %v2316 = vadd.f32 0.0, %v2315
    %v2317 = vpop.f32.mrf.mxu0
    %v2318 = vpop.f32.mrf.mxu0
    %v2319 = vpop.f32.mrf.mxu0
    %2320 = vdwg.mxu0
    %v2322 = vsel %vm542, %v2274, 0
    %v2325 = vsel %vm570, %v2156, 0
    %2327 = vmatprep.subr.bf16.mxu0 0
    %2328 = vmatpush1.bf16.msra.mxu0 0
    %2329 = vmatprep.subr.bf16.mxu0 0
    %2330 = vmatpush1.bf16.msra.mxu0 0
    %2331 = vmatprep.subr.bf16.mxu0 0
    %2332 = vmatpush1.bf16.msra.mxu0 0
    %2333 = vmatprep.subr.bf16.mxu0 0
    %2334 = vmatpush1.bf16.msra.mxu0 0
    %2335 = vmatprep.subr.bf16.mxu0 0
    %2336 = vmatpush1.bf16.msra.mxu0 0
    %2337 = vmatprep.subr.bf16.mxu0 0
    %2338 = vmatpush1.bf16.msra.mxu0 0
    %2339 = vmatprep.subr.bf16.mxu0 0
    %2340 = vmatpush1.bf16.msra.mxu0 0
    %2341 = vmatprep.subr.bf16.mxu0 0
    %2342 = vmatpush1.bf16.msra.mxu0 %v2325
    %2343 = vmatprep.subr.bf16.mxu0 0
    %2344 = vmatpush2.bf16.msra.mxu0 0
    %2345 = vmatprep.subr.bf16.mxu0 0
    %2346 = vmatpush2.bf16.msra.mxu0 0
    %2347 = vmatprep.subr.bf16.mxu0 0
    %2348 = vmatpush2.bf16.msra.mxu0 0
    %2349 = vmatprep.subr.bf16.mxu0 0
    %2350 = vmatpush2.bf16.msra.mxu0 0
    %2351 = vmatprep.subr.bf16.mxu0 0
    %2352 = vmatpush2.bf16.msra.mxu0 0
    %2353 = vmatprep.subr.bf16.mxu0 0
    %2354 = vmatpush2.bf16.msra.mxu0 0
    %2355 = vmatprep.subr.bf16.mxu0 0
    %2356 = vmatpush2.bf16.msra.mxu0 0
    %2357 = vmatprep.subr.bf16.mxu0 0
    %2358 = vmatpush2.bf16.msra.mxu0 0
    %2359 = vmatprep.mubr.bf16.mxu0 0
    %2360 = vmatmul.mubr.bf16.gmra.mxu0 %v2322
    %v2361 = vpop.f32.mrf.mxu0
    %v2362 = vadd.f32 0.0, %v2361
    %v2363 = vpop.f32.mrf.mxu0
    %v2364 = vpop.f32.mrf.mxu0
    %v2365 = vpop.f32.mrf.mxu0
    %2366 = vdwg.mxu0
    %2368 = vrot.lane.b32.xlu0 %v2151, 96
    %v2369 = vpop.permute.xlu0 %2368
    %2371 = vrot.lane.b32.xlu0 %v2153, 96
    %v2372 = vpop.permute.xlu0 %2371
    %v2374 = vsel %vm435, %v2369, 0
    %v2377 = vsel %vm435, %v2372, 0
    %2379 = vmatprep.subr.bf16.mxu0 0
    %2380 = vmatpush1.bf16.xpose.msra.mxu0 0
    %2381 = vmatprep.subr.bf16.mxu0 0
    %2382 = vmatpush1.bf16.xpose.msra.mxu0 0
    %2383 = vmatprep.subr.bf16.mxu0 0
    %2384 = vmatpush1.bf16.xpose.msra.mxu0 0
    %2385 = vmatprep.subr.bf16.mxu0 0
    %2386 = vmatpush1.bf16.xpose.msra.mxu0 0
    %2387 = vmatprep.subr.bf16.mxu0 0
    %2388 = vmatpush1.bf16.xpose.msra.mxu0 0
    %2389 = vmatprep.subr.bf16.mxu0 0
    %2390 = vmatpush1.bf16.xpose.msra.mxu0 0
    %2391 = vmatprep.subr.bf16.mxu0 0
    %2392 = vmatpush1.bf16.xpose.msra.mxu0 0
    %2393 = vmatprep.subr.bf16.mxu0 0
    %2394 = vmatpush1.bf16.xpose.msra.mxu0 %v2377
    %2395 = vmatprep.subr.bf16.mxu0 0
    %2396 = vmatpush2.bf16.xpose.msra.mxu0 0
    %2397 = vmatprep.subr.bf16.mxu0 0
    %2398 = vmatpush2.bf16.xpose.msra.mxu0 0
    %2399 = vmatprep.subr.bf16.mxu0 0
    %2400 = vmatpush2.bf16.xpose.msra.mxu0 0
    %2401 = vmatprep.subr.bf16.mxu0 0
    %2402 = vmatpush2.bf16.xpose.msra.mxu0 0
    %2403 = vmatprep.subr.bf16.mxu0 0
    %2404 = vmatpush2.bf16.xpose.msra.mxu0 0
    %2405 = vmatprep.subr.bf16.mxu0 0
    %2406 = vmatpush2.bf16.xpose.msra.mxu0 0
    %2407 = vmatprep.subr.bf16.mxu0 0
    %2408 = vmatpush2.bf16.xpose.msra.mxu0 0
    %2409 = vmatprep.subr.bf16.mxu0 0
    %2410 = vmatpush2.bf16.xpose.msra.mxu0 0
    %2411 = vmatprep.mubr.bf16.mxu0 0
    %2412 = vmatmul.mubr.bf16.gmra.mxu0 %v2374
    %v2413 = vpop.f32.mrf.mxu0
    %v2414 = vadd.f32 0.0, %v2413
    %v2415 = vpop.f32.mrf.mxu0
    %v2416 = vpop.f32.mrf.mxu0
    %v2417 = vpop.f32.mrf.mxu0
    %2418 = vdwg.mxu0
    %2420 = vrot.lane.b32.xlu0 %v2152, 96
    %v2421 = vpop.permute.xlu0 %2420
    %2423 = vrot.lane.b32.xlu0 %v2154, 96
    %v2424 = vpop.permute.xlu0 %2423
    %v2426 = vsel %vm435, %v2421, 0
    %v2429 = vsel %vm435, %v2424, 0
    %2431 = vmatprep.subr.bf16.mxu0 0
    %2432 = vmatpush1.bf16.xpose.msra.mxu0 0
    %2433 = vmatprep.subr.bf16.mxu0 0
    %2434 = vmatpush1.bf16.xpose.msra.mxu0 0
    %2435 = vmatprep.subr.bf16.mxu0 0
    %2436 = vmatpush1.bf16.xpose.msra.mxu0 0
    %2437 = vmatprep.subr.bf16.mxu0 0
    %2438 = vmatpush1.bf16.xpose.msra.mxu0 0
    %2439 = vmatprep.subr.bf16.mxu0 0
    %2440 = vmatpush1.bf16.xpose.msra.mxu0 0
    %2441 = vmatprep.subr.bf16.mxu0 0
    %2442 = vmatpush1.bf16.xpose.msra.mxu0 0
    %2443 = vmatprep.subr.bf16.mxu0 0
    %2444 = vmatpush1.bf16.xpose.msra.mxu0 0
    %2445 = vmatprep.subr.bf16.mxu0 0
    %2446 = vmatpush1.bf16.xpose.msra.mxu0 %v2429
    %2447 = vmatprep.subr.bf16.mxu0 0
    %2448 = vmatpush2.bf16.xpose.msra.mxu0 0
    %2449 = vmatprep.subr.bf16.mxu0 0
    %2450 = vmatpush2.bf16.xpose.msra.mxu0 0
    %2451 = vmatprep.subr.bf16.mxu0 0
    %2452 = vmatpush2.bf16.xpose.msra.mxu0 0
    %2453 = vmatprep.subr.bf16.mxu0 0
    %2454 = vmatpush2.bf16.xpose.msra.mxu0 0
    %2455 = vmatprep.subr.bf16.mxu0 0
    %2456 = vmatpush2.bf16.xpose.msra.mxu0 0
    %2457 = vmatprep.subr.bf16.mxu0 0
    %2458 = vmatpush2.bf16.xpose.msra.mxu0 0
    %2459 = vmatprep.subr.bf16.mxu0 0
    %2460 = vmatpush2.bf16.xpose.msra.mxu0 0
    %2461 = vmatprep.subr.bf16.mxu0 0
    %2462 = vmatpush2.bf16.xpose.msra.mxu0 0
    %2463 = vmatprep.mubr.bf16.mxu0 0
    %2464 = vmatmul.mubr.bf16.gmra.mxu0 %v2426
    %v2465 = vpop.f32.mrf.mxu0
    %v2466 = vadd.f32 0.0, %v2465
    %v2467 = vpop.f32.mrf.mxu0
    %v2468 = vpop.f32.mrf.mxu0
    %v2469 = vpop.f32.mrf.mxu0
    %2470 = vdwg.mxu0
    %v2471 = vsel %vm538, -1e+09, %v2414
    %v2472 = vsel %vm539, -1e+09, %v2466
    %v2473 = vsel %vm542, %v2471, -inf
    %2474 = vmax.xlane.f32.xlu0 %v2473
    %v2475 = vpop.xlane.xlu0 %2474
    %v2476 = vsel %vm542, %v2472, -inf
    %2477 = vmax.xlane.f32.xlu0 %v2476
    %v2478 = vpop.xlane.xlu0 %2477
    %v2479 = vsub.f32 %v2471, %v2475
    %v2480 = vsub.f32 %v2472, %v2478
    %v2481 = vmul.f32 %v2479, 1.442695
    %v2482 = vpow.pop %v2481
    %v2483 = vmul.f32 %v2480, 1.442695
    %v2484 = vpow.pop %v2483
    %v2485 = vsel %vm542, %v2482, 0.0
    %2486 = vadd.xlane.f32.xlu0 %v2485
    %v2487 = vpop.xlane.xlu0 %2486
    %v2488 = vsel %vm542, %v2484, 0.0
    %2489 = vadd.xlane.f32.xlu0 %v2488
    %v2490 = vpop.xlane.xlu0 %2489
    %v2491 = vrcp.pop %v2487
    %v2492 = vrcp.pop %v2490
    %v2493 = vmul.f32 %v2482, %v2491
    %v2494 = vmul.f32 %v2484, %v2492
    %v2495 = vpack.c.bf16 %v2493, %v2493
    %v2496 = vpack.c.bf16 %v2494, %v2494
    %2498 = vrot.lane.b32.xlu0 %v2155, 96
    %v2499 = vpop.permute.xlu0 %2498
    %v2501 = vsel %vm542, %v2495, 0
    %v2504 = vsel %vm570, %v2499, 0
    %2506 = vmatprep.subr.bf16.mxu0 0
    %2507 = vmatpush1.bf16.msra.mxu0 0
    %2508 = vmatprep.subr.bf16.mxu0 0
    %2509 = vmatpush1.bf16.msra.mxu0 0
    %2510 = vmatprep.subr.bf16.mxu0 0
    %2511 = vmatpush1.bf16.msra.mxu0 0
    %2512 = vmatprep.subr.bf16.mxu0 0
    %2513 = vmatpush1.bf16.msra.mxu0 0
    %2514 = vmatprep.subr.bf16.mxu0 0
    %2515 = vmatpush1.bf16.msra.mxu0 0
    %2516 = vmatprep.subr.bf16.mxu0 0
    %2517 = vmatpush1.bf16.msra.mxu0 0
    %2518 = vmatprep.subr.bf16.mxu0 0
    %2519 = vmatpush1.bf16.msra.mxu0 0
    %2520 = vmatprep.subr.bf16.mxu0 0
    %2521 = vmatpush1.bf16.msra.mxu0 %v2504
    %2522 = vmatprep.subr.bf16.mxu0 0
    %2523 = vmatpush2.bf16.msra.mxu0 0
    %2524 = vmatprep.subr.bf16.mxu0 0
    %2525 = vmatpush2.bf16.msra.mxu0 0
    %2526 = vmatprep.subr.bf16.mxu0 0
    %2527 = vmatpush2.bf16.msra.mxu0 0
    %2528 = vmatprep.subr.bf16.mxu0 0
    %2529 = vmatpush2.bf16.msra.mxu0 0
    %2530 = vmatprep.subr.bf16.mxu0 0
    %2531 = vmatpush2.bf16.msra.mxu0 0
    %2532 = vmatprep.subr.bf16.mxu0 0
    %2533 = vmatpush2.bf16.msra.mxu0 0
    %2534 = vmatprep.subr.bf16.mxu0 0
    %2535 = vmatpush2.bf16.msra.mxu0 0
    %2536 = vmatprep.subr.bf16.mxu0 0
    %2537 = vmatpush2.bf16.msra.mxu0 0
    %2538 = vmatprep.mubr.bf16.mxu0 0
    %2539 = vmatmul.mubr.bf16.gmra.mxu0 %v2501
    %v2540 = vpop.f32.mrf.mxu0
    %v2541 = vadd.f32 0.0, %v2540
    %v2542 = vpop.f32.mrf.mxu0
    %v2543 = vpop.f32.mrf.mxu0
    %v2544 = vpop.f32.mrf.mxu0
    %2545 = vdwg.mxu0
    %2547 = vrot.lane.b32.xlu0 %v2156, 96
    %v2548 = vpop.permute.xlu0 %2547
    %v2550 = vsel %vm542, %v2496, 0
    %v2553 = vsel %vm570, %v2548, 0
    %2555 = vmatprep.subr.bf16.mxu0 0
    %2556 = vmatpush1.bf16.msra.mxu0 0
    %2557 = vmatprep.subr.bf16.mxu0 0
    %2558 = vmatpush1.bf16.msra.mxu0 0
    %2559 = vmatprep.subr.bf16.mxu0 0
    %2560 = vmatpush1.bf16.msra.mxu0 0
    %2561 = vmatprep.subr.bf16.mxu0 0
    %2562 = vmatpush1.bf16.msra.mxu0 0
    %2563 = vmatprep.subr.bf16.mxu0 0
    %2564 = vmatpush1.bf16.msra.mxu0 0
    %2565 = vmatprep.subr.bf16.mxu0 0
    %2566 = vmatpush1.bf16.msra.mxu0 0
    %2567 = vmatprep.subr.bf16.mxu0 0
    %2568 = vmatpush1.bf16.msra.mxu0 0
    %2569 = vmatprep.subr.bf16.mxu0 0
    %2570 = vmatpush1.bf16.msra.mxu0 %v2553
    %2571 = vmatprep.subr.bf16.mxu0 0
    %2572 = vmatpush2.bf16.msra.mxu0 0
    %2573 = vmatprep.subr.bf16.mxu0 0
    %2574 = vmatpush2.bf16.msra.mxu0 0
    %2575 = vmatprep.subr.bf16.mxu0 0
    %2576 = vmatpush2.bf16.msra.mxu0 0
    %2577 = vmatprep.subr.bf16.mxu0 0
    %2578 = vmatpush2.bf16.msra.mxu0 0
    %2579 = vmatprep.subr.bf16.mxu0 0
    %2580 = vmatpush2.bf16.msra.mxu0 0
    %2581 = vmatprep.subr.bf16.mxu0 0
    %2582 = vmatpush2.bf16.msra.mxu0 0
    %2583 = vmatprep.subr.bf16.mxu0 0
    %2584 = vmatpush2.bf16.msra.mxu0 0
    %2585 = vmatprep.subr.bf16.mxu0 0
    %2586 = vmatpush2.bf16.msra.mxu0 0
    %2587 = vmatprep.mubr.bf16.mxu0 0
    %2588 = vmatmul.mubr.bf16.gmra.mxu0 %v2550
    %v2589 = vpop.f32.mrf.mxu0
    %v2590 = vadd.f32 0.0, %v2589
    %v2591 = vpop.f32.mrf.mxu0
    %v2592 = vpop.f32.mrf.mxu0
    %v2593 = vpop.f32.mrf.mxu0
    %2594 = vdwg.mxu0
    %2595 = vrot.lane.b32.xlu0 %v2151, 64
    %v2596 = vpop.permute.xlu0 %2595
    %2597 = vrot.lane.b32.xlu0 %v2153, 64
    %v2598 = vpop.permute.xlu0 %2597
    %v2600 = vsel %vm435, %v2596, 0
    %v2603 = vsel %vm435, %v2598, 0
    %2605 = vmatprep.subr.bf16.mxu0 0
    %2606 = vmatpush1.bf16.xpose.msra.mxu0 0
    %2607 = vmatprep.subr.bf16.mxu0 0
    %2608 = vmatpush1.bf16.xpose.msra.mxu0 0
    %2609 = vmatprep.subr.bf16.mxu0 0
    %2610 = vmatpush1.bf16.xpose.msra.mxu0 0
    %2611 = vmatprep.subr.bf16.mxu0 0
    %2612 = vmatpush1.bf16.xpose.msra.mxu0 0
    %2613 = vmatprep.subr.bf16.mxu0 0
    %2614 = vmatpush1.bf16.xpose.msra.mxu0 0
    %2615 = vmatprep.subr.bf16.mxu0 0
    %2616 = vmatpush1.bf16.xpose.msra.mxu0 0
    %2617 = vmatprep.subr.bf16.mxu0 0
    %2618 = vmatpush1.bf16.xpose.msra.mxu0 0
    %2619 = vmatprep.subr.bf16.mxu0 0
    %2620 = vmatpush1.bf16.xpose.msra.mxu0 %v2603
    %2621 = vmatprep.subr.bf16.mxu0 0
    %2622 = vmatpush2.bf16.xpose.msra.mxu0 0
    %2623 = vmatprep.subr.bf16.mxu0 0
    %2624 = vmatpush2.bf16.xpose.msra.mxu0 0
    %2625 = vmatprep.subr.bf16.mxu0 0
    %2626 = vmatpush2.bf16.xpose.msra.mxu0 0
    %2627 = vmatprep.subr.bf16.mxu0 0
    %2628 = vmatpush2.bf16.xpose.msra.mxu0 0
    %2629 = vmatprep.subr.bf16.mxu0 0
    %2630 = vmatpush2.bf16.xpose.msra.mxu0 0
    %2631 = vmatprep.subr.bf16.mxu0 0
    %2632 = vmatpush2.bf16.xpose.msra.mxu0 0
    %2633 = vmatprep.subr.bf16.mxu0 0
    %2634 = vmatpush2.bf16.xpose.msra.mxu0 0
    %2635 = vmatprep.subr.bf16.mxu0 0
    %2636 = vmatpush2.bf16.xpose.msra.mxu0 0
    %2637 = vmatprep.mubr.bf16.mxu0 0
    %2638 = vmatmul.mubr.bf16.gmra.mxu0 %v2600
    %v2639 = vpop.f32.mrf.mxu0
    %v2640 = vadd.f32 0.0, %v2639
    %v2641 = vpop.f32.mrf.mxu0
    %v2642 = vpop.f32.mrf.mxu0
    %v2643 = vpop.f32.mrf.mxu0
    %2644 = vdwg.mxu0
    %2645 = vrot.lane.b32.xlu0 %v2152, 64
    %v2646 = vpop.permute.xlu0 %2645
    %2647 = vrot.lane.b32.xlu0 %v2154, 64
    %v2648 = vpop.permute.xlu0 %2647
    %v2650 = vsel %vm435, %v2646, 0
    %v2653 = vsel %vm435, %v2648, 0
    %2655 = vmatprep.subr.bf16.mxu0 0
    %2656 = vmatpush1.bf16.xpose.msra.mxu0 0
    %2657 = vmatprep.subr.bf16.mxu0 0
    %2658 = vmatpush1.bf16.xpose.msra.mxu0 0
    %2659 = vmatprep.subr.bf16.mxu0 0
    %2660 = vmatpush1.bf16.xpose.msra.mxu0 0
    %2661 = vmatprep.subr.bf16.mxu0 0
    %2662 = vmatpush1.bf16.xpose.msra.mxu0 0
    %2663 = vmatprep.subr.bf16.mxu0 0
    %2664 = vmatpush1.bf16.xpose.msra.mxu0 0
    %2665 = vmatprep.subr.bf16.mxu0 0
    %2666 = vmatpush1.bf16.xpose.msra.mxu0 0
    %2667 = vmatprep.subr.bf16.mxu0 0
    %2668 = vmatpush1.bf16.xpose.msra.mxu0 0
    %2669 = vmatprep.subr.bf16.mxu0 0
    %2670 = vmatpush1.bf16.xpose.msra.mxu0 %v2653
    %2671 = vmatprep.subr.bf16.mxu0 0
    %2672 = vmatpush2.bf16.xpose.msra.mxu0 0
    %2673 = vmatprep.subr.bf16.mxu0 0
    %2674 = vmatpush2.bf16.xpose.msra.mxu0 0
    %2675 = vmatprep.subr.bf16.mxu0 0
    %2676 = vmatpush2.bf16.xpose.msra.mxu0 0
    %2677 = vmatprep.subr.bf16.mxu0 0
    %2678 = vmatpush2.bf16.xpose.msra.mxu0 0
    %2679 = vmatprep.subr.bf16.mxu0 0
    %2680 = vmatpush2.bf16.xpose.msra.mxu0 0
    %2681 = vmatprep.subr.bf16.mxu0 0
    %2682 = vmatpush2.bf16.xpose.msra.mxu0 0
    %2683 = vmatprep.subr.bf16.mxu0 0
    %2684 = vmatpush2.bf16.xpose.msra.mxu0 0
    %2685 = vmatprep.subr.bf16.mxu0 0
    %2686 = vmatpush2.bf16.xpose.msra.mxu0 0
    %2687 = vmatprep.mubr.bf16.mxu0 0
    %2688 = vmatmul.mubr.bf16.gmra.mxu0 %v2650
    %v2689 = vpop.f32.mrf.mxu0
    %v2690 = vadd.f32 0.0, %v2689
    %v2691 = vpop.f32.mrf.mxu0
    %v2692 = vpop.f32.mrf.mxu0
    %v2693 = vpop.f32.mrf.mxu0
    %2694 = vdwg.mxu0
    %v2695 = vsel %vm538, -1e+09, %v2640
    %v2696 = vsel %vm539, -1e+09, %v2690
    %v2697 = vsel %vm542, %v2695, -inf
    %2698 = vmax.xlane.f32.xlu0 %v2697
    %v2699 = vpop.xlane.xlu0 %2698
    %v2700 = vsel %vm542, %v2696, -inf
    %2701 = vmax.xlane.f32.xlu0 %v2700
    %v2702 = vpop.xlane.xlu0 %2701
    %v2703 = vsub.f32 %v2695, %v2699
    %v2704 = vsub.f32 %v2696, %v2702
    %v2705 = vmul.f32 %v2703, 1.442695
    %v2706 = vpow.pop %v2705
    %v2707 = vmul.f32 %v2704, 1.442695
    %v2708 = vpow.pop %v2707
    %v2709 = vsel %vm542, %v2706, 0.0
    %2710 = vadd.xlane.f32.xlu0 %v2709
    %v2711 = vpop.xlane.xlu0 %2710
    %v2712 = vsel %vm542, %v2708, 0.0
    %2713 = vadd.xlane.f32.xlu0 %v2712
    %v2714 = vpop.xlane.xlu0 %2713
    %v2715 = vrcp.pop %v2711
    %v2716 = vrcp.pop %v2714
    %v2717 = vmul.f32 %v2706, %v2715
    %v2718 = vmul.f32 %v2708, %v2716
    %v2719 = vpack.c.bf16 %v2717, %v2717
    %v2720 = vpack.c.bf16 %v2718, %v2718
    %2721 = vrot.lane.b32.xlu0 %v2155, 64
    %v2722 = vpop.permute.xlu0 %2721
    %v2724 = vsel %vm542, %v2719, 0
    %v2727 = vsel %vm570, %v2722, 0
    %2729 = vmatprep.subr.bf16.mxu0 0
    %2730 = vmatpush1.bf16.msra.mxu0 0
    %2731 = vmatprep.subr.bf16.mxu0 0
    %2732 = vmatpush1.bf16.msra.mxu0 0
    %2733 = vmatprep.subr.bf16.mxu0 0
    %2734 = vmatpush1.bf16.msra.mxu0 0
    %2735 = vmatprep.subr.bf16.mxu0 0
    %2736 = vmatpush1.bf16.msra.mxu0 0
    %2737 = vmatprep.subr.bf16.mxu0 0
    %2738 = vmatpush1.bf16.msra.mxu0 0
    %2739 = vmatprep.subr.bf16.mxu0 0
    %2740 = vmatpush1.bf16.msra.mxu0 0
    %2741 = vmatprep.subr.bf16.mxu0 0
    %2742 = vmatpush1.bf16.msra.mxu0 0
    %2743 = vmatprep.subr.bf16.mxu0 0
    %2744 = vmatpush1.bf16.msra.mxu0 %v2727
    %2745 = vmatprep.subr.bf16.mxu0 0
    %2746 = vmatpush2.bf16.msra.mxu0 0
    %2747 = vmatprep.subr.bf16.mxu0 0
    %2748 = vmatpush2.bf16.msra.mxu0 0
    %2749 = vmatprep.subr.bf16.mxu0 0
    %2750 = vmatpush2.bf16.msra.mxu0 0
    %2751 = vmatprep.subr.bf16.mxu0 0
    %2752 = vmatpush2.bf16.msra.mxu0 0
    %2753 = vmatprep.subr.bf16.mxu0 0
    %2754 = vmatpush2.bf16.msra.mxu0 0
    %2755 = vmatprep.subr.bf16.mxu0 0
    %2756 = vmatpush2.bf16.msra.mxu0 0
    %2757 = vmatprep.subr.bf16.mxu0 0
    %2758 = vmatpush2.bf16.msra.mxu0 0
    %2759 = vmatprep.subr.bf16.mxu0 0
    %2760 = vmatpush2.bf16.msra.mxu0 0
    %2761 = vmatprep.mubr.bf16.mxu0 0
    %2762 = vmatmul.mubr.bf16.gmra.mxu0 %v2724
    %v2763 = vpop.f32.mrf.mxu0
    %v2764 = vadd.f32 0.0, %v2763
    %v2765 = vpop.f32.mrf.mxu0
    %v2766 = vpop.f32.mrf.mxu0
    %v2767 = vpop.f32.mrf.mxu0
    %2768 = vdwg.mxu0
    %2769 = vrot.lane.b32.xlu0 %v2156, 64
    %v2770 = vpop.permute.xlu0 %2769
    %v2772 = vsel %vm542, %v2720, 0
    %v2775 = vsel %vm570, %v2770, 0
    %2777 = vmatprep.subr.bf16.mxu0 0
    %2778 = vmatpush1.bf16.msra.mxu0 0
    %2779 = vmatprep.subr.bf16.mxu0 0
    %2780 = vmatpush1.bf16.msra.mxu0 0
    %2781 = vmatprep.subr.bf16.mxu0 0
    %2782 = vmatpush1.bf16.msra.mxu0 0
    %2783 = vmatprep.subr.bf16.mxu0 0
    %2784 = vmatpush1.bf16.msra.mxu0 0
    %2785 = vmatprep.subr.bf16.mxu0 0
    %2786 = vmatpush1.bf16.msra.mxu0 0
    %2787 = vmatprep.subr.bf16.mxu0 0
    %2788 = vmatpush1.bf16.msra.mxu0 0
    %2789 = vmatprep.subr.bf16.mxu0 0
    %2790 = vmatpush1.bf16.msra.mxu0 0
    %2791 = vmatprep.subr.bf16.mxu0 0
    %2792 = vmatpush1.bf16.msra.mxu0 %v2775
    %2793 = vmatprep.subr.bf16.mxu0 0
    %2794 = vmatpush2.bf16.msra.mxu0 0
    %2795 = vmatprep.subr.bf16.mxu0 0
    %2796 = vmatpush2.bf16.msra.mxu0 0
    %2797 = vmatprep.subr.bf16.mxu0 0
    %2798 = vmatpush2.bf16.msra.mxu0 0
    %2799 = vmatprep.subr.bf16.mxu0 0
    %2800 = vmatpush2.bf16.msra.mxu0 0
    %2801 = vmatprep.subr.bf16.mxu0 0
    %2802 = vmatpush2.bf16.msra.mxu0 0
    %2803 = vmatprep.subr.bf16.mxu0 0
    %2804 = vmatpush2.bf16.msra.mxu0 0
    %2805 = vmatprep.subr.bf16.mxu0 0
    %2806 = vmatpush2.bf16.msra.mxu0 0
    %2807 = vmatprep.subr.bf16.mxu0 0
    %2808 = vmatpush2.bf16.msra.mxu0 0
    %2809 = vmatprep.mubr.bf16.mxu0 0
    %2810 = vmatmul.mubr.bf16.gmra.mxu0 %v2772
    %v2811 = vpop.f32.mrf.mxu0
    %v2812 = vadd.f32 0.0, %v2811
    %v2813 = vpop.f32.mrf.mxu0
    %v2814 = vpop.f32.mrf.mxu0
    %v2815 = vpop.f32.mrf.mxu0
    %2816 = vdwg.mxu0
    %2817 = vrot.lane.b32.xlu0 %v2151, 32
    %v2818 = vpop.permute.xlu0 %2817
    %2819 = vrot.lane.b32.xlu0 %v2153, 32
    %v2820 = vpop.permute.xlu0 %2819
    %v2822 = vsel %vm435, %v2818, 0
    %v2825 = vsel %vm435, %v2820, 0
    %2827 = vmatprep.subr.bf16.mxu0 0
    %2828 = vmatpush1.bf16.xpose.msra.mxu0 0
    %2829 = vmatprep.subr.bf16.mxu0 0
    %2830 = vmatpush1.bf16.xpose.msra.mxu0 0
    %2831 = vmatprep.subr.bf16.mxu0 0
    %2832 = vmatpush1.bf16.xpose.msra.mxu0 0
    %2833 = vmatprep.subr.bf16.mxu0 0
    %2834 = vmatpush1.bf16.xpose.msra.mxu0 0
    %2835 = vmatprep.subr.bf16.mxu0 0
    %2836 = vmatpush1.bf16.xpose.msra.mxu0 0
    %2837 = vmatprep.subr.bf16.mxu0 0
    %2838 = vmatpush1.bf16.xpose.msra.mxu0 0
    %2839 = vmatprep.subr.bf16.mxu0 0
    %2840 = vmatpush1.bf16.xpose.msra.mxu0 0
    %2841 = vmatprep.subr.bf16.mxu0 0
    %2842 = vmatpush1.bf16.xpose.msra.mxu0 %v2825
    %2843 = vmatprep.subr.bf16.mxu0 0
    %2844 = vmatpush2.bf16.xpose.msra.mxu0 0
    %2845 = vmatprep.subr.bf16.mxu0 0
    %2846 = vmatpush2.bf16.xpose.msra.mxu0 0
    %2847 = vmatprep.subr.bf16.mxu0 0
    %2848 = vmatpush2.bf16.xpose.msra.mxu0 0
    %2849 = vmatprep.subr.bf16.mxu0 0
    %2850 = vmatpush2.bf16.xpose.msra.mxu0 0
    %2851 = vmatprep.subr.bf16.mxu0 0
    %2852 = vmatpush2.bf16.xpose.msra.mxu0 0
    %2853 = vmatprep.subr.bf16.mxu0 0
    %2854 = vmatpush2.bf16.xpose.msra.mxu0 0
    %2855 = vmatprep.subr.bf16.mxu0 0
    %2856 = vmatpush2.bf16.xpose.msra.mxu0 0
    %2857 = vmatprep.subr.bf16.mxu0 0
    %2858 = vmatpush2.bf16.xpose.msra.mxu0 0
    %2859 = vmatprep.mubr.bf16.mxu0 0
    %2860 = vmatmul.mubr.bf16.gmra.mxu0 %v2822
    %v2861 = vpop.f32.mrf.mxu0
    %v2862 = vadd.f32 0.0, %v2861
    %v2863 = vpop.f32.mrf.mxu0
    %v2864 = vpop.f32.mrf.mxu0
    %v2865 = vpop.f32.mrf.mxu0
    %2866 = vdwg.mxu0
    %2867 = vrot.lane.b32.xlu0 %v2152, 32
    %v2868 = vpop.permute.xlu0 %2867
    %2869 = vrot.lane.b32.xlu0 %v2154, 32
    %v2870 = vpop.permute.xlu0 %2869
    %v2872 = vsel %vm435, %v2868, 0
    %v2875 = vsel %vm435, %v2870, 0
    %2877 = vmatprep.subr.bf16.mxu0 0
    %2878 = vmatpush1.bf16.xpose.msra.mxu0 0
    %2879 = vmatprep.subr.bf16.mxu0 0
    %2880 = vmatpush1.bf16.xpose.msra.mxu0 0
    %2881 = vmatprep.subr.bf16.mxu0 0
    %2882 = vmatpush1.bf16.xpose.msra.mxu0 0
    %2883 = vmatprep.subr.bf16.mxu0 0
    %2884 = vmatpush1.bf16.xpose.msra.mxu0 0
    %2885 = vmatprep.subr.bf16.mxu0 0
    %2886 = vmatpush1.bf16.xpose.msra.mxu0 0
    %2887 = vmatprep.subr.bf16.mxu0 0
    %2888 = vmatpush1.bf16.xpose.msra.mxu0 0
    %2889 = vmatprep.subr.bf16.mxu0 0
    %2890 = vmatpush1.bf16.xpose.msra.mxu0 0
    %2891 = vmatprep.subr.bf16.mxu0 0
    %2892 = vmatpush1.bf16.xpose.msra.mxu0 %v2875
    %2893 = vmatprep.subr.bf16.mxu0 0
    %2894 = vmatpush2.bf16.xpose.msra.mxu0 0
    %2895 = vmatprep.subr.bf16.mxu0 0
    %2896 = vmatpush2.bf16.xpose.msra.mxu0 0
    %2897 = vmatprep.subr.bf16.mxu0 0
    %2898 = vmatpush2.bf16.xpose.msra.mxu0 0
    %2899 = vmatprep.subr.bf16.mxu0 0
    %2900 = vmatpush2.bf16.xpose.msra.mxu0 0
    %2901 = vmatprep.subr.bf16.mxu0 0
    %2902 = vmatpush2.bf16.xpose.msra.mxu0 0
    %2903 = vmatprep.subr.bf16.mxu0 0
    %2904 = vmatpush2.bf16.xpose.msra.mxu0 0
    %2905 = vmatprep.subr.bf16.mxu0 0
    %2906 = vmatpush2.bf16.xpose.msra.mxu0 0
    %2907 = vmatprep.subr.bf16.mxu0 0
    %2908 = vmatpush2.bf16.xpose.msra.mxu0 0
    %2909 = vmatprep.mubr.bf16.mxu0 0
    %2910 = vmatmul.mubr.bf16.gmra.mxu0 %v2872
    %v2911 = vpop.f32.mrf.mxu0
    %v2912 = vadd.f32 0.0, %v2911
    %v2913 = vpop.f32.mrf.mxu0
    %v2914 = vpop.f32.mrf.mxu0
    %v2915 = vpop.f32.mrf.mxu0
    %2916 = vdwg.mxu0
    %v2917 = vsel %vm538, -1e+09, %v2862
    %v2918 = vsel %vm539, -1e+09, %v2912
    %v2919 = vsel %vm542, %v2917, -inf
    %2920 = vmax.xlane.f32.xlu0 %v2919
    %v2921 = vpop.xlane.xlu0 %2920
    %v2922 = vsel %vm542, %v2918, -inf
    %2923 = vmax.xlane.f32.xlu0 %v2922
    %v2924 = vpop.xlane.xlu0 %2923
    %v2925 = vsub.f32 %v2917, %v2921
    %v2926 = vsub.f32 %v2918, %v2924
    %v2927 = vmul.f32 %v2925, 1.442695
    %v2928 = vpow.pop %v2927
    %v2929 = vmul.f32 %v2926, 1.442695
    %v2930 = vpow.pop %v2929
    %v2931 = vsel %vm542, %v2928, 0.0
    %2932 = vadd.xlane.f32.xlu0 %v2931
    %v2933 = vpop.xlane.xlu0 %2932
    %v2934 = vsel %vm542, %v2930, 0.0
    %2935 = vadd.xlane.f32.xlu0 %v2934
    %v2936 = vpop.xlane.xlu0 %2935
    %v2937 = vrcp.pop %v2933
    %v2938 = vrcp.pop %v2936
    %v2939 = vmul.f32 %v2928, %v2937
    %v2940 = vmul.f32 %v2930, %v2938
    %v2941 = vpack.c.bf16 %v2939, %v2939
    %v2942 = vpack.c.bf16 %v2940, %v2940
    %2943 = vrot.lane.b32.xlu0 %v2155, 32
    %v2944 = vpop.permute.xlu0 %2943
    %v2946 = vsel %vm542, %v2941, 0
    %v2949 = vsel %vm570, %v2944, 0
    %2951 = vmatprep.subr.bf16.mxu0 0
    %2952 = vmatpush1.bf16.msra.mxu0 0
    %2953 = vmatprep.subr.bf16.mxu0 0
    %2954 = vmatpush1.bf16.msra.mxu0 0
    %2955 = vmatprep.subr.bf16.mxu0 0
    %2956 = vmatpush1.bf16.msra.mxu0 0
    %2957 = vmatprep.subr.bf16.mxu0 0
    %2958 = vmatpush1.bf16.msra.mxu0 0
    %2959 = vmatprep.subr.bf16.mxu0 0
    %2960 = vmatpush1.bf16.msra.mxu0 0
    %2961 = vmatprep.subr.bf16.mxu0 0
    %2962 = vmatpush1.bf16.msra.mxu0 0
    %2963 = vmatprep.subr.bf16.mxu0 0
    %2964 = vmatpush1.bf16.msra.mxu0 0
    %2965 = vmatprep.subr.bf16.mxu0 0
    %2966 = vmatpush1.bf16.msra.mxu0 %v2949
    %2967 = vmatprep.subr.bf16.mxu0 0
    %2968 = vmatpush2.bf16.msra.mxu0 0
    %2969 = vmatprep.subr.bf16.mxu0 0
    %2970 = vmatpush2.bf16.msra.mxu0 0
    %2971 = vmatprep.subr.bf16.mxu0 0
    %2972 = vmatpush2.bf16.msra.mxu0 0
    %2973 = vmatprep.subr.bf16.mxu0 0
    %2974 = vmatpush2.bf16.msra.mxu0 0
    %2975 = vmatprep.subr.bf16.mxu0 0
    %2976 = vmatpush2.bf16.msra.mxu0 0
    %2977 = vmatprep.subr.bf16.mxu0 0
    %2978 = vmatpush2.bf16.msra.mxu0 0
    %2979 = vmatprep.subr.bf16.mxu0 0
    %2980 = vmatpush2.bf16.msra.mxu0 0
    %2981 = vmatprep.subr.bf16.mxu0 0
    %2982 = vmatpush2.bf16.msra.mxu0 0
    %2983 = vmatprep.mubr.bf16.mxu0 0
    %2984 = vmatmul.mubr.bf16.gmra.mxu0 %v2946
    %v2985 = vpop.f32.mrf.mxu0
    %v2986 = vadd.f32 0.0, %v2985
    %v2987 = vpop.f32.mrf.mxu0
    %v2988 = vpop.f32.mrf.mxu0
    %v2989 = vpop.f32.mrf.mxu0
    %2990 = vdwg.mxu0
    %2991 = vrot.lane.b32.xlu0 %v2156, 32
    %v2992 = vpop.permute.xlu0 %2991
    %v2994 = vsel %vm542, %v2942, 0
    %v2997 = vsel %vm570, %v2992, 0
    %2999 = vmatprep.subr.bf16.mxu0 0
    %3000 = vmatpush1.bf16.msra.mxu0 0
    %3001 = vmatprep.subr.bf16.mxu0 0
    %3002 = vmatpush1.bf16.msra.mxu0 0
    %3003 = vmatprep.subr.bf16.mxu0 0
    %3004 = vmatpush1.bf16.msra.mxu0 0
    %3005 = vmatprep.subr.bf16.mxu0 0
    %3006 = vmatpush1.bf16.msra.mxu0 0
    %3007 = vmatprep.subr.bf16.mxu0 0
    %3008 = vmatpush1.bf16.msra.mxu0 0
    %3009 = vmatprep.subr.bf16.mxu0 0
    %3010 = vmatpush1.bf16.msra.mxu0 0
    %3011 = vmatprep.subr.bf16.mxu0 0
    %3012 = vmatpush1.bf16.msra.mxu0 0
    %3013 = vmatprep.subr.bf16.mxu0 0
    %3014 = vmatpush1.bf16.msra.mxu0 %v2997
    %3015 = vmatprep.subr.bf16.mxu0 0
    %3016 = vmatpush2.bf16.msra.mxu0 0
    %3017 = vmatprep.subr.bf16.mxu0 0
    %3018 = vmatpush2.bf16.msra.mxu0 0
    %3019 = vmatprep.subr.bf16.mxu0 0
    %3020 = vmatpush2.bf16.msra.mxu0 0
    %3021 = vmatprep.subr.bf16.mxu0 0
    %3022 = vmatpush2.bf16.msra.mxu0 0
    %3023 = vmatprep.subr.bf16.mxu0 0
    %3024 = vmatpush2.bf16.msra.mxu0 0
    %3025 = vmatprep.subr.bf16.mxu0 0
    %3026 = vmatpush2.bf16.msra.mxu0 0
    %3027 = vmatprep.subr.bf16.mxu0 0
    %3028 = vmatpush2.bf16.msra.mxu0 0
    %3029 = vmatprep.subr.bf16.mxu0 0
    %3030 = vmatpush2.bf16.msra.mxu0 0
    %3031 = vmatprep.mubr.bf16.mxu0 0
    %3032 = vmatmul.mubr.bf16.gmra.mxu0 %v2994
    %v3033 = vpop.f32.mrf.mxu0
    %v3034 = vadd.f32 0.0, %v3033
    %v3035 = vpop.f32.mrf.mxu0
    %v3036 = vpop.f32.mrf.mxu0
    %v3037 = vpop.f32.mrf.mxu0
    %3038 = vdwg.mxu0
    %3041 = vrot.lane.b32.xlu0 %v2541, 32
    %v3042 = vpop.permute.xlu0 %3041
    %3043 = vrot.lane.b32.xlu0 %v2590, 32
    %v3044 = vpop.permute.xlu0 %3043
    %3049 = vrot.lane.b32.xlu0 %v2764, 64
    %v3050 = vpop.permute.xlu0 %3049
    %3051 = vrot.lane.b32.xlu0 %v2812, 64
    %v3052 = vpop.permute.xlu0 %3051
    %3057 = vrot.lane.b32.xlu0 %v2986, 96
    %v3058 = vpop.permute.xlu0 %3057
    %3059 = vrot.lane.b32.xlu0 %v3034, 96
    %v3060 = vpop.permute.xlu0 %3059
    %v3063 = vsel %vm435, %v2316, %v3042
    %v3064 = vsel %vm435, %v2362, %v3044
    %v3065 = vsel %vm1358, %v3063, %v3050
    %v3066 = vsel %vm1358, %v3064, %v3052
    %v3067 = vsel %vm1361, %v3065, %v3058
    %v3068 = vsel %vm1361, %v3066, %v3060
    %s3069 = scalar_lea.vmem %s9, 64
    %v3070 = vld [vmem:[%s3069] sm:$0xf]
    %v3071 = vld [vmem:[%s3069 + $0x4] sm:$0xf]
    %v3072 = vld [vmem:[%s3069 + $0x8] sm:$0xf]
    %v3073 = vld [vmem:[%s3069 + $0xc] sm:$0xf]
    %v3074 = vld [vmem:[%s3069 + $0x10] sm:$0xf]
    %v3075 = vld [vmem:[%s3069 + $0x14] sm:$0xf]
    %v3076 = vld [vmem:[%s3069 + $0x18] sm:$0xf]
    %v3077 = vld [vmem:[%s3069 + $0x1c] sm:$0xf]
    %v3078 = vld [vmem:[%s3069 + $0x20] sm:$0xf]
    %v3079 = vld [vmem:[%s3069 + $0x24] sm:$0xf]
    %v3080 = vld [vmem:[%s3069 + $0x28] sm:$0xf]
    %v3081 = vld [vmem:[%s3069 + $0x2c] sm:$0xf]
    %v3082 = vld [vmem:[%s3069 + $0x30] sm:$0xf]
    %v3083 = vld [vmem:[%s3069 + $0x34] sm:$0xf]
    %v3084 = vld [vmem:[%s3069 + $0x38] sm:$0xf]
    %v3085 = vld [vmem:[%s3069 + $0x3c] sm:$0xf]
    %v3086 = vpack.c.bf16 %v3068, %v3067
    %s3087 = scalar_lea.vmem %s10, 1
    %v3088 = vld [vmem:[%s3087] sm:$0x1]
    %v3090 = vlaneseq
    %v3091 = vshrl.u32 %v3090, 7
    %v3092 = vsub.s32 0, %v3091
    %v3093 = vrot.slane %v3088, %v3092
    %v3111 = vunpack.c.l.b16 %v3070
    %v3112 = vunpack.c.l.b16 %v3071
    %v3113 = vunpack.c.l.b16 %v3072
    %v3114 = vunpack.c.l.b16 %v3073
    %v3115 = vunpack.c.l.b16 %v3074
    %v3116 = vunpack.c.l.b16 %v3075
    %v3117 = vunpack.c.l.b16 %v3076
    %v3118 = vunpack.c.l.b16 %v3077
    %v3119 = vunpack.c.l.b16 %v3078
    %v3120 = vunpack.c.l.b16 %v3079
    %v3121 = vunpack.c.l.b16 %v3080
    %v3122 = vunpack.c.l.b16 %v3081
    %v3123 = vunpack.c.l.b16 %v3082
    %v3124 = vunpack.c.l.b16 %v3083
    %v3125 = vunpack.c.l.b16 %v3084
    %v3126 = vunpack.c.l.b16 %v3085
    %v3127 = vpack.c.b16 %v3112, %v3111
    %v3128 = vpack.c.b16 %v3114, %v3113
    %v3129 = vpack.c.b16 %v3116, %v3115
    %v3130 = vpack.c.b16 %v3118, %v3117
    %v3131 = vpack.c.b16 %v3120, %v3119
    %v3132 = vpack.c.b16 %v3122, %v3121
    %v3133 = vpack.c.b16 %v3124, %v3123
    %v3134 = vpack.c.b16 %v3126, %v3125
    %3143 = vmatprep.subr.bf16.mxu0 0
    %3144 = vmatpush1.bf16.msra.mxu0 %v3134
    %3145 = vmatprep.subr.bf16.mxu0 0
    %3146 = vmatpush1.bf16.msra.mxu0 %v3133
    %3147 = vmatprep.subr.bf16.mxu0 0
    %3148 = vmatpush1.bf16.msra.mxu0 %v3132
    %3149 = vmatprep.subr.bf16.mxu0 0
    %3150 = vmatpush1.bf16.msra.mxu0 %v3131
    %3151 = vmatprep.subr.bf16.mxu0 0
    %3152 = vmatpush1.bf16.msra.mxu0 %v3130
    %3153 = vmatprep.subr.bf16.mxu0 0
    %3154 = vmatpush1.bf16.msra.mxu0 %v3129
    %3155 = vmatprep.subr.bf16.mxu0 0
    %3156 = vmatpush1.bf16.msra.mxu0 %v3128
    %3157 = vmatprep.subr.bf16.mxu0 0
    %3158 = vmatpush1.bf16.msra.mxu0 %v3127
    %3159 = vmatprep.subr.bf16.mxu0 0
    %3160 = vmatpush2.bf16.msra.mxu0 0
    %3161 = vmatprep.subr.bf16.mxu0 0
    %3162 = vmatpush2.bf16.msra.mxu0 0
    %3163 = vmatprep.subr.bf16.mxu0 0
    %3164 = vmatpush2.bf16.msra.mxu0 0
    %3165 = vmatprep.subr.bf16.mxu0 0
    %3166 = vmatpush2.bf16.msra.mxu0 0
    %3167 = vmatprep.subr.bf16.mxu0 0
    %3168 = vmatpush2.bf16.msra.mxu0 0
    %3169 = vmatprep.subr.bf16.mxu0 0
    %3170 = vmatpush2.bf16.msra.mxu0 0
    %3171 = vmatprep.subr.bf16.mxu0 0
    %3172 = vmatpush2.bf16.msra.mxu0 0
    %3173 = vmatprep.subr.bf16.mxu0 0
    %3174 = vmatpush2.bf16.msra.mxu0 0
    %3175 = vmatprep.mubr.bf16.mxu0 0
    %3176 = vmatmul.mubr.bf16.gmra.mxu0 %v3086
    %v3177 = vpop.f32.mrf.mxu0
    %v3178 = vadd.f32 %v3093, %v3177
    %v3179 = vpop.f32.mrf.mxu0
    %v3180 = vpop.f32.mrf.mxu0
    %v3181 = vadd.f32 %v3093, %v3180
    %v3182 = vpop.f32.mrf.mxu0
    %3183 = vdwg.mxu0
    %v3184 = vadd.f32 %v3178, %v1879
    %v3185 = vadd.f32 %v3181, %v1882
    %s3186 = scalar_lea.vmem %s11, 1
    %v3187 = vld [vmem:[%s3186] sm:$0x1]
    %s3188 = scalar_lea.vmem %s12, 1
    %v3189 = vld [vmem:[%s3188] sm:$0x1]
    %3190 = vadd.xlane.f32.xlu0 %v3184
    %v3191 = vpop.xlane.xlu0 %3190
    %3192 = vadd.xlane.f32.xlu0 %v3185
    %v3193 = vpop.xlane.xlu0 %3192
    %v3194 = vmul.f32 %v3191, %v126
    %v3195 = vmul.f32 %v3193, %v126
    %v3196 = vsub.f32 %v3184, %v3194
    %v3197 = vsub.f32 %v3185, %v3195
    %v3198 = vmul.f32 %v3196, %v3196
    %v3199 = vmul.f32 %v3197, %v3197
    %3200 = vadd.xlane.f32.xlu0 %v3198
    %v3201 = vpop.xlane.xlu0 %3200
    %3202 = vadd.xlane.f32.xlu0 %v3199
    %v3203 = vpop.xlane.xlu0 %3202
    %v3204 = vmul.f32 %v3201, %v126
    %v3205 = vmul.f32 %v3203, %v126
    %v3206 = vadd.f32 %v3204, 1e-05
    %v3207 = vadd.f32 %v3205, 1e-05
    %v3208 = vrsqrt.pop %v3206
    %v3209 = vrsqrt.pop %v3207
    %v3210 = vmul.f32 %v3196, %v3208
    %v3211 = vmul.f32 %v3197, %v3209
    %v3213 = vlaneseq
    %v3214 = vshrl.u32 %v3213, 7
    %v3215 = vsub.s32 0, %v3214
    %v3216 = vrot.slane %v3187, %v3215
    %v3218 = vmul.f32 %v3210, %v3216
    %v3219 = vmul.f32 %v3211, %v3216
    %v3221 = vlaneseq
    %v3222 = vshrl.u32 %v3221, 7
    %v3223 = vsub.s32 0, %v3222
    %v3224 = vrot.slane %v3189, %v3223
    %v3226 = vadd.f32 %v3218, %v3224
    %v3227 = vadd.f32 %v3219, %v3224
    %s3228 = scalar_lea.vmem [#allocation2], 128
    %v3229 = vld [vmem:[%s3228] sm:$0xff]
    %v3230 = vld [vmem:[%s3228 + $0x8] sm:$0xff]
    %v3231 = vld [vmem:[%s3228 + $0x10] sm:$0xff]
    %v3232 = vld [vmem:[%s3228 + $0x18] sm:$0xff]
    %v3233 = vld [vmem:[%s3228 + $0x20] sm:$0xff]
    %v3234 = vld [vmem:[%s3228 + $0x28] sm:$0xff]
    %v3235 = vld [vmem:[%s3228 + $0x30] sm:$0xff]
    %v3236 = vld [vmem:[%s3228 + $0x38] sm:$0xff]
    %v3237 = vld [vmem:[%s3228 + $0x40] sm:$0xff]
    %v3238 = vld [vmem:[%s3228 + $0x48] sm:$0xff]
    %v3239 = vld [vmem:[%s3228 + $0x50] sm:$0xff]
    %v3240 = vld [vmem:[%s3228 + $0x58] sm:$0xff]
    %v3241 = vld [vmem:[%s3228 + $0x60] sm:$0xff]
    %v3242 = vld [vmem:[%s3228 + $0x68] sm:$0xff]
    %v3243 = vld [vmem:[%s3228 + $0x70] sm:$0xff]
    %v3244 = vld [vmem:[%s3228 + $0x78] sm:$0xff]
    %v3245 = vpack.c.bf16 %v3227, %v3226
    %s3246 = scalar_lea.vmem %s14, 2
    %v3247 = vld [vmem:[%s3246] sm:$0x3]
    %v3249 = vlaneseq
    %v3250 = vshrl.u32 %v3249, 7
    %v3251 = vsub.s32 0, %v3250
    %v3252 = vrot.slane %v3247, %v3251
    %v3253 = vlaneseq
    %v3254 = vshrl.u32 %v3253, 7
    %v3255 = vsub.s32 1, %v3254
    %v3256 = vrot.slane %v3247, %v3255
    %v3275 = vunpack.c.l.b16 %v3229
    %v3276 = vunpack.c.h.b16 %v3229
    %v3277 = vunpack.c.l.b16 %v3230
    %v3278 = vunpack.c.h.b16 %v3230
    %v3279 = vunpack.c.l.b16 %v3231
    %v3280 = vunpack.c.h.b16 %v3231
    %v3281 = vunpack.c.l.b16 %v3232
    %v3282 = vunpack.c.h.b16 %v3232
    %v3283 = vunpack.c.l.b16 %v3233
    %v3284 = vunpack.c.h.b16 %v3233
    %v3285 = vunpack.c.l.b16 %v3234
    %v3286 = vunpack.c.h.b16 %v3234
    %v3287 = vunpack.c.l.b16 %v3235
    %v3288 = vunpack.c.h.b16 %v3235
    %v3289 = vunpack.c.l.b16 %v3236
    %v3290 = vunpack.c.h.b16 %v3236
    %v3291 = vunpack.c.l.b16 %v3237
    %v3292 = vunpack.c.h.b16 %v3237
    %v3293 = vunpack.c.l.b16 %v3238
    %v3294 = vunpack.c.h.b16 %v3238
    %v3295 = vunpack.c.l.b16 %v3239
    %v3296 = vunpack.c.h.b16 %v3239
    %v3297 = vunpack.c.l.b16 %v3240
    %v3298 = vunpack.c.h.b16 %v3240
    %v3299 = vunpack.c.l.b16 %v3241
    %v3300 = vunpack.c.h.b16 %v3241
    %v3301 = vunpack.c.l.b16 %v3242
    %v3302 = vunpack.c.h.b16 %v3242
    %v3303 = vunpack.c.l.b16 %v3243
    %v3304 = vunpack.c.h.b16 %v3243
    %v3305 = vunpack.c.l.b16 %v3244
    %v3306 = vunpack.c.h.b16 %v3244
    %v3307 = vpack.c.b16 %v3277, %v3275
    %v3308 = vpack.c.b16 %v3278, %v3276
    %v3309 = vpack.c.b16 %v3281, %v3279
    %v3310 = vpack.c.b16 %v3282, %v3280
    %v3311 = vpack.c.b16 %v3285, %v3283
    %v3312 = vpack.c.b16 %v3286, %v3284
    %v3313 = vpack.c.b16 %v3289, %v3287
    %v3314 = vpack.c.b16 %v3290, %v3288
    %v3315 = vpack.c.b16 %v3293, %v3291
    %v3316 = vpack.c.b16 %v3294, %v3292
    %v3317 = vpack.c.b16 %v3297, %v3295
    %v3318 = vpack.c.b16 %v3298, %v3296
    %v3319 = vpack.c.b16 %v3301, %v3299
    %v3320 = vpack.c.b16 %v3302, %v3300
    %v3321 = vpack.c.b16 %v3305, %v3303
    %v3322 = vpack.c.b16 %v3306, %v3304
    %3339 = vmatprep.subr.bf16.mxu0 %v3322
    %3340 = vmatpush1.bf16.msra.mxu0 %v3321
    %3341 = vmatprep.subr.bf16.mxu0 %v3320
    %3342 = vmatpush1.bf16.msra.mxu0 %v3319
    %3343 = vmatprep.subr.bf16.mxu0 %v3318
    %3344 = vmatpush1.bf16.msra.mxu0 %v3317
    %3345 = vmatprep.subr.bf16.mxu0 %v3316
    %3346 = vmatpush1.bf16.msra.mxu0 %v3315
    %3347 = vmatprep.subr.bf16.mxu0 %v3314
    %3348 = vmatpush1.bf16.msra.mxu0 %v3313
    %3349 = vmatprep.subr.bf16.mxu0 %v3312
    %3350 = vmatpush1.bf16.msra.mxu0 %v3311
    %3351 = vmatprep.subr.bf16.mxu0 %v3310
    %3352 = vmatpush1.bf16.msra.mxu0 %v3309
    %3353 = vmatprep.subr.bf16.mxu0 %v3308
    %3354 = vmatpush1.bf16.msra.mxu0 %v3307
    %3355 = vmatprep.subr.bf16.mxu0 0
    %3356 = vmatpush2.bf16.msra.mxu0 0
    %3357 = vmatprep.subr.bf16.mxu0 0
    %3358 = vmatpush2.bf16.msra.mxu0 0
    %3359 = vmatprep.subr.bf16.mxu0 0
    %3360 = vmatpush2.bf16.msra.mxu0 0
    %3361 = vmatprep.subr.bf16.mxu0 0
    %3362 = vmatpush2.bf16.msra.mxu0 0
    %3363 = vmatprep.subr.bf16.mxu0 0
    %3364 = vmatpush2.bf16.msra.mxu0 0
    %3365 = vmatprep.subr.bf16.mxu0 0
    %3366 = vmatpush2.bf16.msra.mxu0 0
    %3367 = vmatprep.subr.bf16.mxu0 0
    %3368 = vmatpush2.bf16.msra.mxu0 0
    %3369 = vmatprep.subr.bf16.mxu0 0
    %3370 = vmatpush2.bf16.msra.mxu0 0
    %3371 = vmatprep.mubr.bf16.mxu0 0
    %3372 = vmatmul.mubr.bf16.gmra.mxu0 %v3245
    %v3373 = vpop.f32.mrf.mxu0
    %v3374 = vadd.f32 %v3252, %v3373
    %v3375 = vpop.f32.mrf.mxu0
    %v3376 = vadd.f32 %v3256, %v3375
    %v3377 = vpop.f32.mrf.mxu0
    %v3378 = vadd.f32 %v3252, %v3377
    %v3379 = vpop.f32.mrf.mxu0
    %v3380 = vadd.f32 %v3256, %v3379
    %3381 = vdwg.mxu0
    %v3382 = vmul.f32 %v3374, 0.5
    %v3383 = vmul.f32 %v3376, 0.5
    %v3384 = vmul.f32 %v3378, 0.5
    %v3385 = vmul.f32 %v3380, 0.5
    %v3386 = vmul.f32 %v3374, 0.044715
    %v3387 = vmul.f32 %v3376, 0.044715
    %v3388 = vmul.f32 %v3378, 0.044715
    %v3389 = vmul.f32 %v3380, 0.044715
    %v3390 = vmul.f32 %v3386, %v3374
    %v3391 = vmul.f32 %v3387, %v3376
    %v3392 = vmul.f32 %v3388, %v3378
    %v3393 = vmul.f32 %v3389, %v3380
    %v3394 = vmul.f32 %v3390, %v3374
    %v3395 = vmul.f32 %v3391, %v3376
    %v3396 = vmul.f32 %v3392, %v3378
    %v3397 = vmul.f32 %v3393, %v3380
    %v3398 = vadd.f32 %v3374, %v3394
    %v3399 = vadd.f32 %v3376, %v3395
    %v3400 = vadd.f32 %v3378, %v3396
    %v3401 = vadd.f32 %v3380, %v3397
    %v3402 = vmul.f32 %v3398, 0.7978846
    %v3403 = vmul.f32 %v3399, 0.7978846
    %v3404 = vmul.f32 %v3400, 0.7978846
    %v3405 = vmul.f32 %v3401, 0.7978846
    %v3406 = vtanh.pop %v3402
    %v3407 = vtanh.pop %v3403
    %v3408 = vtanh.pop %v3404
    %v3409 = vtanh.pop %v3405
    %v3410 = vadd.f32 %v3406, 1.0
    %v3411 = vadd.f32 %v3407, 1.0
    %v3412 = vadd.f32 %v3408, 1.0
    %v3413 = vadd.f32 %v3409, 1.0
    %v3414 = vmul.f32 %v3382, %v3410
    %v3415 = vmul.f32 %v3383, %v3411
    %v3416 = vmul.f32 %v3384, %v3412
    %v3417 = vmul.f32 %v3385, %v3413
    %s3418 = scalar_lea.vmem [#allocation5], 128
    %v3419 = vld [vmem:[%s3418] sm:$0xf]
    %v3420 = vld [vmem:[%s3418 + $0x4] sm:$0xf]
    %v3421 = vld [vmem:[%s3418 + $0x8] sm:$0xf]
    %v3422 = vld [vmem:[%s3418 + $0xc] sm:$0xf]
    %v3423 = vld [vmem:[%s3418 + $0x10] sm:$0xf]
    %v3424 = vld [vmem:[%s3418 + $0x14] sm:$0xf]
    %v3425 = vld [vmem:[%s3418 + $0x18] sm:$0xf]
    %v3426 = vld [vmem:[%s3418 + $0x1c] sm:$0xf]
    %v3427 = vld [vmem:[%s3418 + $0x20] sm:$0xf]
    %v3428 = vld [vmem:[%s3418 + $0x24] sm:$0xf]
    %v3429 = vld [vmem:[%s3418 + $0x28] sm:$0xf]
    %v3430 = vld [vmem:[%s3418 + $0x2c] sm:$0xf]
    %v3431 = vld [vmem:[%s3418 + $0x30] sm:$0xf]
    %v3432 = vld [vmem:[%s3418 + $0x34] sm:$0xf]
    %v3433 = vld [vmem:[%s3418 + $0x38] sm:$0xf]
    %v3434 = vld [vmem:[%s3418 + $0x3c] sm:$0xf]
    %v3435 = vld [vmem:[%s3418 + $0x40] sm:$0xf]
    %v3436 = vld [vmem:[%s3418 + $0x44] sm:$0xf]
    %v3437 = vld [vmem:[%s3418 + $0x48] sm:$0xf]
    %v3438 = vld [vmem:[%s3418 + $0x4c] sm:$0xf]
    %v3439 = vld [vmem:[%s3418 + $0x50] sm:$0xf]
    %v3440 = vld [vmem:[%s3418 + $0x54] sm:$0xf]
    %v3441 = vld [vmem:[%s3418 + $0x58] sm:$0xf]
    %v3442 = vld [vmem:[%s3418 + $0x5c] sm:$0xf]
    %v3443 = vld [vmem:[%s3418 + $0x60] sm:$0xf]
    %v3444 = vld [vmem:[%s3418 + $0x64] sm:$0xf]
    %v3445 = vld [vmem:[%s3418 + $0x68] sm:$0xf]
    %v3446 = vld [vmem:[%s3418 + $0x6c] sm:$0xf]
    %v3447 = vld [vmem:[%s3418 + $0x70] sm:$0xf]
    %v3448 = vld [vmem:[%s3418 + $0x74] sm:$0xf]
    %v3449 = vld [vmem:[%s3418 + $0x78] sm:$0xf]
    %v3450 = vld [vmem:[%s3418 + $0x7c] sm:$0xf]
    %v3451 = vpack.c.bf16 %v3416, %v3414
    %v3452 = vpack.c.bf16 %v3417, %v3415
    %s3453 = scalar_lea.vmem %s16, 1
    %v3454 = vld [vmem:[%s3453] sm:$0x1]
    %v3456 = vlaneseq
    %v3457 = vshrl.u32 %v3456, 7
    %v3458 = vsub.s32 0, %v3457
    %v3459 = vrot.slane %v3454, %v3458
    %v3493 = vunpack.c.l.b16 %v3419
    %v3494 = vunpack.c.l.b16 %v3420
    %v3495 = vunpack.c.l.b16 %v3421
    %v3496 = vunpack.c.l.b16 %v3422
    %v3497 = vunpack.c.l.b16 %v3423
    %v3498 = vunpack.c.l.b16 %v3424
    %v3499 = vunpack.c.l.b16 %v3425
    %v3500 = vunpack.c.l.b16 %v3426
    %v3501 = vunpack.c.l.b16 %v3427
    %v3502 = vunpack.c.l.b16 %v3428
    %v3503 = vunpack.c.l.b16 %v3429
    %v3504 = vunpack.c.l.b16 %v3430
    %v3505 = vunpack.c.l.b16 %v3431
    %v3506 = vunpack.c.l.b16 %v3432
    %v3507 = vunpack.c.l.b16 %v3433
    %v3508 = vunpack.c.l.b16 %v3434
    %v3509 = vunpack.c.l.b16 %v3435
    %v3510 = vunpack.c.l.b16 %v3436
    %v3511 = vunpack.c.l.b16 %v3437
    %v3512 = vunpack.c.l.b16 %v3438
    %v3513 = vunpack.c.l.b16 %v3439
    %v3514 = vunpack.c.l.b16 %v3440
    %v3515 = vunpack.c.l.b16 %v3441
    %v3516 = vunpack.c.l.b16 %v3442
    %v3517 = vunpack.c.l.b16 %v3443
    %v3518 = vunpack.c.l.b16 %v3444
    %v3519 = vunpack.c.l.b16 %v3445
    %v3520 = vunpack.c.l.b16 %v3446
    %v3521 = vunpack.c.l.b16 %v3447
    %v3522 = vunpack.c.l.b16 %v3448
    %v3523 = vunpack.c.l.b16 %v3449
    %v3524 = vunpack.c.l.b16 %v3450
    %v3525 = vpack.c.b16 %v3494, %v3493
    %v3526 = vpack.c.b16 %v3496, %v3495
    %v3527 = vpack.c.b16 %v3498, %v3497
    %v3528 = vpack.c.b16 %v3500, %v3499
    %v3529 = vpack.c.b16 %v3502, %v3501
    %v3530 = vpack.c.b16 %v3504, %v3503
    %v3531 = vpack.c.b16 %v3506, %v3505
    %v3532 = vpack.c.b16 %v3508, %v3507
    %v3533 = vpack.c.b16 %v3510, %v3509
    %v3534 = vpack.c.b16 %v3512, %v3511
    %v3535 = vpack.c.b16 %v3514, %v3513
    %v3536 = vpack.c.b16 %v3516, %v3515
    %v3537 = vpack.c.b16 %v3518, %v3517
    %v3538 = vpack.c.b16 %v3520, %v3519
    %v3539 = vpack.c.b16 %v3522, %v3521
    %v3540 = vpack.c.b16 %v3524, %v3523
    %3557 = vmatprep.subr.bf16.mxu0 0
    %3558 = vmatpush1.bf16.msra.mxu0 %v3532
    %3559 = vmatprep.subr.bf16.mxu0 0
    %3560 = vmatpush1.bf16.msra.mxu0 %v3531
    %3561 = vmatprep.subr.bf16.mxu0 0
    %3562 = vmatpush1.bf16.msra.mxu0 %v3530
    %3563 = vmatprep.subr.bf16.mxu0 0
    %3564 = vmatpush1.bf16.msra.mxu0 %v3529
    %3565 = vmatprep.subr.bf16.mxu0 0
    %3566 = vmatpush1.bf16.msra.mxu0 %v3528
    %3567 = vmatprep.subr.bf16.mxu0 0
    %3568 = vmatpush1.bf16.msra.mxu0 %v3527
    %3569 = vmatprep.subr.bf16.mxu0 0
    %3570 = vmatpush1.bf16.msra.mxu0 %v3526
    %3571 = vmatprep.subr.bf16.mxu0 0
    %3572 = vmatpush1.bf16.msra.mxu0 %v3525
    %3573 = vmatprep.subr.bf16.mxu0 0
    %3574 = vmatpush2.bf16.msra.mxu0 %v3540
    %3575 = vmatprep.subr.bf16.mxu0 0
    %3576 = vmatpush2.bf16.msra.mxu0 %v3539
    %3577 = vmatprep.subr.bf16.mxu0 0
    %3578 = vmatpush2.bf16.msra.mxu0 %v3538
    %3579 = vmatprep.subr.bf16.mxu0 0
    %3580 = vmatpush2.bf16.msra.mxu0 %v3537
    %3581 = vmatprep.subr.bf16.mxu0 0
    %3582 = vmatpush2.bf16.msra.mxu0 %v3536
    %3583 = vmatprep.subr.bf16.mxu0 0
    %3584 = vmatpush2.bf16.msra.mxu0 %v3535
    %3585 = vmatprep.subr.bf16.mxu0 0
    %3586 = vmatpush2.bf16.msra.mxu0 %v3534
    %3587 = vmatprep.subr.bf16.mxu0 0
    %3588 = vmatpush2.bf16.msra.mxu0 %v3533
    %3589 = vmatprep.mubr.bf16.mxu0 %v3452
    %3590 = vmatmul.mubr.bf16.gmra.mxu0 %v3451
    %v3591 = vpop.f32.mrf.mxu0
    %v3592 = vadd.f32 %v3459, %v3591
    %v3593 = vpop.f32.mrf.mxu0
    %v3594 = vpop.f32.mrf.mxu0
    %v3595 = vadd.f32 %v3459, %v3594
    %v3596 = vpop.f32.mrf.mxu0
    %3597 = vdwg.mxu0
    %v3598 = vld [vmem:[%s2] sm:$0x1]
    %v3599 = vpack.c.bf16 %v3595, %v3592
    %vm3600 = vcmask 130048
    %v3602 = vsel %vm3600, %v3598, 0
    %3604 = vmatprep.subr.bf16.mxu0 0
    %3605 = vmatpush1.bf16.msra.mxu0 0
    %3606 = vmatprep.subr.bf16.mxu0 0
    %3607 = vmatpush1.bf16.msra.mxu0 0
    %3608 = vmatprep.subr.bf16.mxu0 0
    %3609 = vmatpush1.bf16.msra.mxu0 0
    %3610 = vmatprep.subr.bf16.mxu0 0
    %3611 = vmatpush1.bf16.msra.mxu0 0
    %3612 = vmatprep.subr.bf16.mxu0 0
    %3613 = vmatpush1.bf16.msra.mxu0 0
    %3614 = vmatprep.subr.bf16.mxu0 0
    %3615 = vmatpush1.bf16.msra.mxu0 0
    %3616 = vmatprep.subr.bf16.mxu0 0
    %3617 = vmatpush1.bf16.msra.mxu0 0
    %3618 = vmatprep.subr.bf16.mxu0 0
    %3619 = vmatpush1.bf16.msra.mxu0 %v3599
    %3620 = vmatprep.subr.bf16.mxu0 0
    %3621 = vmatpush2.bf16.msra.mxu0 0
    %3622 = vmatprep.subr.bf16.mxu0 0
    %3623 = vmatpush2.bf16.msra.mxu0 0
    %3624 = vmatprep.subr.bf16.mxu0 0
    %3625 = vmatpush2.bf16.msra.mxu0 0
    %3626 = vmatprep.subr.bf16.mxu0 0
    %3627 = vmatpush2.bf16.msra.mxu0 0
    %3628 = vmatprep.subr.bf16.mxu0 0
    %3629 = vmatpush2.bf16.msra.mxu0 0
    %3630 = vmatprep.subr.bf16.mxu0 0
    %3631 = vmatpush2.bf16.msra.mxu0 0
    %3632 = vmatprep.subr.bf16.mxu0 0
    %3633 = vmatpush2.bf16.msra.mxu0 0
    %3634 = vmatprep.subr.bf16.mxu0 0
    %3635 = vmatpush2.bf16.msra.mxu0 0
    %3636 = vmatprep.mubr.bf16.mxu0 0
    %3637 = vmatmul.mubr.bf16.gmra.mxu0 %v3602
    %v3638 = vpop.f32.mrf.mxu0
    %v3639 = vadd.f32 0.0, %v3638
    %v3640 = vpop.f32.mrf.mxu0
    %v3641 = vpop.f32.mrf.mxu0
    %v3642 = vpop.f32.mrf.mxu0
    %3643 = vdwg.mxu0
    %v3644 = vld [vmem:[%s17] sm:$0xf]
    %v3645 = vld [vmem:[%s17 + $0x4] sm:$0xf]
    %v3646 = vld [vmem:[%s17 + $0x8] sm:$0xf]
    %v3647 = vld [vmem:[%s17 + $0xc] sm:$0xf]
    %v3648 = vld [vmem:[%s17 + $0x10] sm:$0xf]
    %v3649 = vld [vmem:[%s17 + $0x14] sm:$0xf]
    %v3650 = vld [vmem:[%s17 + $0x18] sm:$0xf]
    %v3651 = vld [vmem:[%s17 + $0x1c] sm:$0xf]
    %v3652 = vld [vmem:[%s17 + $0x20] sm:$0xf]
    %v3653 = vld [vmem:[%s17 + $0x24] sm:$0xf]
    %v3654 = vld [vmem:[%s17 + $0x28] sm:$0xf]
    %v3655 = vld [vmem:[%s17 + $0x2c] sm:$0xf]
    %v3656 = vld [vmem:[%s17 + $0x30] sm:$0xf]
    %v3657 = vld [vmem:[%s17 + $0x34] sm:$0xf]
    %v3658 = vld [vmem:[%s17 + $0x38] sm:$0xf]
    %v3659 = vld [vmem:[%s17 + $0x3c] sm:$0xf]
    %v3660 = vpack.c.bf16 %v3639, %v3639
    %v3661 = vld [vmem:[%s18] sm:$0x1]
    %v3663 = vlaneseq
    %v3664 = vshrl.u32 %v3663, 7
    %v3665 = vsub.s32 0, %v3664
    %v3666 = vrot.slane %v3661, %v3665
    %v3684 = vunpack.c.l.b16 %v3644
    %v3685 = vunpack.c.l.b16 %v3645
    %v3686 = vunpack.c.l.b16 %v3646
    %v3687 = vunpack.c.l.b16 %v3647
    %v3688 = vunpack.c.l.b16 %v3648
    %v3689 = vunpack.c.l.b16 %v3649
    %v3690 = vunpack.c.l.b16 %v3650
    %v3691 = vunpack.c.l.b16 %v3651
    %v3692 = vunpack.c.l.b16 %v3652
    %v3693 = vunpack.c.l.b16 %v3653
    %v3694 = vunpack.c.l.b16 %v3654
    %v3695 = vunpack.c.l.b16 %v3655
    %v3696 = vunpack.c.l.b16 %v3656
    %v3697 = vunpack.c.l.b16 %v3657
    %v3698 = vunpack.c.l.b16 %v3658
    %v3699 = vunpack.c.l.b16 %v3659
    %v3700 = vpack.c.b16 %v3685, %v3684
    %v3701 = vpack.c.b16 %v3687, %v3686
    %v3702 = vpack.c.b16 %v3689, %v3688
    %v3703 = vpack.c.b16 %v3691, %v3690
    %v3704 = vpack.c.b16 %v3693, %v3692
    %v3705 = vpack.c.b16 %v3695, %v3694
    %v3706 = vpack.c.b16 %v3697, %v3696
    %v3707 = vpack.c.b16 %v3699, %v3698
    %3716 = vmatprep.subr.bf16.mxu0 0
    %3717 = vmatpush1.bf16.msra.mxu0 %v3707
    %3718 = vmatprep.subr.bf16.mxu0 0
    %3719 = vmatpush1.bf16.msra.mxu0 %v3706
    %3720 = vmatprep.subr.bf16.mxu0 0
    %3721 = vmatpush1.bf16.msra.mxu0 %v3705
    %3722 = vmatprep.subr.bf16.mxu0 0
    %3723 = vmatpush1.bf16.msra.mxu0 %v3704
    %3724 = vmatprep.subr.bf16.mxu0 0
    %3725 = vmatpush1.bf16.msra.mxu0 %v3703
    %3726 = vmatprep.subr.bf16.mxu0 0
    %3727 = vmatpush1.bf16.msra.mxu0 %v3702
    %3728 = vmatprep.subr.bf16.mxu0 0
    %3729 = vmatpush1.bf16.msra.mxu0 %v3701
    %3730 = vmatprep.subr.bf16.mxu0 0
    %3731 = vmatpush1.bf16.msra.mxu0 %v3700
    %3732 = vmatprep.subr.bf16.mxu0 0
    %3733 = vmatpush2.bf16.msra.mxu0 0
    %3734 = vmatprep.subr.bf16.mxu0 0
    %3735 = vmatpush2.bf16.msra.mxu0 0
    %3736 = vmatprep.subr.bf16.mxu0 0
    %3737 = vmatpush2.bf16.msra.mxu0 0
    %3738 = vmatprep.subr.bf16.mxu0 0
    %3739 = vmatpush2.bf16.msra.mxu0 0
    %3740 = vmatprep.subr.bf16.mxu0 0
    %3741 = vmatpush2.bf16.msra.mxu0 0
    %3742 = vmatprep.subr.bf16.mxu0 0
    %3743 = vmatpush2.bf16.msra.mxu0 0
    %3744 = vmatprep.subr.bf16.mxu0 0
    %3745 = vmatpush2.bf16.msra.mxu0 0
    %3746 = vmatprep.subr.bf16.mxu0 0
    %3747 = vmatpush2.bf16.msra.mxu0 0
    %3748 = vmatprep.mubr.bf16.mxu0 0
    %3749 = vmatmul.mubr.bf16.gmra.mxu0 %v3660
    %v3750 = vpop.f32.mrf.mxu0
    %v3751 = vadd.f32 %v3666, %v3750
    %v3752 = vpop.f32.mrf.mxu0
    %v3753 = vpop.f32.mrf.mxu0
    %v3754 = vpop.f32.mrf.mxu0
    %3755 = vdwg.mxu0
    %v3756 = vtanh.pop %v3751
    %v3757 = vld [vmem:[%s19] sm:$0xf]
    %v3758 = vld [vmem:[%s19 + $0x4] sm:$0xf]
    %v3759 = vld [vmem:[%s19 + $0x8] sm:$0xf]
    %v3760 = vld [vmem:[%s19 + $0xc] sm:$0xf]
    %v3761 = vld [vmem:[%s19 + $0x10] sm:$0xf]
    %v3762 = vld [vmem:[%s19 + $0x14] sm:$0xf]
    %v3763 = vld [vmem:[%s19 + $0x18] sm:$0xf]
    %v3764 = vld [vmem:[%s19 + $0x1c] sm:$0xf]
    %v3765 = vld [vmem:[%s19 + $0x20] sm:$0xf]
    %v3766 = vld [vmem:[%s19 + $0x24] sm:$0xf]
    %v3767 = vld [vmem:[%s19 + $0x28] sm:$0xf]
    %v3768 = vld [vmem:[%s19 + $0x2c] sm:$0xf]
    %v3769 = vld [vmem:[%s19 + $0x30] sm:$0xf]
    %v3770 = vld [vmem:[%s19 + $0x34] sm:$0xf]
    %v3771 = vld [vmem:[%s19 + $0x38] sm:$0xf]
    %v3772 = vld [vmem:[%s19 + $0x3c] sm:$0xf]
    %v3773 = vpack.c.bf16 %v3756, %v3756
    %v3774 = vld [vmem:[%s20] sm:$0x1]
    %v3776 = vlaneseq
    %v3777 = vshrl.u32 %v3776, 7
    %v3778 = vsub.s32 0, %v3777
    %v3779 = vrot.slane %v3774, %v3778
    %v3797 = vunpack.c.l.b16 %v3757
    %v3798 = vunpack.c.l.b16 %v3758
    %v3799 = vunpack.c.l.b16 %v3759
    %v3800 = vunpack.c.l.b16 %v3760
    %v3801 = vunpack.c.l.b16 %v3761
    %v3802 = vunpack.c.l.b16 %v3762
    %v3803 = vunpack.c.l.b16 %v3763
    %v3804 = vunpack.c.l.b16 %v3764
    %v3805 = vunpack.c.l.b16 %v3765
    %v3806 = vunpack.c.l.b16 %v3766
    %v3807 = vunpack.c.l.b16 %v3767
    %v3808 = vunpack.c.l.b16 %v3768
    %v3809 = vunpack.c.l.b16 %v3769
    %v3810 = vunpack.c.l.b16 %v3770
    %v3811 = vunpack.c.l.b16 %v3771
    %v3812 = vunpack.c.l.b16 %v3772
    %v3813 = vpack.c.b16 %v3798, %v3797
    %v3814 = vpack.c.b16 %v3800, %v3799
    %v3815 = vpack.c.b16 %v3802, %v3801
    %v3816 = vpack.c.b16 %v3804, %v3803
    %v3817 = vpack.c.b16 %v3806, %v3805
    %v3818 = vpack.c.b16 %v3808, %v3807
    %v3819 = vpack.c.b16 %v3810, %v3809
    %v3820 = vpack.c.b16 %v3812, %v3811
    %3829 = vmatprep.subr.bf16.mxu0 0
    %3830 = vmatpush1.bf16.msra.mxu0 %v3820
    %3831 = vmatprep.subr.bf16.mxu0 0
    %3832 = vmatpush1.bf16.msra.mxu0 %v3819
    %3833 = vmatprep.subr.bf16.mxu0 0
    %3834 = vmatpush1.bf16.msra.mxu0 %v3818
    %3835 = vmatprep.subr.bf16.mxu0 0
    %3836 = vmatpush1.bf16.msra.mxu0 %v3817
    %3837 = vmatprep.subr.bf16.mxu0 0
    %3838 = vmatpush1.bf16.msra.mxu0 %v3816
    %3839 = vmatprep.subr.bf16.mxu0 0
    %3840 = vmatpush1.bf16.msra.mxu0 %v3815
    %3841 = vmatprep.subr.bf16.mxu0 0
    %3842 = vmatpush1.bf16.msra.mxu0 %v3814
    %3843 = vmatprep.subr.bf16.mxu0 0
    %3844 = vmatpush1.bf16.msra.mxu0 %v3813
    %3845 = vmatprep.subr.bf16.mxu0 0
    %3846 = vmatpush2.bf16.msra.mxu0 0
    %3847 = vmatprep.subr.bf16.mxu0 0
    %3848 = vmatpush2.bf16.msra.mxu0 0
    %3849 = vmatprep.subr.bf16.mxu0 0
    %3850 = vmatpush2.bf16.msra.mxu0 0
    %3851 = vmatprep.subr.bf16.mxu0 0
    %3852 = vmatpush2.bf16.msra.mxu0 0
    %3853 = vmatprep.subr.bf16.mxu0 0
    %3854 = vmatpush2.bf16.msra.mxu0 0
    %3855 = vmatprep.subr.bf16.mxu0 0
    %3856 = vmatpush2.bf16.msra.mxu0 0
    %3857 = vmatprep.subr.bf16.mxu0 0
    %3858 = vmatpush2.bf16.msra.mxu0 0
    %3859 = vmatprep.subr.bf16.mxu0 0
    %3860 = vmatpush2.bf16.msra.mxu0 0
    %3861 = vmatprep.mubr.bf16.mxu0 0
    %3862 = vmatmul.mubr.bf16.gmra.mxu0 %v3773
    %v3863 = vpop.f32.mrf.mxu0
    %v3864 = vadd.f32 %v3779, %v3863
    %v3865 = vpop.f32.mrf.mxu0
    %v3866 = vpop.f32.mrf.mxu0
    %v3867 = vpop.f32.mrf.mxu0
    %3868 = vdwg.mxu0
    %vm3869 = vcmask 9216
    %3870 = vst.msk [vmem:[#allocation7] sm:$0x3] %vm3869, %v3864
    %v3871 = vld [vmem:[%s3] sm:$0xf]
    %v3873 = vsel %vm3600, %v3871, 0
    %3875 = vmatprep.subr.bf16.mxu0 0
    %3876 = vmatpush1.bf16.msra.mxu0 0
    %3877 = vmatprep.subr.bf16.mxu0 0
    %3878 = vmatpush1.bf16.msra.mxu0 0
    %3879 = vmatprep.subr.bf16.mxu0 0
    %3880 = vmatpush1.bf16.msra.mxu0 0
    %3881 = vmatprep.subr.bf16.mxu0 0
    %3882 = vmatpush1.bf16.msra.mxu0 0
    %3883 = vmatprep.subr.bf16.mxu0 0
    %3884 = vmatpush1.bf16.msra.mxu0 0
    %3885 = vmatprep.subr.bf16.mxu0 0
    %3886 = vmatpush1.bf16.msra.mxu0 0
    %3887 = vmatprep.subr.bf16.mxu0 0
    %3888 = vmatpush1.bf16.msra.mxu0 0
    %3889 = vmatprep.subr.bf16.mxu0 0
    %3890 = vmatpush1.bf16.msra.mxu0 %v3599
    %3891 = vmatprep.subr.bf16.mxu0 0
    %3892 = vmatpush2.bf16.msra.mxu0 0
    %3893 = vmatprep.subr.bf16.mxu0 0
    %3894 = vmatpush2.bf16.msra.mxu0 0
    %3895 = vmatprep.subr.bf16.mxu0 0
    %3896 = vmatpush2.bf16.msra.mxu0 0
    %3897 = vmatprep.subr.bf16.mxu0 0
    %3898 = vmatpush2.bf16.msra.mxu0 0
    %3899 = vmatprep.subr.bf16.mxu0 0
    %3900 = vmatpush2.bf16.msra.mxu0 0
    %3901 = vmatprep.subr.bf16.mxu0 0
    %3902 = vmatpush2.bf16.msra.mxu0 0
    %3903 = vmatprep.subr.bf16.mxu0 0
    %3904 = vmatpush2.bf16.msra.mxu0 0
    %3905 = vmatprep.subr.bf16.mxu0 0
    %3906 = vmatpush2.bf16.msra.mxu0 0
    %3907 = vmatprep.mubr.bf16.mxu0 0
    %3908 = vmatmul.mubr.bf16.gmra.mxu0 %v3873
    %v3909 = vpop.f32.mrf.mxu0
    %v3910 = vadd.f32 0.0, %v3909
    %v3911 = vpop.f32.mrf.mxu0
    %v3912 = vpop.f32.mrf.mxu0
    %v3913 = vpop.f32.mrf.mxu0
    %3914 = vdwg.mxu0
    %v3915 = vld [vmem:[%s4] sm:$0xff]
    %vm3916 = vcmp.ne.s32.totalorder %v3915, 0
    %v3917 = vsel %vm3916, 1, 0
    %3918 = vset.pattern.permute.xlu0 0
    %3919 = vperm.xlu0 %3918, %v3917
    %v3920 = vpop.permute.xlu0 %3919
    %vm3921 = vcmp.eq.s32.totalorder %v3920, 1
    %v3922 = vsel %vm3921, -1e+09, %v3910
    %3923 = vmax.xlane.f32.xlu0 %v3922
    %v3924 = vpop.xlane.xlu0 %3923
    %v3925 = vsub.f32 %v3922, %v3924
    %v3926 = vmul.f32 %v3925, 1.442695
    %v3927 = vpow.pop %v3926
    %3928 = vadd.xlane.f32.xlu0 %v3927
    %v3929 = vpop.xlane.xlu0 %3928
    %v3930 = vrcp.pop %v3929
    %v3931 = vmul.f32 %v3927, %v3930
    %v3932 = vld [vmem:[%s21] sm:$0xf]
    %v3933 = vld [vmem:[%s21 + $0x4] sm:$0xf]
    %v3934 = vld [vmem:[%s21 + $0x8] sm:$0xf]
    %v3935 = vld [vmem:[%s21 + $0xc] sm:$0xf]
    %v3936 = vld [vmem:[%s21 + $0x10] sm:$0xf]
    %v3937 = vld [vmem:[%s21 + $0x14] sm:$0xf]
    %v3938 = vld [vmem:[%s21 + $0x18] sm:$0xf]
    %v3939 = vld [vmem:[%s21 + $0x1c] sm:$0xf]
    %v3940 = vld [vmem:[%s21 + $0x20] sm:$0xf]
    %v3941 = vld [vmem:[%s21 + $0x24] sm:$0xf]
    %v3942 = vld [vmem:[%s21 + $0x28] sm:$0xf]
    %v3943 = vld [vmem:[%s21 + $0x2c] sm:$0xf]
    %v3944 = vld [vmem:[%s21 + $0x30] sm:$0xf]
    %v3945 = vld [vmem:[%s21 + $0x34] sm:$0xf]
    %v3946 = vld [vmem:[%s21 + $0x38] sm:$0xf]
    %v3947 = vld [vmem:[%s21 + $0x3c] sm:$0xf]
    %v3948 = vpack.c.bf16 %v3931, %v3931
    %v3949 = vld [vmem:[%s22] sm:$0x1]
    %v3951 = vlaneseq
    %v3952 = vshrl.u32 %v3951, 7
    %v3953 = vsub.s32 0, %v3952
    %v3954 = vrot.slane %v3949, %v3953
    %v3972 = vunpack.c.l.b16 %v3932
    %v3973 = vunpack.c.l.b16 %v3933
    %v3974 = vunpack.c.l.b16 %v3934
    %v3975 = vunpack.c.l.b16 %v3935
    %v3976 = vunpack.c.l.b16 %v3936
    %v3977 = vunpack.c.l.b16 %v3937
    %v3978 = vunpack.c.l.b16 %v3938
    %v3979 = vunpack.c.l.b16 %v3939
    %v3980 = vunpack.c.l.b16 %v3940
    %v3981 = vunpack.c.l.b16 %v3941
    %v3982 = vunpack.c.l.b16 %v3942
    %v3983 = vunpack.c.l.b16 %v3943
    %v3984 = vunpack.c.l.b16 %v3944
    %v3985 = vunpack.c.l.b16 %v3945
    %v3986 = vunpack.c.l.b16 %v3946
    %v3987 = vunpack.c.l.b16 %v3947
    %v3988 = vpack.c.b16 %v3973, %v3972
    %v3989 = vpack.c.b16 %v3975, %v3974
    %v3990 = vpack.c.b16 %v3977, %v3976
    %v3991 = vpack.c.b16 %v3979, %v3978
    %v3992 = vpack.c.b16 %v3981, %v3980
    %v3993 = vpack.c.b16 %v3983, %v3982
    %v3994 = vpack.c.b16 %v3985, %v3984
    %v3995 = vpack.c.b16 %v3987, %v3986
    %4004 = vmatprep.subr.bf16.mxu0 0
    %4005 = vmatpush1.bf16.msra.mxu0 %v3995
    %4006 = vmatprep.subr.bf16.mxu0 0
    %4007 = vmatpush1.bf16.msra.mxu0 %v3994
    %4008 = vmatprep.subr.bf16.mxu0 0
    %4009 = vmatpush1.bf16.msra.mxu0 %v3993
    %4010 = vmatprep.subr.bf16.mxu0 0
    %4011 = vmatpush1.bf16.msra.mxu0 %v3992
    %4012 = vmatprep.subr.bf16.mxu0 0
    %4013 = vmatpush1.bf16.msra.mxu0 %v3991
    %4014 = vmatprep.subr.bf16.mxu0 0
    %4015 = vmatpush1.bf16.msra.mxu0 %v3990
    %4016 = vmatprep.subr.bf16.mxu0 0
    %4017 = vmatpush1.bf16.msra.mxu0 %v3989
    %4018 = vmatprep.subr.bf16.mxu0 0
    %4019 = vmatpush1.bf16.msra.mxu0 %v3988
    %4020 = vmatprep.subr.bf16.mxu0 0
    %4021 = vmatpush2.bf16.msra.mxu0 0
    %4022 = vmatprep.subr.bf16.mxu0 0
    %4023 = vmatpush2.bf16.msra.mxu0 0
    %4024 = vmatprep.subr.bf16.mxu0 0
    %4025 = vmatpush2.bf16.msra.mxu0 0
    %4026 = vmatprep.subr.bf16.mxu0 0
    %4027 = vmatpush2.bf16.msra.mxu0 0
    %4028 = vmatprep.subr.bf16.mxu0 0
    %4029 = vmatpush2.bf16.msra.mxu0 0
    %4030 = vmatprep.subr.bf16.mxu0 0
    %4031 = vmatpush2.bf16.msra.mxu0 0
    %4032 = vmatprep.subr.bf16.mxu0 0
    %4033 = vmatpush2.bf16.msra.mxu0 0
    %4034 = vmatprep.subr.bf16.mxu0 0
    %4035 = vmatpush2.bf16.msra.mxu0 0
    %4036 = vmatprep.mubr.bf16.mxu0 0
    %4037 = vmatmul.mubr.bf16.gmra.mxu0 %v3948
    %v4038 = vpop.f32.mrf.mxu0
    %v4039 = vadd.f32 %v3954, %v4038
    %v4040 = vpop.f32.mrf.mxu0
    %v4041 = vpop.f32.mrf.mxu0
    %v4042 = vpop.f32.mrf.mxu0
    %4043 = vdwg.mxu0
    %v4044 = vmul.f32 %v4039, 0.5
    %v4045 = vmul.f32 %v4039, 0.044715
    %v4046 = vmul.f32 %v4045, %v4039
    %v4047 = vmul.f32 %v4046, %v4039
    %v4048 = vadd.f32 %v4039, %v4047
    %v4049 = vmul.f32 %v4048, 0.7978846
    %v4050 = vtanh.pop %v4049
    %v4051 = vadd.f32 %v4050, 1.0
    %v4052 = vmul.f32 %v4044, %v4051
    %v4053 = vld [vmem:[%s23] sm:$0x1]
    %v4054 = vld [vmem:[%s24] sm:$0x1]
    %4055 = vadd.xlane.f32.xlu0 %v4052
    %v4056 = vpop.xlane.xlu0 %4055
    %v4057 = vmul.f32 %v4056, %v126
    %v4058 = vsub.f32 %v4052, %v4057
    %v4059 = vmul.f32 %v4058, %v4058
    %4060 = vadd.xlane.f32.xlu0 %v4059
    %v4061 = vpop.xlane.xlu0 %4060
    %v4062 = vmul.f32 %v4061, %v126
    %v4063 = vadd.f32 %v4062, 1e-05
    %v4064 = vrsqrt.pop %v4063
    %v4065 = vmul.f32 %v4058, %v4064
    %v4067 = vlaneseq
    %v4068 = vshrl.u32 %v4067, 7
    %v4069 = vsub.s32 0, %v4068
    %v4070 = vrot.slane %v4053, %v4069
    %v4072 = vmul.f32 %v4065, %v4070
    %v4074 = vlaneseq
    %v4075 = vshrl.u32 %v4074, 7
    %v4076 = vsub.s32 0, %v4075
    %v4077 = vrot.slane %v4054, %v4076
    %v4079 = vadd.f32 %v4072, %v4077
    %v4080 = vld [vmem:[%s25] sm:$0xff]
    %v4081 = vld [vmem:[%s25 + $0x8] sm:$0xff]
    %v4082 = vld [vmem:[%s25 + $0x10] sm:$0xff]
    %v4083 = vld [vmem:[%s25 + $0x18] sm:$0xff]
    %v4084 = vld [vmem:[%s25 + $0x20] sm:$0xff]
    %v4085 = vld [vmem:[%s25 + $0x28] sm:$0xff]
    %v4086 = vld [vmem:[%s25 + $0x30] sm:$0xff]
    %v4087 = vld [vmem:[%s25 + $0x38] sm:$0xff]
    %v4088 = vld [vmem:[%s25 + $0x40] sm:$0xff]
    %v4089 = vld [vmem:[%s25 + $0x48] sm:$0xff]
    %v4090 = vld [vmem:[%s25 + $0x50] sm:$0xff]
    %v4091 = vld [vmem:[%s25 + $0x58] sm:$0xff]
    %v4092 = vld [vmem:[%s25 + $0x60] sm:$0xff]
    %v4093 = vld [vmem:[%s25 + $0x68] sm:$0xff]
    %v4094 = vld [vmem:[%s25 + $0x70] sm:$0xff]
    %v4095 = vld [vmem:[%s25 + $0x78] sm:$0xff]
    %v4096 = vpack.c.bf16 %v4079, %v4079
    %v4097 = vld [vmem:[%s26] sm:$0x3]
    %v4099 = vlaneseq
    %v4100 = vshrl.u32 %v4099, 7
    %v4101 = vsub.s32 0, %v4100
    %v4102 = vrot.slane %v4097, %v4101
    %v4103 = vlaneseq
    %v4104 = vshrl.u32 %v4103, 7
    %v4105 = vsub.s32 1, %v4104
    %v4106 = vrot.slane %v4097, %v4105
    %v4125 = vunpack.c.l.b16 %v4080
    %v4126 = vunpack.c.h.b16 %v4080
    %v4127 = vunpack.c.l.b16 %v4081
    %v4128 = vunpack.c.h.b16 %v4081
    %v4129 = vunpack.c.l.b16 %v4082
    %v4130 = vunpack.c.h.b16 %v4082
    %v4131 = vunpack.c.l.b16 %v4083
    %v4132 = vunpack.c.h.b16 %v4083
    %v4133 = vunpack.c.l.b16 %v4084
    %v4134 = vunpack.c.h.b16 %v4084
    %v4135 = vunpack.c.l.b16 %v4085
    %v4136 = vunpack.c.h.b16 %v4085
    %v4137 = vunpack.c.l.b16 %v4086
    %v4138 = vunpack.c.h.b16 %v4086
    %v4139 = vunpack.c.l.b16 %v4087
    %v4140 = vunpack.c.h.b16 %v4087
    %v4141 = vunpack.c.l.b16 %v4088
    %v4142 = vunpack.c.h.b16 %v4088
    %v4143 = vunpack.c.l.b16 %v4089
    %v4144 = vunpack.c.h.b16 %v4089
    %v4145 = vunpack.c.l.b16 %v4090
    %v4146 = vunpack.c.h.b16 %v4090
    %v4147 = vunpack.c.l.b16 %v4091
    %v4148 = vunpack.c.h.b16 %v4091
    %v4149 = vunpack.c.l.b16 %v4092
    %v4150 = vunpack.c.h.b16 %v4092
    %v4151 = vunpack.c.l.b16 %v4093
    %v4152 = vunpack.c.h.b16 %v4093
    %v4153 = vunpack.c.l.b16 %v4094
    %v4154 = vunpack.c.h.b16 %v4094
    %v4155 = vunpack.c.l.b16 %v4095
    %v4156 = vunpack.c.h.b16 %v4095
    %v4157 = vpack.c.b16 %v4127, %v4125
    %v4158 = vpack.c.b16 %v4128, %v4126
    %v4159 = vpack.c.b16 %v4131, %v4129
    %v4160 = vpack.c.b16 %v4132, %v4130
    %v4161 = vpack.c.b16 %v4135, %v4133
    %v4162 = vpack.c.b16 %v4136, %v4134
    %v4163 = vpack.c.b16 %v4139, %v4137
    %v4164 = vpack.c.b16 %v4140, %v4138
    %v4165 = vpack.c.b16 %v4143, %v4141
    %v4166 = vpack.c.b16 %v4144, %v4142
    %v4167 = vpack.c.b16 %v4147, %v4145
    %v4168 = vpack.c.b16 %v4148, %v4146
    %v4169 = vpack.c.b16 %v4151, %v4149
    %v4170 = vpack.c.b16 %v4152, %v4150
    %v4171 = vpack.c.b16 %v4155, %v4153
    %v4172 = vpack.c.b16 %v4156, %v4154
    %4189 = vmatprep.subr.bf16.mxu0 %v4172
    %4190 = vmatpush1.bf16.msra.mxu0 %v4171
    %4191 = vmatprep.subr.bf16.mxu0 %v4170
    %4192 = vmatpush1.bf16.msra.mxu0 %v4169
    %4193 = vmatprep.subr.bf16.mxu0 %v4168
    %4194 = vmatpush1.bf16.msra.mxu0 %v4167
    %4195 = vmatprep.subr.bf16.mxu0 %v4166
    %4196 = vmatpush1.bf16.msra.mxu0 %v4165
    %4197 = vmatprep.subr.bf16.mxu0 %v4164
    %4198 = vmatpush1.bf16.msra.mxu0 %v4163
    %4199 = vmatprep.subr.bf16.mxu0 %v4162
    %4200 = vmatpush1.bf16.msra.mxu0 %v4161
    %4201 = vmatprep.subr.bf16.mxu0 %v4160
    %4202 = vmatpush1.bf16.msra.mxu0 %v4159
    %4203 = vmatprep.subr.bf16.mxu0 %v4158
    %4204 = vmatpush1.bf16.msra.mxu0 %v4157
    %4205 = vmatprep.subr.bf16.mxu0 0
    %4206 = vmatpush2.bf16.msra.mxu0 0
    %4207 = vmatprep.subr.bf16.mxu0 0
    %4208 = vmatpush2.bf16.msra.mxu0 0
    %4209 = vmatprep.subr.bf16.mxu0 0
    %4210 = vmatpush2.bf16.msra.mxu0 0
    %4211 = vmatprep.subr.bf16.mxu0 0
    %4212 = vmatpush2.bf16.msra.mxu0 0
    %4213 = vmatprep.subr.bf16.mxu0 0
    %4214 = vmatpush2.bf16.msra.mxu0 0
    %4215 = vmatprep.subr.bf16.mxu0 0
    %4216 = vmatpush2.bf16.msra.mxu0 0
    %4217 = vmatprep.subr.bf16.mxu0 0
    %4218 = vmatpush2.bf16.msra.mxu0 0
    %4219 = vmatprep.subr.bf16.mxu0 0
    %4220 = vmatpush2.bf16.msra.mxu0 0
    %4221 = vmatprep.mubr.bf16.mxu0 0
    %4222 = vmatmul.mubr.bf16.gmra.mxu0 %v4096
    %v4223 = vpop.f32.mrf.mxu0
    %v4224 = vadd.f32 %v4102, %v4223
    %v4225 = vpop.f32.mrf.mxu0
    %v4226 = vadd.f32 %v4106, %v4225
    %v4227 = vpop.f32.mrf.mxu0
    %v4228 = vpop.f32.mrf.mxu0
    %4229 = vdwg.mxu0
    %4230 = vst [vmem:[%s27] sm:$0xff] %v4224
    %4231 = vst [vmem:[%s27 + $0x8] sm:$0xff] %v4226
    // Predicated region
    $region118: #{bert_forward.1} parent=1 // pred_check
      _
    $region119: #{bert_forward.1} parent=1 // pred_check_branch
      %4233 = sbr.rel (0) target = $region121
    $region120: #{bert_forward.1} parent=1 // pred_region
      _
    $region121: #{bert_forward.1} parent=1 // pred_fallthru
      _
    // Predicated region
    $region122: #{bert_forward.1} parent=1 // pred_check
      _
    $region123: #{bert_forward.1} parent=1 // pred_check_branch
      %4235 = sbr.rel (0) target = $region125
    $region124: #{bert_forward.1} parent=1 // pred_region
      %s4237 = ssub.s32 32, 32
      %4238 = vsyncadd [#allocation4], %s4237
      %s4240 = sshll.u32 [#allocation7], 4
      %s4241 = int_to_ptr.vmem [resolvable:$true] %s4240
      %4243 = dma.vmem_to_hbm [thread:$0]  %s4241, 32, %s28, [#allocation4]
    $region125: #{bert_forward.1} parent=1 // pred_fallthru
      _
    // Predicated region
    $region126: #{bert_forward.1} parent=1 // pred_check
      _
    $region127: #{bert_forward.1} parent=1 // pred_check_branch
      %4245 = sbr.rel (0) target = $region129
    $region128: #{bert_forward.1} parent=1 // pred_region
      _
    $region129: #{bert_forward.1} parent=1 // pred_fallthru
      _
    // Predicated region
    $region130: #{bert_forward.1} parent=1 // pred_check
      _
    $region131: #{bert_forward.1} parent=1 // pred_check_branch
      %4247 = sbr.rel (0) target = $region133
    $region132: #{bert_forward.1} parent=1 // pred_region
      %4248 = dma.done [#allocation4], 32
    $region133: #{bert_forward.1} parent=1 // pred_fallthru
      _
    %4249 = vsyncpa [#allocation3], 1
    %4250 = vsyncpa [#allocation6], 1
    %4251 = vsyncpa [#allocation4], 1

</llo_original>
